<compile_context>
chip_gen: v5e
topology: v5e:2x2
jax: 0.10.0
libtpu: 0.0.40
codegen_flags: <defaults>
</compile_context>

<pallas_src>
import functools

import jax
import jax.numpy as jnp
from jax.experimental import pallas as pl
from jax.experimental.pallas import tpu as pltpu

_EPS = 1e-5
_LANE = 128  # channel pad unit


def _vmem_limit_bytes():
    # Per-generation scoped-VMEM budget: ~75% of physical, capped at 100 MiB
    # (v6e/v5e have 128 MiB, v7x has 64 MiB -> 48 MiB there).
    try:
        cap = int(pltpu.get_tpu_info().vmem_capacity_bytes)
    except Exception:
        cap = 64 * 1024 * 1024          # conservative (v7x-sized) fallback
    return min((cap * 3) // 4, 100 * 1024 * 1024)


_VMEM_LIMIT = _vmem_limit_bytes()


def _cparams(*semantics):
    return pltpu.CompilerParams(dimension_semantics=semantics,
                                vmem_limit_bytes=_VMEM_LIMIT)


def _round_up(x, m):
    return ((x + m - 1) // m) * m


def _row_tile_cap(wo):
    # bigger VMEM budgets -> bigger row tiles (amortize ~0.35us/grid-step)
    target = 4096 if _VMEM_LIMIT >= 80 * 1024 * 1024 else 2048
    return max(1, target // max(wo, 1))


def _pick_row_tile(ho, wo, cap):
    cap = max(1, min(ho, cap))
    best = None
    for d in range(cap, 0, -1):
        if ho % d == 0:
            if best is None:
                best = d
            if (d * wo) % 8 == 0:       # prefer matmul M a multiple of 8
                return d
    return best if best is not None else ho


# ------------------------------ Pallas kernels ------------------------------ #

def _tap_matmul(get_tile, w_ref, k):
    # implicit GEMM: accumulate k*k shifted-tap matmuls into one f32 accumulator
    acc = None
    for kh in range(k):
        for kw in range(k):
            d = jnp.dot(get_tile(kh, kw), w_ref[kh * k + kw],
                        preferred_element_type=jnp.float32)
            acc = d if acc is None else acc + d
    return acc


def _partial_stats(acc, chunk=256):
    # per-channel (sum, sum_sq) of this tile, reduced in row chunks so the
    # squared temp stays a few vregs (no second full-tile f32 buffer / spills)
    rows, c = acc.shape
    s = jnp.zeros((1, c), jnp.float32)
    ss = jnp.zeros((1, c), jnp.float32)
    for i in range(0, rows, chunk):
        a = acc[i:i + chunk]
        s = s + jnp.sum(a, axis=0, keepdims=True)
        ss = ss + jnp.sum(a * a, axis=0, keepdims=True)
    return jnp.concatenate([s, ss], axis=0)


def _conv_in_kernel(x_ref, w_ref, *rest, k, s, th, wo, cpo, downsample):
    """conv1 (3x3, stride s) [+ fused 1x1 shortcut conv] + BN partial stats.

    x_ref: (1, s*s, Hph, Wph, Cpi) stride-phase-decomposed, spatially padded
    image (constant index across the row-tile axis -> VMEM-resident per image).

    y_ref: (1, Ho+2, Wo+2, Cpo) *spatially padded* conv1 output, also resident
    per image: the zero ring is written once at r == 0 and each row tile writes
    its interior slab, so no separate XLA padding pass is needed for conv2.
    """
    if downsample:
        wr_ref, y_ref, st_ref, yr_ref, str_ref = rest
    else:
        y_ref, st_ref = rest

    r = pl.program_id(1)
    row0 = pl.multiple_of(r * th, th)

    @pl.when(r == 0)
    def _():
        # zero the whole padded block once per image (covers the 1-px ring)
        y_ref[...] = jnp.zeros_like(y_ref)

    def get_tile(kh, kw):
        ph = (kh % s) * s + (kw % s)
        xs = x_ref[0, ph, pl.ds(row0 + kh // s, th), pl.ds(kw // s, wo), :]
        return xs.reshape(th * wo, -1)

    acc = _tap_matmul(get_tile, w_ref, k)
    y_ref[0, pl.ds(row0 + 1, th), pl.ds(1, wo), :] = (
        acc.reshape(th, wo, cpo).astype(y_ref.dtype))
    st_ref[0] = _partial_stats(acc)

    if downsample:
        # 1x1 strided shortcut conv: phase (1%s, 1%s), offset (1//s, 1//s)
        q, p = 1 // s, 1 % s
        xs = x_ref[0, p * s + p, pl.ds(row0 + q, th), pl.ds(q, wo), :]
        yr = jnp.dot(xs.reshape(th * wo, -1), wr_ref[...],
                     preferred_element_type=jnp.float32)
        yr_ref[0] = yr.reshape(th, wo, cpo).astype(yr_ref.dtype)
        str_ref[0] = _partial_stats(yr)


def _conv2_kernel(y1p_ref, w_ref, s1_ref, t1_ref, y_ref, st_ref, act_ref,
                  *, k, th, ho, wo, cpo, mm_dtype):
    """bn1+relu (pre-activated once into scratch) -> conv2 (3x3, s=1) + BN2 stats.

    y1p_ref: (1, Ho+2, Wo+2, Cpo) padded raw conv1 output (mm_dtype, resident
    per image).  The bn1 affine + relu + zero-ring mask is applied ONCE per
    grid step to the (th+2, wo+2, Cpo) halo window and stored into act_ref;
    the 9 taps then just slice the scratch.
    """
    r = pl.program_id(1)
    row0 = pl.multiple_of(r * th, th)
    s1 = s1_ref[...]                      # (1, Cpo) f32
    t1 = t1_ref[...]

    win = y1p_ref[0, pl.ds(row0, th + 2), :, :].astype(jnp.float32)
    act = jnp.maximum(win * s1 + t1, 0.0)                 # bn1 + relu (f32)
    rg = jax.lax.broadcasted_iota(jnp.int32, (th + 2, wo + 2, 1), 0) + row0
    cg = jax.lax.broadcasted_iota(jnp.int32, (th + 2, wo + 2, 1), 1)
    valid = (rg >= 1) & (rg <= ho) & (cg >= 1) & (cg <= wo)
    act_ref[...] = jnp.where(valid, act, 0.0).astype(mm_dtype)

    def get_tile(kh, kw):
        a = act_ref[pl.ds(kh, th), pl.ds(kw, wo), :]
        return a.reshape(th * wo, -1)

    acc = _tap_matmul(get_tile, w_ref, k)
    y_ref[0] = acc.reshape(th, wo, cpo).astype(y_ref.dtype)
    st_ref[0] = _partial_stats(acc)


def _finalize_kernel(y2_ref, s2_ref, t2_ref, res_ref, *rest, downsample):
    """bn2 + residual (bn_r(shortcut conv) or identity) + final ReLU."""
    if downsample:
        sr_ref, tr_ref, o_ref = rest
        res = res_ref[0].astype(jnp.float32) * sr_ref[...] + tr_ref[...]
    else:
        (o_ref,) = rest
        res = res_ref[0].astype(jnp.float32)
    y = y2_ref[0].astype(jnp.float32) * s2_ref[...] + t2_ref[...]
    o_ref[0] = jnp.maximum(y + res, 0.0)


# ----------------------------- pallas_call setup ---------------------------- #

def _conv_in_call(x_ph, w1, wr, *, stride, k, th, ho, wo, cpi, cpo,
                  downsample, mm_dtype):
    n = x_ph.shape[0]
    nr = ho // th
    hph, wph = x_ph.shape[2], x_ph.shape[3]

    in_specs = [
        pl.BlockSpec((1, stride * stride, hph, wph, cpi),
                     lambda i, r: (i, 0, 0, 0, 0)),                 # resident/img
        pl.BlockSpec((k * k, cpi, cpo), lambda i, r: (0, 0, 0)),    # resident
    ]
    inputs = [x_ph, w1]
    out_shape = [jax.ShapeDtypeStruct((n, ho + 2, wo + 2, cpo), mm_dtype),
                 jax.ShapeDtypeStruct((n * nr, 2, cpo), jnp.float32)]
    out_specs = [pl.BlockSpec((1, ho + 2, wo + 2, cpo), lambda i, r: (i, 0, 0, 0)),
                 pl.BlockSpec((1, 2, cpo), lambda i, r: (i * nr + r, 0, 0))]
    if downsample:
        in_specs.append(pl.BlockSpec((cpi, cpo), lambda i, r: (0, 0)))
        inputs.append(wr)
        out_shape += [jax.ShapeDtypeStruct((n, ho, wo, cpo), mm_dtype),
                      jax.ShapeDtypeStruct((n * nr, 2, cpo), jnp.float32)]
        out_specs += [pl.BlockSpec((1, th, wo, cpo), lambda i, r: (i, r, 0, 0)),
                      pl.BlockSpec((1, 2, cpo), lambda i, r: (i * nr + r, 0, 0))]

    kernel = functools.partial(_conv_in_kernel, k=k, s=stride, th=th, wo=wo,
                               cpo=cpo, downsample=downsample)
    # The padded y output block is partially written across the row-tile axis
    # (resident accumulator pattern) -> that axis must stay sequential.
    return pl.pallas_call(
        kernel,
        grid=(n, nr),
        in_specs=in_specs,
        out_specs=tuple(out_specs),
        out_shape=tuple(out_shape),
        compiler_params=_cparams("parallel", "arbitrary"),
    )(*inputs)


def _conv2_call(y1p, w2, s1, t1, *, th, ho, wo, cpo, mm_dtype):
    n = y1p.shape[0]
    nr = ho // th
    kernel = functools.partial(_conv2_kernel, k=3, th=th, ho=ho, wo=wo,
                               cpo=cpo, mm_dtype=mm_dtype)
    return pl.pallas_call(
        kernel,
        grid=(n, nr),
        in_specs=[
            pl.BlockSpec((1, ho + 2, wo + 2, cpo), lambda i, r: (i, 0, 0, 0)),
            pl.BlockSpec((9, cpo, cpo), lambda i, r: (0, 0, 0)),     # resident
            pl.BlockSpec((1, cpo), lambda i, r: (0, 0)),             # scale1
            pl.BlockSpec((1, cpo), lambda i, r: (0, 0)),             # shift1
        ],
        out_specs=(pl.BlockSpec((1, th, wo, cpo), lambda i, r: (i, r, 0, 0)),
                   pl.BlockSpec((1, 2, cpo), lambda i, r: (i * nr + r, 0, 0))),
        out_shape=(jax.ShapeDtypeStruct((n, ho, wo, cpo), mm_dtype),
                   jax.ShapeDtypeStruct((n * nr, 2, cpo), jnp.float32)),
        scratch_shapes=[pltpu.VMEM((th + 2, wo + 2, cpo), mm_dtype)],
        compiler_params=_cparams("parallel", "parallel"),
    )(y1p, w2, s1, t1)


def _finalize_call(y2, s2, t2, res, sr, tr, *, th, downsample):
    n, ho, wo, cpo = y2.shape
    nr = ho // th
    in_specs = [
        pl.BlockSpec((1, th, wo, cpo), lambda i, r: (i, r, 0, 0)),
        pl.BlockSpec((1, cpo), lambda i, r: (0, 0)),
        pl.BlockSpec((1, cpo), lambda i, r: (0, 0)),
        pl.BlockSpec((1, th, wo, cpo), lambda i, r: (i, r, 0, 0)),
    ]
    inputs = [y2, s2, t2, res]
    if downsample:
        in_specs += [pl.BlockSpec((1, cpo), lambda i, r: (0, 0)),
                     pl.BlockSpec((1, cpo), lambda i, r: (0, 0))]
        inputs += [sr, tr]
    kernel = functools.partial(_finalize_kernel, downsample=downsample)
    return pl.pallas_call(
        kernel,
        grid=(n, nr),
        in_specs=in_specs,
        out_specs=pl.BlockSpec((1, th, wo, cpo), lambda i, r: (i, r, 0, 0)),
        out_shape=jax.ShapeDtypeStruct((n, ho, wo, cpo), jnp.float32),
        compiler_params=_cparams("parallel", "parallel"),
    )(*inputs)


# --------------------------------- JAX glue --------------------------------- #

def _phase_decompose(xp, s, hph, wph):
    """(N, Hp, Wp, C) padded -> (N, s*s, hph, wph, C) stride phases (pure
    re-indexing; lets the kernel express a strided conv as un-strided reads)."""
    phases = []
    for rh in range(s):
        for rw in range(s):
            sub = xp[:, rh::s, rw::s, :][:, :hph, :wph, :]
            dh, dw = hph - sub.shape[1], wph - sub.shape[2]
            if dh or dw:
                sub = jnp.pad(sub, ((0, 0), (0, dh), (0, dw), (0, 0)))
            phases.append(sub)
    return jnp.stack(phases, axis=1)


def _prep_conv_w(w_oihw, cpi, cpo, dtype):
    # torch (Cout, Cin, kh, kw) -> tap-major (kh*kw, Cin_pad, Cout_pad)
    co, ci, kh, kw = w_oihw.shape
    wt = jnp.transpose(w_oihw, (2, 3, 1, 0)).reshape(kh * kw, ci, co)
    wt = jnp.pad(wt, ((0, 0), (0, cpi - ci), (0, cpo - co)))
    return wt.astype(dtype)


def _prep_gamma_beta(g, b, cpo):
    # pad gamma with 0 (not 1) so padded-lane scale is exactly 0 and can never
    # leak rsqrt(eps)-amplified values if a pad lane ever becomes nonzero
    c = g.shape[0]
    gp = jnp.pad(g.astype(jnp.float32), (0, cpo - c))
    bp = jnp.pad(b.astype(jnp.float32), (0, cpo - c))
    return gp, bp


def _bn_scale_shift(partial, m, gamma, beta):
    # reduce per-tile (sum, sum_sq) partials -> per-channel affine scale/shift
    # TODO(synk): E[x^2]-E[x]^2 can cancel for huge activations; a Welford-style
    # combine would be more robust.
    tot = jnp.sum(partial, axis=0)                     # (2, Cpo)
    mean = tot[0] / m
    var = jnp.maximum(tot[1] / m - mean * mean, 0.0)   # biased var (BN training)
    scale = gamma * jax.lax.rsqrt(var + _EPS)
    shift = beta - mean * scale
    return scale.reshape(1, -1), shift.reshape(1, -1)


@functools.partial(jax.jit, static_argnames=("stride", "mm_dtype", "row_tile"))
def basic_block_forward(x_nchw, params, stride, mm_dtype=jnp.bfloat16,
                        row_tile=None):
    k = 3
    x = jnp.transpose(x_nchw, (0, 2, 3, 1)).astype(jnp.float32)     # NHWC
    n, h, w, cin = x.shape
    cout = params["w1"].shape[0]
    ho = (h + 2 - k) // stride + 1
    wo = (w + 2 - k) // stride + 1
    cpi = _round_up(cin, _LANE)
    cpo = _round_up(cout, _LANE)
    th = _pick_row_tile(ho, wo, row_tile if row_tile is not None
                        else _row_tile_cap(wo))
    downsample = (stride != 1) or (cin != cout)
    m = n * ho * wo

    # channel pad -> spatial zero-pad -> stride-phase decompose (plain-JAX glue)
    xc = jnp.pad(x, ((0, 0), (0, 0), (0, 0), (0, cpi - cin)))
    xp = jnp.pad(xc, ((0, 0), (1, 1), (1, 1), (0, 0)))
    qmax = (k - 1) // stride
    x_ph = _phase_decompose(xp.astype(mm_dtype), stride, ho + qmax, wo + qmax)

    w1 = _prep_conv_w(params["w1"], cpi, cpo, mm_dtype)
    w2 = _prep_conv_w(params["w2"], cpo, cpo, mm_dtype)
    g1, b1 = _prep_gamma_beta(params["g1"], params["b1"], cpo)
    g2, b2 = _prep_gamma_beta(params["g2"], params["b2"], cpo)

    sr = tr = None
    if downsample:
        wr = _prep_conv_w(params["wr"], cpi, cpo, mm_dtype).reshape(cpi, cpo)
        gr, br = _prep_gamma_beta(params["gr"], params["br"], cpo)
        y1p, st1, yr, strr = _conv_in_call(
            x_ph, w1, wr, stride=stride, k=k, th=th, ho=ho, wo=wo,
            cpi=cpi, cpo=cpo, downsample=True, mm_dtype=mm_dtype)
        sr, tr = _bn_scale_shift(strr, m, gr, br)
        res = yr                                   # raw shortcut conv (mm_dtype)
    else:
        y1p, st1 = _conv_in_call(
            x_ph, w1, None, stride=stride, k=k, th=th, ho=ho, wo=wo,
            cpi=cpi, cpo=cpo, downsample=False, mm_dtype=mm_dtype)
        res = xc                                   # identity residual (f32)
    s1, t1 = _bn_scale_shift(st1, m, g1, b1)

    # conv2: bn1+relu pre-activated in-kernel; y1p comes straight from conv1's
    # padded output (no separate XLA jnp.pad pass)
    y2, st2 = _conv2_call(y1p, w2, s1, t1, th=th, ho=ho, wo=wo, cpo=cpo,
                          mm_dtype=mm_dtype)
    s2, t2 = _bn_scale_shift(st2, m, g2, b2)

    out = _finalize_call(y2, s2, t2, res, sr, tr, th=th, downsample=downsample)
    return jnp.transpose(out[..., :cout], (0, 3, 1, 2))             # NCHW


# ----------------------------- pure-JAX reference --------------------------- #

def reference_forward(x_nchw, params, stride, conv_dtype=jnp.float32):
    """XLA reference of BasicBlock.forward (training-mode BatchNorm).

    conv_dtype controls only the conv operand precision (mirrors the kernel's
    MXU input dtype); BN / elementwise math and accumulation are f32."""
    x = jnp.transpose(x_nchw, (0, 2, 3, 1)).astype(jnp.float32)
    cin = x.shape[-1]
    cout = params["w1"].shape[0]

    def conv(inp, w_oihw, s):
        ksz = w_oihw.shape[2]
        pad = (ksz - 1) // 2
        return jax.lax.conv_general_dilated(
            inp.astype(conv_dtype),
            jnp.transpose(w_oihw, (2, 3, 1, 0)).astype(conv_dtype),
            (s, s), [(pad, pad), (pad, pad)],
            dimension_numbers=("NHWC", "HWIO", "NHWC"),
            preferred_element_type=jnp.float32)

    def bn(y, g, b):
        mean = jnp.mean(y, axis=(0, 1, 2), keepdims=True)
        var = jnp.mean((y - mean) ** 2, axis=(0, 1, 2), keepdims=True)
        return (y - mean) * jax.lax.rsqrt(var + _EPS) * g + b

    out = jax.nn.relu(bn(conv(x, params["w1"], stride), params["g1"], params["b1"]))
    out = bn(conv(out, params["w2"], 1), params["g2"], params["b2"])
    if stride != 1 or cin != cout:
        res = bn(conv(x, params["wr"], stride), params["gr"], params["br"])
    else:
        res = x
    return jnp.transpose(jax.nn.relu(out + res), (0, 3, 1, 2))


# ------------------------------------ main ---------------------------------- #

if __name__ == "__main__":
    key = jax.random.PRNGKey(0)
    keys = jax.random.split(key, 12)

    def make_params(ks, cin, cout, stride):
        p = {
            "w1": jax.random.normal(ks[0], (cout, cin, 3, 3), jnp.float32) * 0.1,
            "g1": jax.random.uniform(ks[1], (cout,), jnp.float32, 0.5, 1.5),
            "b1": jax.random.normal(ks[2], (cout,), jnp.float32) * 0.1,
            "w2": jax.random.normal(ks[3], (cout, cout, 3, 3), jnp.float32) * 0.1,
            "g2": jax.random.uniform(ks[4], (cout,), jnp.float32, 0.5, 1.5),
            "b2": jax.random.normal(ks[5], (cout,), jnp.float32) * 0.1,
        }
        if stride != 1 or cin != cout:
            p["wr"] = jax.random.normal(ks[6], (cout, cin, 1, 1), jnp.float32) * 0.1
            p["gr"] = jax.random.uniform(ks[7], (cout,), jnp.float32, 0.5, 1.5)
            p["br"] = jax.random.normal(ks[8], (cout,), jnp.float32) * 0.1
        return p

    # config A: stride-2 downsample block, 2 row tiles (exercises the 1x1-conv
    # residual and the resident padded-output / cross-tile BN stats paths)
    n, cin, hw, cout, stride = 2, 4, 16, 8, 2
    params = make_params(keys[:9], cin, cout, stride)
    x = jax.random.normal(keys[9], (n, cin, hw, hw), jnp.float32)

    # bf16 MXU operands + bf16 intermediates (production path).  bf16 storage of
    # y1/yr/y2 adds rounding that BN scales amplify, hence the loose abs bound.
    out = jax.block_until_ready(
        basic_block_forward(x, params, stride, mm_dtype=jnp.bfloat16, row_tile=4))
    ref = reference_forward(x, params, stride, conv_dtype=jnp.bfloat16)
    assert out.shape == (n, cout, hw // stride, hw // stride), out.shape
    err = float(jnp.max(jnp.abs(out - ref)))
    assert err < 1e-1, f"bf16 downsample-block mismatch: {err}"

    # f32 MXU operands (f32 intermediates follow mm_dtype, so this is the tight
    # structural check modulo matmul precision policy differences).
    out_f32 = jax.block_until_ready(
        basic_block_forward(x, params, stride, mm_dtype=jnp.float32, row_tile=4))
    ref_f32 = reference_forward(x, params, stride, conv_dtype=jnp.float32)
    err_f32 = float(jnp.max(jnp.abs(out_f32 - ref_f32)))
    assert err_f32 < 1e-1, f"f32 downsample-block mismatch: {err_f32}"

    # config B: stride-1 identity-residual block; 2 row tiles per image so the
    # cross-tile BatchNorm statistics + padded-ring paths are exercised again.
    cin2 = cout2 = 8
    params2 = make_params(jax.random.split(keys[10], 9), cin2, cout2, 1)
    x2 = jax.random.normal(keys[11], (n, cin2, hw, hw), jnp.float32)
    out2 = jax.block_until_ready(
        basic_block_forward(x2, params2, 1, mm_dtype=jnp.bfloat16, row_tile=8))
    ref2 = reference_forward(x2, params2, 1, conv_dtype=jnp.bfloat16)
    assert out2.shape == (n, cout2, hw, hw), out2.shape
    err2 = float(jnp.max(jnp.abs(out2 - ref2)))
    assert err2 < 1e-1, f"bf16 identity-block mismatch: {err2}"

    print("KERNEL_OK")
</pallas_src>

<mosaic_0001>
module attributes {stable_mosaic.version = 11 : i64} {
  func.func @_conv_in_kernel(%arg0: i32, %arg1: i32, %arg2: memref<1x4x9x9x128xbf16, #tpu.memory_space<vmem>>, %arg3: memref<9x128x128xbf16, #tpu.memory_space<vmem>>, %arg4: memref<128x128xbf16, #tpu.memory_space<vmem>>, %arg5: memref<1x10x10x128xbf16, #tpu.memory_space<vmem>>, %arg6: memref<1x2x128xf32, #tpu.memory_space<vmem>>, %arg7: memref<1x4x8x128xbf16, #tpu.memory_space<vmem>>, %arg8: memref<1x2x128xf32, #tpu.memory_space<vmem>>) attributes {dimension_semantics = [#tpu.dimension_semantics<parallel>, #tpu.dimension_semantics<arbitrary>], iteration_bounds = array<i64: 2, 2>, scalar_prefetch = 0 : i64, scratch_operands = 0 : i64, tpu.core_type = #tpu.core_type<tc>, window_params = [{transform_indices = @transform_0, window_bounds = array<i64: 1, 4, 9, 9, 128>}, {pipeline_mode = #tpu.pipeline_mode<synchronous>, transform_indices = @transform_1, window_bounds = array<i64: 9, 128, 128>}, {pipeline_mode = #tpu.pipeline_mode<synchronous>, transform_indices = @transform_2, window_bounds = array<i64: 128, 128>}, {transform_indices = @transform_3, window_bounds = array<i64: 1, 10, 10, 128>}, {transform_indices = @transform_4, window_bounds = array<i64: 1, 2, 128>}, {transform_indices = @transform_5, window_bounds = array<i64: 1, 4, 8, 128>}, {transform_indices = @transform_6, window_bounds = array<i64: 1, 2, 128>}]} {
    %c4_i32 = arith.constant 4 : i32
    %0 = arith.muli %arg1, %c4_i32 : i32
    %1 = tpu.assume_multiple %0, 4 : i32
    %c0_i32 = arith.constant 0 : i32
    %2 = arith.cmpi eq, %arg1, %c0_i32 : i32
    %3 = arith.extui %2 : i1 to i32
    %c0_i32_0 = arith.constant 0 : i32
    %4 = arith.cmpi ne, %3, %c0_i32_0 : i32
    scf.if %4 {
      %cst_101 = arith.constant 0.000000e+00 : bf16
      %130 = vector.broadcast %cst_101 : bf16 to vector<1x10x10x128xbf16>
      %c0_102 = arith.constant 0 : index
      %c0_103 = arith.constant 0 : index
      %c0_104 = arith.constant 0 : index
      %c0_105 = arith.constant 0 : index
      %131 = vector.load %arg5[%c0_102, %c0_103, %c0_104, %c0_105] : memref<1x10x10x128xbf16, #tpu.memory_space<vmem>>, vector<1x10x10x128xbf16>
      tpu.vector_store %arg5[%c0_102, %c0_103, %c0_104, %c0_105], %130 {strides = array<i32>} : memref<1x10x10x128xbf16, #tpu.memory_space<vmem>>, vector<1x10x10x128xbf16>,
    } else {
    }
    %c0_i32_1 = arith.constant 0 : i32
    %5 = arith.addi %1, %c0_i32_1 : i32
    %c0 = arith.constant 0 : index
    %c0_2 = arith.constant 0 : index
    %6 = arith.index_cast %5 : i32 to index
    %c0_3 = arith.constant 0 : index
    %c0_4 = arith.constant 0 : index
    %7 = vector.load %arg2[%c0, %c0_2, %6, %c0_3, %c0_4] : memref<1x4x9x9x128xbf16, #tpu.memory_space<vmem>>, vector<1x1x4x8x128xbf16>
    %8 = vector.shape_cast %7 : vector<1x1x4x8x128xbf16> to vector<4x8x128xbf16>
    %9 = vector.shape_cast %8 : vector<4x8x128xbf16> to vector<32x128xbf16>
    %c0_5 = arith.constant 0 : index
    %c0_6 = arith.constant 0 : index
    %c0_7 = arith.constant 0 : index
    %10 = vector.load %arg3[%c0_5, %c0_6, %c0_7] : memref<9x128x128xbf16, #tpu.memory_space<vmem>>, vector<1x128x128xbf16>
    %11 = vector.shape_cast %10 : vector<1x128x128xbf16> to vector<128x128xbf16>
    %cst = arith.constant dense<0.000000e+00> : vector<32x128xf32>
    %12 = tpu.matmul %9, %11, %cst {dimension_numbers = #tpu.dot_dimension_numbers<[1], [0], [0], [1], [0, 0, 1, 1], [], []>} : vector<32x128xbf16>, vector<128x128xbf16>, vector<32x128xf32> -> vector<32x128xf32>
    %c0_i32_8 = arith.constant 0 : i32
    %13 = arith.addi %1, %c0_i32_8 : i32
    %c0_9 = arith.constant 0 : index
    %c1 = arith.constant 1 : index
    %14 = arith.index_cast %13 : i32 to index
    %c0_10 = arith.constant 0 : index
    %c0_11 = arith.constant 0 : index
    %15 = vector.load %arg2[%c0_9, %c1, %14, %c0_10, %c0_11] : memref<1x4x9x9x128xbf16, #tpu.memory_space<vmem>>, vector<1x1x4x8x128xbf16>
    %16 = vector.shape_cast %15 : vector<1x1x4x8x128xbf16> to vector<4x8x128xbf16>
    %17 = vector.shape_cast %16 : vector<4x8x128xbf16> to vector<32x128xbf16>
    %c1_12 = arith.constant 1 : index
    %c0_13 = arith.constant 0 : index
    %c0_14 = arith.constant 0 : index
    %18 = vector.load %arg3[%c1_12, %c0_13, %c0_14] : memref<9x128x128xbf16, #tpu.memory_space<vmem>>, vector<1x128x128xbf16>
    %19 = vector.shape_cast %18 : vector<1x128x128xbf16> to vector<128x128xbf16>
    %cst_15 = arith.constant dense<0.000000e+00> : vector<32x128xf32>
    %20 = tpu.matmul %17, %19, %cst_15 {dimension_numbers = #tpu.dot_dimension_numbers<[1], [0], [0], [1], [0, 0, 1, 1], [], []>} : vector<32x128xbf16>, vector<128x128xbf16>, vector<32x128xf32> -> vector<32x128xf32>
    %21 = arith.addf %12, %20 : vector<32x128xf32>
    %c0_i32_16 = arith.constant 0 : i32
    %22 = arith.addi %1, %c0_i32_16 : i32
    %c0_17 = arith.constant 0 : index
    %c0_18 = arith.constant 0 : index
    %23 = arith.index_cast %22 : i32 to index
    %c1_19 = arith.constant 1 : index
    %c0_20 = arith.constant 0 : index
    %24 = vector.load %arg2[%c0_17, %c0_18, %23, %c1_19, %c0_20] : memref<1x4x9x9x128xbf16, #tpu.memory_space<vmem>>, vector<1x1x4x8x128xbf16>
    %25 = vector.shape_cast %24 : vector<1x1x4x8x128xbf16> to vector<4x8x128xbf16>
    %26 = vector.shape_cast %25 : vector<4x8x128xbf16> to vector<32x128xbf16>
    %c2 = arith.constant 2 : index
    %c0_21 = arith.constant 0 : index
    %c0_22 = arith.constant 0 : index
    %27 = vector.load %arg3[%c2, %c0_21, %c0_22] : memref<9x128x128xbf16, #tpu.memory_space<vmem>>, vector<1x128x128xbf16>
    %28 = vector.shape_cast %27 : vector<1x128x128xbf16> to vector<128x128xbf16>
    %cst_23 = arith.constant dense<0.000000e+00> : vector<32x128xf32>
    %29 = tpu.matmul %26, %28, %cst_23 {dimension_numbers = #tpu.dot_dimension_numbers<[1], [0], [0], [1], [0, 0, 1, 1], [], []>} : vector<32x128xbf16>, vector<128x128xbf16>, vector<32x128xf32> -> vector<32x128xf32>
    %30 = arith.addf %21, %29 : vector<32x128xf32>
    %c0_i32_24 = arith.constant 0 : i32
    %31 = arith.addi %1, %c0_i32_24 : i32
    %c0_25 = arith.constant 0 : index
    %c2_26 = arith.constant 2 : index
    %32 = arith.index_cast %31 : i32 to index
    %c0_27 = arith.constant 0 : index
    %c0_28 = arith.constant 0 : index
    %33 = vector.load %arg2[%c0_25, %c2_26, %32, %c0_27, %c0_28] : memref<1x4x9x9x128xbf16, #tpu.memory_space<vmem>>, vector<1x1x4x8x128xbf16>
    %34 = vector.shape_cast %33 : vector<1x1x4x8x128xbf16> to vector<4x8x128xbf16>
    %35 = vector.shape_cast %34 : vector<4x8x128xbf16> to vector<32x128xbf16>
    %c3 = arith.constant 3 : index
    %c0_29 = arith.constant 0 : index
    %c0_30 = arith.constant 0 : index
    %36 = vector.load %arg3[%c3, %c0_29, %c0_30] : memref<9x128x128xbf16, #tpu.memory_space<vmem>>, vector<1x128x128xbf16>
    %37 = vector.shape_cast %36 : vector<1x128x128xbf16> to vector<128x128xbf16>
    %cst_31 = arith.constant dense<0.000000e+00> : vector<32x128xf32>
    %38 = tpu.matmul %35, %37, %cst_31 {dimension_numbers = #tpu.dot_dimension_numbers<[1], [0], [0], [1], [0, 0, 1, 1], [], []>} : vector<32x128xbf16>, vector<128x128xbf16>, vector<32x128xf32> -> vector<32x128xf32>
    %39 = arith.addf %30, %38 : vector<32x128xf32>
    %c0_i32_32 = arith.constant 0 : i32
    %40 = arith.addi %1, %c0_i32_32 : i32
    %c0_33 = arith.constant 0 : index
    %c3_34 = arith.constant 3 : index
    %41 = arith.index_cast %40 : i32 to index
    %c0_35 = arith.constant 0 : index
    %c0_36 = arith.constant 0 : index
    %42 = vector.load %arg2[%c0_33, %c3_34, %41, %c0_35, %c0_36] : memref<1x4x9x9x128xbf16, #tpu.memory_space<vmem>>, vector<1x1x4x8x128xbf16>
    %43 = vector.shape_cast %42 : vector<1x1x4x8x128xbf16> to vector<4x8x128xbf16>
    %44 = vector.shape_cast %43 : vector<4x8x128xbf16> to vector<32x128xbf16>
    %c4 = arith.constant 4 : index
    %c0_37 = arith.constant 0 : index
    %c0_38 = arith.constant 0 : index
    %45 = vector.load %arg3[%c4, %c0_37, %c0_38] : memref<9x128x128xbf16, #tpu.memory_space<vmem>>, vector<1x128x128xbf16>
    %46 = vector.shape_cast %45 : vector<1x128x128xbf16> to vector<128x128xbf16>
    %cst_39 = arith.constant dense<0.000000e+00> : vector<32x128xf32>
    %47 = tpu.matmul %44, %46, %cst_39 {dimension_numbers = #tpu.dot_dimension_numbers<[1], [0], [0], [1], [0, 0, 1, 1], [], []>} : vector<32x128xbf16>, vector<128x128xbf16>, vector<32x128xf32> -> vector<32x128xf32>
    %48 = arith.addf %39, %47 : vector<32x128xf32>
    %c0_i32_40 = arith.constant 0 : i32
    %49 = arith.addi %1, %c0_i32_40 : i32
    %c0_41 = arith.constant 0 : index
    %c2_42 = arith.constant 2 : index
    %50 = arith.index_cast %49 : i32 to index
    %c1_43 = arith.constant 1 : index
    %c0_44 = arith.constant 0 : index
    %51 = vector.load %arg2[%c0_41, %c2_42, %50, %c1_43, %c0_44] : memref<1x4x9x9x128xbf16, #tpu.memory_space<vmem>>, vector<1x1x4x8x128xbf16>
    %52 = vector.shape_cast %51 : vector<1x1x4x8x128xbf16> to vector<4x8x128xbf16>
    %53 = vector.shape_cast %52 : vector<4x8x128xbf16> to vector<32x128xbf16>
    %c5 = arith.constant 5 : index
    %c0_45 = arith.constant 0 : index
    %c0_46 = arith.constant 0 : index
    %54 = vector.load %arg3[%c5, %c0_45, %c0_46] : memref<9x128x128xbf16, #tpu.memory_space<vmem>>, vector<1x128x128xbf16>
    %55 = vector.shape_cast %54 : vector<1x128x128xbf16> to vector<128x128xbf16>
    %cst_47 = arith.constant dense<0.000000e+00> : vector<32x128xf32>
    %56 = tpu.matmul %53, %55, %cst_47 {dimension_numbers = #tpu.dot_dimension_numbers<[1], [0], [0], [1], [0, 0, 1, 1], [], []>} : vector<32x128xbf16>, vector<128x128xbf16>, vector<32x128xf32> -> vector<32x128xf32>
    %57 = arith.addf %48, %56 : vector<32x128xf32>
    %c1_i32 = arith.constant 1 : i32
    %58 = arith.addi %1, %c1_i32 : i32
    %c0_48 = arith.constant 0 : index
    %c0_49 = arith.constant 0 : index
    %59 = arith.index_cast %58 : i32 to index
    %c0_50 = arith.constant 0 : index
    %c0_51 = arith.constant 0 : index
    %60 = vector.load %arg2[%c0_48, %c0_49, %59, %c0_50, %c0_51] : memref<1x4x9x9x128xbf16, #tpu.memory_space<vmem>>, vector<1x1x4x8x128xbf16>
    %61 = vector.shape_cast %60 : vector<1x1x4x8x128xbf16> to vector<4x8x128xbf16>
    %62 = vector.shape_cast %61 : vector<4x8x128xbf16> to vector<32x128xbf16>
    %c6 = arith.constant 6 : index
    %c0_52 = arith.constant 0 : index
    %c0_53 = arith.constant 0 : index
    %63 = vector.load %arg3[%c6, %c0_52, %c0_53] : memref<9x128x128xbf16, #tpu.memory_space<vmem>>, vector<1x128x128xbf16>
    %64 = vector.shape_cast %63 : vector<1x128x128xbf16> to vector<128x128xbf16>
    %cst_54 = arith.constant dense<0.000000e+00> : vector<32x128xf32>
    %65 = tpu.matmul %62, %64, %cst_54 {dimension_numbers = #tpu.dot_dimension_numbers<[1], [0], [0], [1], [0, 0, 1, 1], [], []>} : vector<32x128xbf16>, vector<128x128xbf16>, vector<32x128xf32> -> vector<32x128xf32>
    %66 = arith.addf %57, %65 : vector<32x128xf32>
    %c1_i32_55 = arith.constant 1 : i32
    %67 = arith.addi %1, %c1_i32_55 : i32
    %c0_56 = arith.constant 0 : index
    %c1_57 = arith.constant 1 : index
    %68 = arith.index_cast %67 : i32 to index
    %c0_58 = arith.constant 0 : index
    %c0_59 = arith.constant 0 : index
    %69 = vector.load %arg2[%c0_56, %c1_57, %68, %c0_58, %c0_59] : memref<1x4x9x9x128xbf16, #tpu.memory_space<vmem>>, vector<1x1x4x8x128xbf16>
    %70 = vector.shape_cast %69 : vector<1x1x4x8x128xbf16> to vector<4x8x128xbf16>
    %71 = vector.shape_cast %70 : vector<4x8x128xbf16> to vector<32x128xbf16>
    %c7 = arith.constant 7 : index
    %c0_60 = arith.constant 0 : index
    %c0_61 = arith.constant 0 : index
    %72 = vector.load %arg3[%c7, %c0_60, %c0_61] : memref<9x128x128xbf16, #tpu.memory_space<vmem>>, vector<1x128x128xbf16>
    %73 = vector.shape_cast %72 : vector<1x128x128xbf16> to vector<128x128xbf16>
    %cst_62 = arith.constant dense<0.000000e+00> : vector<32x128xf32>
    %74 = tpu.matmul %71, %73, %cst_62 {dimension_numbers = #tpu.dot_dimension_numbers<[1], [0], [0], [1], [0, 0, 1, 1], [], []>} : vector<32x128xbf16>, vector<128x128xbf16>, vector<32x128xf32> -> vector<32x128xf32>
    %75 = arith.addf %66, %74 : vector<32x128xf32>
    %c1_i32_63 = arith.constant 1 : i32
    %76 = arith.addi %1, %c1_i32_63 : i32
    %c0_64 = arith.constant 0 : index
    %c0_65 = arith.constant 0 : index
    %77 = arith.index_cast %76 : i32 to index
    %c1_66 = arith.constant 1 : index
    %c0_67 = arith.constant 0 : index
    %78 = vector.load %arg2[%c0_64, %c0_65, %77, %c1_66, %c0_67] : memref<1x4x9x9x128xbf16, #tpu.memory_space<vmem>>, vector<1x1x4x8x128xbf16>
    %79 = vector.shape_cast %78 : vector<1x1x4x8x128xbf16> to vector<4x8x128xbf16>
    %80 = vector.shape_cast %79 : vector<4x8x128xbf16> to vector<32x128xbf16>
    %c8 = arith.constant 8 : index
    %c0_68 = arith.constant 0 : index
    %c0_69 = arith.constant 0 : index
    %81 = vector.load %arg3[%c8, %c0_68, %c0_69] : memref<9x128x128xbf16, #tpu.memory_space<vmem>>, vector<1x128x128xbf16>
    %82 = vector.shape_cast %81 : vector<1x128x128xbf16> to vector<128x128xbf16>
    %cst_70 = arith.constant dense<0.000000e+00> : vector<32x128xf32>
    %83 = tpu.matmul %80, %82, %cst_70 {dimension_numbers = #tpu.dot_dimension_numbers<[1], [0], [0], [1], [0, 0, 1, 1], [], []>} : vector<32x128xbf16>, vector<128x128xbf16>, vector<32x128xf32> -> vector<32x128xf32>
    %84 = arith.addf %75, %83 : vector<32x128xf32>
    %85 = vector.shape_cast %84 : vector<32x128xf32> to vector<4x8x128xf32>
    %86 = arith.truncf %85 : vector<4x8x128xf32> to vector<4x8x128xbf16>
    %c1_i32_71 = arith.constant 1 : i32
    %87 = arith.addi %1, %c1_i32_71 : i32
    %c0_72 = arith.constant 0 : index
    %88 = arith.index_cast %87 : i32 to index
    %c1_73 = arith.constant 1 : index
    %c0_74 = arith.constant 0 : index
    %89 = vector.load %arg5[%c0_72, %88, %c1_73, %c0_74] : memref<1x10x10x128xbf16, #tpu.memory_space<vmem>>, vector<1x4x8x128xbf16>
    %90 = vector.shape_cast %89 : vector<1x4x8x128xbf16> to vector<4x8x128xbf16>
    %91 = vector.shape_cast %86 : vector<4x8x128xbf16> to vector<1x4x8x128xbf16>
    tpu.vector_store %arg5[%c0_72, %88, %c1_73, %c0_74], %91 {strides = array<i32>} : memref<1x10x10x128xbf16, #tpu.memory_space<vmem>>, vector<1x4x8x128xbf16>,
    %cst_75 = arith.constant 0.000000e+00 : f32
    %92 = vector.broadcast %cst_75 : f32 to vector<1x128xf32>
    %cst_76 = arith.constant 0.000000e+00 : f32
    %93 = vector.broadcast %cst_76 : f32 to vector<1x128xf32>
    %cst_77 = arith.constant dense<0.000000e+00> : vector<128xf32>
    %94 = vector.multi_reduction <add>, %84, %cst_77 [0] : vector<32x128xf32> to vector<128xf32>
    %95 = vector.shape_cast %94 : vector<128xf32> to vector<1x128xf32>
    %96 = arith.addf %92, %95 : vector<1x128xf32>
    %97 = arith.mulf %84, %84 : vector<32x128xf32>
    %cst_78 = arith.constant dense<0.000000e+00> : vector<128xf32>
    %98 = vector.multi_reduction <add>, %97, %cst_78 [0] : vector<32x128xf32> to vector<128xf32>
    %99 = vector.shape_cast %98 : vector<128xf32> to vector<1x128xf32>
    %100 = arith.addf %93, %99 : vector<1x128xf32>
    %101 = tpu.concatenate %96, %100 in 0 : vector<1x128xf32>, vector<1x128xf32> -> vector<2x128xf32>
    %c0_79 = arith.constant 0 : index
    %c0_80 = arith.constant 0 : index
    %c0_81 = arith.constant 0 : index
    %102 = vector.load %arg6[%c0_79, %c0_80, %c0_81] : memref<1x2x128xf32, #tpu.memory_space<vmem>>, vector<1x2x128xf32>
    %103 = vector.shape_cast %102 : vector<1x2x128xf32> to vector<2x128xf32>
    %104 = vector.shape_cast %101 : vector<2x128xf32> to vector<1x2x128xf32>
    tpu.vector_store %arg6[%c0_79, %c0_80, %c0_81], %104 {strides = array<i32>} : memref<1x2x128xf32, #tpu.memory_space<vmem>>, vector<1x2x128xf32>,
    %c0_i32_82 = arith.constant 0 : i32
    %105 = arith.addi %1, %c0_i32_82 : i32
    %c0_83 = arith.constant 0 : index
    %c3_84 = arith.constant 3 : index
    %106 = arith.index_cast %105 : i32 to index
    %c0_85 = arith.constant 0 : index
    %c0_86 = arith.constant 0 : index
    %107 = vector.load %arg2[%c0_83, %c3_84, %106, %c0_85, %c0_86] : memref<1x4x9x9x128xbf16, #tpu.memory_space<vmem>>, vector<1x1x4x8x128xbf16>
    %108 = vector.shape_cast %107 : vector<1x1x4x8x128xbf16> to vector<4x8x128xbf16>
    %109 = vector.shape_cast %108 : vector<4x8x128xbf16> to vector<32x128xbf16>
    %c0_87 = arith.constant 0 : index
    %c0_88 = arith.constant 0 : index
    %110 = vector.load %arg4[%c0_87, %c0_88] : memref<128x128xbf16, #tpu.memory_space<vmem>>, vector<128x128xbf16>
    %cst_89 = arith.constant dense<0.000000e+00> : vector<32x128xf32>
    %111 = tpu.matmul %109, %110, %cst_89 {dimension_numbers = #tpu.dot_dimension_numbers<[1], [0], [0], [1], [0, 0, 1, 1], [], []>} : vector<32x128xbf16>, vector<128x128xbf16>, vector<32x128xf32> -> vector<32x128xf32>
    %112 = vector.shape_cast %111 : vector<32x128xf32> to vector<4x8x128xf32>
    %113 = arith.truncf %112 : vector<4x8x128xf32> to vector<4x8x128xbf16>
    %c0_90 = arith.constant 0 : index
    %c0_91 = arith.constant 0 : index
    %c0_92 = arith.constant 0 : index
    %c0_93 = arith.constant 0 : index
    %114 = vector.load %arg7[%c0_90, %c0_91, %c0_92, %c0_93] : memref<1x4x8x128xbf16, #tpu.memory_space<vmem>>, vector<1x4x8x128xbf16>
    %115 = vector.shape_cast %114 : vector<1x4x8x128xbf16> to vector<4x8x128xbf16>
    %116 = vector.shape_cast %113 : vector<4x8x128xbf16> to vector<1x4x8x128xbf16>
    tpu.vector_store %arg7[%c0_90, %c0_91, %c0_92, %c0_93], %116 {strides = array<i32>} : memref<1x4x8x128xbf16, #tpu.memory_space<vmem>>, vector<1x4x8x128xbf16>,
    %cst_94 = arith.constant 0.000000e+00 : f32
    %117 = vector.broadcast %cst_94 : f32 to vector<1x128xf32>
    %cst_95 = arith.constant 0.000000e+00 : f32
    %118 = vector.broadcast %cst_95 : f32 to vector<1x128xf32>
    %cst_96 = arith.constant dense<0.000000e+00> : vector<128xf32>
    %119 = vector.multi_reduction <add>, %111, %cst_96 [0] : vector<32x128xf32> to vector<128xf32>
    %120 = vector.shape_cast %119 : vector<128xf32> to vector<1x128xf32>
    %121 = arith.addf %117, %120 : vector<1x128xf32>
    %122 = arith.mulf %111, %111 : vector<32x128xf32>
    %cst_97 = arith.constant dense<0.000000e+00> : vector<128xf32>
    %123 = vector.multi_reduction <add>, %122, %cst_97 [0] : vector<32x128xf32> to vector<128xf32>
    %124 = vector.shape_cast %123 : vector<128xf32> to vector<1x128xf32>
    %125 = arith.addf %118, %124 : vector<1x128xf32>
    %126 = tpu.concatenate %121, %125 in 0 : vector<1x128xf32>, vector<1x128xf32> -> vector<2x128xf32>
    %c0_98 = arith.constant 0 : index
    %c0_99 = arith.constant 0 : index
    %c0_100 = arith.constant 0 : index
    %127 = vector.load %arg8[%c0_98, %c0_99, %c0_100] : memref<1x2x128xf32, #tpu.memory_space<vmem>>, vector<1x2x128xf32>
    %128 = vector.shape_cast %127 : vector<1x2x128xf32> to vector<2x128xf32>
    %129 = vector.shape_cast %126 : vector<2x128xf32> to vector<1x2x128xf32>
    tpu.vector_store %arg8[%c0_98, %c0_99, %c0_100], %129 {strides = array<i32>} : memref<1x2x128xf32, #tpu.memory_space<vmem>>, vector<1x2x128xf32>,
    return
  }
  func.func @transform_0(%arg0: i32, %arg1: i32) -> (i32, i32, i32, i32, i32) {
    %c0_i32 = arith.constant 0 : i32
    %c0_i32_0 = arith.constant 0 : i32
    %c0_i32_1 = arith.constant 0 : i32
    %c0_i32_2 = arith.constant 0 : i32
    %c0_i32_3 = arith.constant 0 : i32
    return %arg0, %c0_i32, %c0_i32_0, %c0_i32_1, %c0_i32_2 : i32, i32, i32, i32, i32
  }
  func.func @transform_1(%arg0: i32, %arg1: i32) -> (i32, i32, i32) {
    %c0_i32 = arith.constant 0 : i32
    %c0_i32_0 = arith.constant 0 : i32
    %c0_i32_1 = arith.constant 0 : i32
    %c0_i32_2 = arith.constant 0 : i32
    return %c0_i32, %c0_i32_0, %c0_i32_1 : i32, i32, i32
  }
  func.func @transform_2(%arg0: i32, %arg1: i32) -> (i32, i32) {
    %c0_i32 = arith.constant 0 : i32
    %c0_i32_0 = arith.constant 0 : i32
    %c0_i32_1 = arith.constant 0 : i32
    return %c0_i32, %c0_i32_0 : i32, i32
  }
  func.func @transform_3(%arg0: i32, %arg1: i32) -> (i32, i32, i32, i32) {
    %c0_i32 = arith.constant 0 : i32
    %c0_i32_0 = arith.constant 0 : i32
    %c0_i32_1 = arith.constant 0 : i32
    %c0_i32_2 = arith.constant 0 : i32
    return %arg0, %c0_i32, %c0_i32_0, %c0_i32_1 : i32, i32, i32, i32
  }
  func.func @transform_4(%arg0: i32, %arg1: i32) -> (i32, i32, i32) {
    %c2_i32 = arith.constant 2 : i32
    %0 = arith.muli %arg0, %c2_i32 : i32
    %1 = arith.addi %0, %arg1 : i32
    %c0_i32 = arith.constant 0 : i32
    %c0_i32_0 = arith.constant 0 : i32
    %c0_i32_1 = arith.constant 0 : i32
    return %1, %c0_i32, %c0_i32_0 : i32, i32, i32
  }
  func.func @transform_5(%arg0: i32, %arg1: i32) -> (i32, i32, i32, i32) {
    %c0_i32 = arith.constant 0 : i32
    %c0_i32_0 = arith.constant 0 : i32
    %c0_i32_1 = arith.constant 0 : i32
    return %arg0, %arg1, %c0_i32, %c0_i32_0 : i32, i32, i32, i32
  }
  func.func @transform_6(%arg0: i32, %arg1: i32) -> (i32, i32, i32) {
    %c2_i32 = arith.constant 2 : i32
    %0 = arith.muli %arg0, %c2_i32 : i32
    %1 = arith.addi %0, %arg1 : i32
    %c0_i32 = arith.constant 0 : i32
    %c0_i32_0 = arith.constant 0 : i32
    %c0_i32_1 = arith.constant 0 : i32
    return %1, %c0_i32, %c0_i32_0 : i32, i32, i32
  }
}

module attributes {stable_mosaic.version = 11 : i64} {
  func.func @_conv2_kernel(%arg0: i32, %arg1: i32, %arg2: memref<1x10x10x128xbf16, #tpu.memory_space<vmem>>, %arg3: memref<9x128x128xbf16, #tpu.memory_space<vmem>>, %arg4: memref<1x128xf32, #tpu.memory_space<vmem>>, %arg5: memref<1x128xf32, #tpu.memory_space<vmem>>, %arg6: memref<1x4x8x128xbf16, #tpu.memory_space<vmem>>, %arg7: memref<1x2x128xf32, #tpu.memory_space<vmem>>, %arg8: memref<6x10x128xbf16, #tpu.memory_space<vmem>>) attributes {dimension_semantics = [#tpu.dimension_semantics<parallel>, #tpu.dimension_semantics<parallel>], iteration_bounds = array<i64: 2, 2>, scalar_prefetch = 0 : i64, scratch_operands = 1 : i64, tpu.core_type = #tpu.core_type<tc>, window_params = [{transform_indices = @transform_0, window_bounds = array<i64: 1, 10, 10, 128>}, {pipeline_mode = #tpu.pipeline_mode<synchronous>, transform_indices = @transform_1, window_bounds = array<i64: 9, 128, 128>}, {pipeline_mode = #tpu.pipeline_mode<synchronous>, transform_indices = @transform_2, window_bounds = array<i64: 1, 128>}, {pipeline_mode = #tpu.pipeline_mode<synchronous>, transform_indices = @transform_3, window_bounds = array<i64: 1, 128>}, {transform_indices = @transform_4, window_bounds = array<i64: 1, 4, 8, 128>}, {transform_indices = @transform_5, window_bounds = array<i64: 1, 2, 128>}]} {
    %c4_i32 = arith.constant 4 : i32
    %0 = arith.muli %arg1, %c4_i32 : i32
    %1 = tpu.assume_multiple %0, 4 : i32
    %c0 = arith.constant 0 : index
    %c0_0 = arith.constant 0 : index
    %2 = vector.load %arg4[%c0, %c0_0] : memref<1x128xf32, #tpu.memory_space<vmem>>, vector<1x128xf32>
    %c0_1 = arith.constant 0 : index
    %c0_2 = arith.constant 0 : index
    %3 = vector.load %arg5[%c0_1, %c0_2] : memref<1x128xf32, #tpu.memory_space<vmem>>, vector<1x128xf32>
    %c0_3 = arith.constant 0 : index
    %4 = arith.index_cast %1 : i32 to index
    %c0_4 = arith.constant 0 : index
    %c0_5 = arith.constant 0 : index
    %5 = vector.load %arg2[%c0_3, %4, %c0_4, %c0_5] : memref<1x10x10x128xbf16, #tpu.memory_space<vmem>>, vector<1x6x10x128xbf16>
    %6 = vector.shape_cast %5 : vector<1x6x10x128xbf16> to vector<6x10x128xbf16>
    %7 = arith.extf %6 : vector<6x10x128xbf16> to vector<6x10x128xf32>
    %8 = vector.shape_cast %2 : vector<1x128xf32> to vector<1x1x128xf32>
    %9 = vector.broadcast %8 : vector<1x1x128xf32> to vector<6x10x128xf32>
    %10 = arith.mulf %7, %9 : vector<6x10x128xf32>
    %11 = vector.shape_cast %3 : vector<1x128xf32> to vector<1x1x128xf32>
    %12 = vector.broadcast %11 : vector<1x1x128xf32> to vector<6x10x128xf32>
    %13 = arith.addf %10, %12 : vector<6x10x128xf32>
    %cst = arith.constant 0.000000e+00 : f32
    %14 = vector.broadcast %cst : f32 to vector<6x10x128xf32>
    %15 = arith.maximumf %13, %14 : vector<6x10x128xf32>
    %16 = tpu.iota {dimensions = array<i32: 0>} : vector<6x10x1xi32>
    %17 = vector.broadcast %1 : i32 to vector<6x10x1xi32>
    %18 = arith.addi %16, %17 : vector<6x10x1xi32>
    %19 = tpu.iota {dimensions = array<i32: 1>} : vector<6x10x1xi32>
    %c1_i32 = arith.constant 1 : i32
    %20 = vector.broadcast %c1_i32 : i32 to vector<6x10x1xi32>
    %21 = arith.cmpi sge, %18, %20 : vector<6x10x1xi32>
    %c8_i32 = arith.constant 8 : i32
    %22 = vector.broadcast %c8_i32 : i32 to vector<6x10x1xi32>
    %23 = arith.cmpi sle, %18, %22 : vector<6x10x1xi32>
    %24 = arith.andi %21, %23 : vector<6x10x1xi1>
    %c1_i32_6 = arith.constant 1 : i32
    %25 = vector.broadcast %c1_i32_6 : i32 to vector<6x10x1xi32>
    %26 = arith.cmpi sge, %19, %25 : vector<6x10x1xi32>
    %27 = arith.andi %24, %26 : vector<6x10x1xi1>
    %c8_i32_7 = arith.constant 8 : i32
    %28 = vector.broadcast %c8_i32_7 : i32 to vector<6x10x1xi32>
    %29 = arith.cmpi sle, %19, %28 : vector<6x10x1xi32>
    %30 = arith.andi %27, %29 : vector<6x10x1xi1>
    %cst_8 = arith.constant 0.000000e+00 : f32
    %31 = vector.shape_cast %30 : vector<6x10x1xi1> to vector<6x10x1xi1>
    %32 = vector.broadcast %31 : vector<6x10x1xi1> to vector<6x10x128xi1>
    %33 = vector.broadcast %cst_8 : f32 to vector<6x10x128xf32>
    %34 = arith.select %32, %15, %33 : vector<6x10x128xi1>, vector<6x10x128xf32>
    %35 = arith.truncf %34 : vector<6x10x128xf32> to vector<6x10x128xbf16>
    %c0_9 = arith.constant 0 : index
    %c0_10 = arith.constant 0 : index
    %c0_11 = arith.constant 0 : index
    %36 = vector.load %arg8[%c0_9, %c0_10, %c0_11] : memref<6x10x128xbf16, #tpu.memory_space<vmem>>, vector<6x10x128xbf16>
    tpu.vector_store %arg8[%c0_9, %c0_10, %c0_11], %35 {strides = array<i32>} : memref<6x10x128xbf16, #tpu.memory_space<vmem>>, vector<6x10x128xbf16>,
    %c0_12 = arith.constant 0 : index
    %c0_13 = arith.constant 0 : index
    %c0_14 = arith.constant 0 : index
    %37 = vector.load %arg8[%c0_12, %c0_13, %c0_14] : memref<6x10x128xbf16, #tpu.memory_space<vmem>>, vector<4x8x128xbf16>
    %38 = vector.shape_cast %37 : vector<4x8x128xbf16> to vector<32x128xbf16>
    %c0_15 = arith.constant 0 : index
    %c0_16 = arith.constant 0 : index
    %c0_17 = arith.constant 0 : index
    %39 = vector.load %arg3[%c0_15, %c0_16, %c0_17] : memref<9x128x128xbf16, #tpu.memory_space<vmem>>, vector<1x128x128xbf16>
    %40 = vector.shape_cast %39 : vector<1x128x128xbf16> to vector<128x128xbf16>
    %cst_18 = arith.constant dense<0.000000e+00> : vector<32x128xf32>
    %41 = tpu.matmul %38, %40, %cst_18 {dimension_numbers = #tpu.dot_dimension_numbers<[1], [0], [0], [1], [0, 0, 1, 1], [], []>} : vector<32x128xbf16>, vector<128x128xbf16>, vector<32x128xf32> -> vector<32x128xf32>
    %c0_19 = arith.constant 0 : index
    %c1 = arith.constant 1 : index
    %c0_20 = arith.constant 0 : index
    %42 = vector.load %arg8[%c0_19, %c1, %c0_20] : memref<6x10x128xbf16, #tpu.memory_space<vmem>>, vector<4x8x128xbf16>
    %43 = vector.shape_cast %42 : vector<4x8x128xbf16> to vector<32x128xbf16>
    %c1_21 = arith.constant 1 : index
    %c0_22 = arith.constant 0 : index
    %c0_23 = arith.constant 0 : index
    %44 = vector.load %arg3[%c1_21, %c0_22, %c0_23] : memref<9x128x128xbf16, #tpu.memory_space<vmem>>, vector<1x128x128xbf16>
    %45 = vector.shape_cast %44 : vector<1x128x128xbf16> to vector<128x128xbf16>
    %cst_24 = arith.constant dense<0.000000e+00> : vector<32x128xf32>
    %46 = tpu.matmul %43, %45, %cst_24 {dimension_numbers = #tpu.dot_dimension_numbers<[1], [0], [0], [1], [0, 0, 1, 1], [], []>} : vector<32x128xbf16>, vector<128x128xbf16>, vector<32x128xf32> -> vector<32x128xf32>
    %47 = arith.addf %41, %46 : vector<32x128xf32>
    %c0_25 = arith.constant 0 : index
    %c2 = arith.constant 2 : index
    %c0_26 = arith.constant 0 : index
    %48 = vector.load %arg8[%c0_25, %c2, %c0_26] : memref<6x10x128xbf16, #tpu.memory_space<vmem>>, vector<4x8x128xbf16>
    %49 = vector.shape_cast %48 : vector<4x8x128xbf16> to vector<32x128xbf16>
    %c2_27 = arith.constant 2 : index
    %c0_28 = arith.constant 0 : index
    %c0_29 = arith.constant 0 : index
    %50 = vector.load %arg3[%c2_27, %c0_28, %c0_29] : memref<9x128x128xbf16, #tpu.memory_space<vmem>>, vector<1x128x128xbf16>
    %51 = vector.shape_cast %50 : vector<1x128x128xbf16> to vector<128x128xbf16>
    %cst_30 = arith.constant dense<0.000000e+00> : vector<32x128xf32>
    %52 = tpu.matmul %49, %51, %cst_30 {dimension_numbers = #tpu.dot_dimension_numbers<[1], [0], [0], [1], [0, 0, 1, 1], [], []>} : vector<32x128xbf16>, vector<128x128xbf16>, vector<32x128xf32> -> vector<32x128xf32>
    %53 = arith.addf %47, %52 : vector<32x128xf32>
    %c1_31 = arith.constant 1 : index
    %c0_32 = arith.constant 0 : index
    %c0_33 = arith.constant 0 : index
    %54 = vector.load %arg8[%c1_31, %c0_32, %c0_33] : memref<6x10x128xbf16, #tpu.memory_space<vmem>>, vector<4x8x128xbf16>
    %55 = vector.shape_cast %54 : vector<4x8x128xbf16> to vector<32x128xbf16>
    %c3 = arith.constant 3 : index
    %c0_34 = arith.constant 0 : index
    %c0_35 = arith.constant 0 : index
    %56 = vector.load %arg3[%c3, %c0_34, %c0_35] : memref<9x128x128xbf16, #tpu.memory_space<vmem>>, vector<1x128x128xbf16>
    %57 = vector.shape_cast %56 : vector<1x128x128xbf16> to vector<128x128xbf16>
    %cst_36 = arith.constant dense<0.000000e+00> : vector<32x128xf32>
    %58 = tpu.matmul %55, %57, %cst_36 {dimension_numbers = #tpu.dot_dimension_numbers<[1], [0], [0], [1], [0, 0, 1, 1], [], []>} : vector<32x128xbf16>, vector<128x128xbf16>, vector<32x128xf32> -> vector<32x128xf32>
    %59 = arith.addf %53, %58 : vector<32x128xf32>
    %c1_37 = arith.constant 1 : index
    %c1_38 = arith.constant 1 : index
    %c0_39 = arith.constant 0 : index
    %60 = vector.load %arg8[%c1_37, %c1_38, %c0_39] : memref<6x10x128xbf16, #tpu.memory_space<vmem>>, vector<4x8x128xbf16>
    %61 = vector.shape_cast %60 : vector<4x8x128xbf16> to vector<32x128xbf16>
    %c4 = arith.constant 4 : index
    %c0_40 = arith.constant 0 : index
    %c0_41 = arith.constant 0 : index
    %62 = vector.load %arg3[%c4, %c0_40, %c0_41] : memref<9x128x128xbf16, #tpu.memory_space<vmem>>, vector<1x128x128xbf16>
    %63 = vector.shape_cast %62 : vector<1x128x128xbf16> to vector<128x128xbf16>
    %cst_42 = arith.constant dense<0.000000e+00> : vector<32x128xf32>
    %64 = tpu.matmul %61, %63, %cst_42 {dimension_numbers = #tpu.dot_dimension_numbers<[1], [0], [0], [1], [0, 0, 1, 1], [], []>} : vector<32x128xbf16>, vector<128x128xbf16>, vector<32x128xf32> -> vector<32x128xf32>
    %65 = arith.addf %59, %64 : vector<32x128xf32>
    %c1_43 = arith.constant 1 : index
    %c2_44 = arith.constant 2 : index
    %c0_45 = arith.constant 0 : index
    %66 = vector.load %arg8[%c1_43, %c2_44, %c0_45] : memref<6x10x128xbf16, #tpu.memory_space<vmem>>, vector<4x8x128xbf16>
    %67 = vector.shape_cast %66 : vector<4x8x128xbf16> to vector<32x128xbf16>
    %c5 = arith.constant 5 : index
    %c0_46 = arith.constant 0 : index
    %c0_47 = arith.constant 0 : index
    %68 = vector.load %arg3[%c5, %c0_46, %c0_47] : memref<9x128x128xbf16, #tpu.memory_space<vmem>>, vector<1x128x128xbf16>
    %69 = vector.shape_cast %68 : vector<1x128x128xbf16> to vector<128x128xbf16>
    %cst_48 = arith.constant dense<0.000000e+00> : vector<32x128xf32>
    %70 = tpu.matmul %67, %69, %cst_48 {dimension_numbers = #tpu.dot_dimension_numbers<[1], [0], [0], [1], [0, 0, 1, 1], [], []>} : vector<32x128xbf16>, vector<128x128xbf16>, vector<32x128xf32> -> vector<32x128xf32>
    %71 = arith.addf %65, %70 : vector<32x128xf32>
    %c2_49 = arith.constant 2 : index
    %c0_50 = arith.constant 0 : index
    %c0_51 = arith.constant 0 : index
    %72 = vector.load %arg8[%c2_49, %c0_50, %c0_51] : memref<6x10x128xbf16, #tpu.memory_space<vmem>>, vector<4x8x128xbf16>
    %73 = vector.shape_cast %72 : vector<4x8x128xbf16> to vector<32x128xbf16>
    %c6 = arith.constant 6 : index
    %c0_52 = arith.constant 0 : index
    %c0_53 = arith.constant 0 : index
    %74 = vector.load %arg3[%c6, %c0_52, %c0_53] : memref<9x128x128xbf16, #tpu.memory_space<vmem>>, vector<1x128x128xbf16>
    %75 = vector.shape_cast %74 : vector<1x128x128xbf16> to vector<128x128xbf16>
    %cst_54 = arith.constant dense<0.000000e+00> : vector<32x128xf32>
    %76 = tpu.matmul %73, %75, %cst_54 {dimension_numbers = #tpu.dot_dimension_numbers<[1], [0], [0], [1], [0, 0, 1, 1], [], []>} : vector<32x128xbf16>, vector<128x128xbf16>, vector<32x128xf32> -> vector<32x128xf32>
    %77 = arith.addf %71, %76 : vector<32x128xf32>
    %c2_55 = arith.constant 2 : index
    %c1_56 = arith.constant 1 : index
    %c0_57 = arith.constant 0 : index
    %78 = vector.load %arg8[%c2_55, %c1_56, %c0_57] : memref<6x10x128xbf16, #tpu.memory_space<vmem>>, vector<4x8x128xbf16>
    %79 = vector.shape_cast %78 : vector<4x8x128xbf16> to vector<32x128xbf16>
    %c7 = arith.constant 7 : index
    %c0_58 = arith.constant 0 : index
    %c0_59 = arith.constant 0 : index
    %80 = vector.load %arg3[%c7, %c0_58, %c0_59] : memref<9x128x128xbf16, #tpu.memory_space<vmem>>, vector<1x128x128xbf16>
    %81 = vector.shape_cast %80 : vector<1x128x128xbf16> to vector<128x128xbf16>
    %cst_60 = arith.constant dense<0.000000e+00> : vector<32x128xf32>
    %82 = tpu.matmul %79, %81, %cst_60 {dimension_numbers = #tpu.dot_dimension_numbers<[1], [0], [0], [1], [0, 0, 1, 1], [], []>} : vector<32x128xbf16>, vector<128x128xbf16>, vector<32x128xf32> -> vector<32x128xf32>
    %83 = arith.addf %77, %82 : vector<32x128xf32>
    %c2_61 = arith.constant 2 : index
    %c2_62 = arith.constant 2 : index
    %c0_63 = arith.constant 0 : index
    %84 = vector.load %arg8[%c2_61, %c2_62, %c0_63] : memref<6x10x128xbf16, #tpu.memory_space<vmem>>, vector<4x8x128xbf16>
    %85 = vector.shape_cast %84 : vector<4x8x128xbf16> to vector<32x128xbf16>
    %c8 = arith.constant 8 : index
    %c0_64 = arith.constant 0 : index
    %c0_65 = arith.constant 0 : index
    %86 = vector.load %arg3[%c8, %c0_64, %c0_65] : memref<9x128x128xbf16, #tpu.memory_space<vmem>>, vector<1x128x128xbf16>
    %87 = vector.shape_cast %86 : vector<1x128x128xbf16> to vector<128x128xbf16>
    %cst_66 = arith.constant dense<0.000000e+00> : vector<32x128xf32>
    %88 = tpu.matmul %85, %87, %cst_66 {dimension_numbers = #tpu.dot_dimension_numbers<[1], [0], [0], [1], [0, 0, 1, 1], [], []>} : vector<32x128xbf16>, vector<128x128xbf16>, vector<32x128xf32> -> vector<32x128xf32>
    %89 = arith.addf %83, %88 : vector<32x128xf32>
    %90 = vector.shape_cast %89 : vector<32x128xf32> to vector<4x8x128xf32>
    %91 = arith.truncf %90 : vector<4x8x128xf32> to vector<4x8x128xbf16>
    %c0_67 = arith.constant 0 : index
    %c0_68 = arith.constant 0 : index
    %c0_69 = arith.constant 0 : index
    %c0_70 = arith.constant 0 : index
    %92 = vector.load %arg6[%c0_67, %c0_68, %c0_69, %c0_70] : memref<1x4x8x128xbf16, #tpu.memory_space<vmem>>, vector<1x4x8x128xbf16>
    %93 = vector.shape_cast %92 : vector<1x4x8x128xbf16> to vector<4x8x128xbf16>
    %94 = vector.shape_cast %91 : vector<4x8x128xbf16> to vector<1x4x8x128xbf16>
    tpu.vector_store %arg6[%c0_67, %c0_68, %c0_69, %c0_70], %94 {strides = array<i32>} : memref<1x4x8x128xbf16, #tpu.memory_space<vmem>>, vector<1x4x8x128xbf16>,
    %cst_71 = arith.constant 0.000000e+00 : f32
    %95 = vector.broadcast %cst_71 : f32 to vector<1x128xf32>
    %cst_72 = arith.constant 0.000000e+00 : f32
    %96 = vector.broadcast %cst_72 : f32 to vector<1x128xf32>
    %cst_73 = arith.constant dense<0.000000e+00> : vector<128xf32>
    %97 = vector.multi_reduction <add>, %89, %cst_73 [0] : vector<32x128xf32> to vector<128xf32>
    %98 = vector.shape_cast %97 : vector<128xf32> to vector<1x128xf32>
    %99 = arith.addf %95, %98 : vector<1x128xf32>
    %100 = arith.mulf %89, %89 : vector<32x128xf32>
    %cst_74 = arith.constant dense<0.000000e+00> : vector<128xf32>
    %101 = vector.multi_reduction <add>, %100, %cst_74 [0] : vector<32x128xf32> to vector<128xf32>
    %102 = vector.shape_cast %101 : vector<128xf32> to vector<1x128xf32>
    %103 = arith.addf %96, %102 : vector<1x128xf32>
    %104 = tpu.concatenate %99, %103 in 0 : vector<1x128xf32>, vector<1x128xf32> -> vector<2x128xf32>
    %c0_75 = arith.constant 0 : index
    %c0_76 = arith.constant 0 : index
    %c0_77 = arith.constant 0 : index
    %105 = vector.load %arg7[%c0_75, %c0_76, %c0_77] : memref<1x2x128xf32, #tpu.memory_space<vmem>>, vector<1x2x128xf32>
    %106 = vector.shape_cast %105 : vector<1x2x128xf32> to vector<2x128xf32>
    %107 = vector.shape_cast %104 : vector<2x128xf32> to vector<1x2x128xf32>
    tpu.vector_store %arg7[%c0_75, %c0_76, %c0_77], %107 {strides = array<i32>} : memref<1x2x128xf32, #tpu.memory_space<vmem>>, vector<1x2x128xf32>,
    return
  }
  func.func @transform_0(%arg0: i32, %arg1: i32) -> (i32, i32, i32, i32) {
    %c0_i32 = arith.constant 0 : i32
    %c0_i32_0 = arith.constant 0 : i32
    %c0_i32_1 = arith.constant 0 : i32
    %c0_i32_2 = arith.constant 0 : i32
    return %arg0, %c0_i32, %c0_i32_0, %c0_i32_1 : i32, i32, i32, i32
  }
  func.func @transform_1(%arg0: i32, %arg1: i32) -> (i32, i32, i32) {
    %c0_i32 = arith.constant 0 : i32
    %c0_i32_0 = arith.constant 0 : i32
    %c0_i32_1 = arith.constant 0 : i32
    %c0_i32_2 = arith.constant 0 : i32
    return %c0_i32, %c0_i32_0, %c0_i32_1 : i32, i32, i32
  }
  func.func @transform_2(%arg0: i32, %arg1: i32) -> (i32, i32) {
    %c0_i32 = arith.constant 0 : i32
    %c0_i32_0 = arith.constant 0 : i32
    %c0_i32_1 = arith.constant 0 : i32
    return %c0_i32, %c0_i32_0 : i32, i32
  }
  func.func @transform_3(%arg0: i32, %arg1: i32) -> (i32, i32) {
    %c0_i32 = arith.constant 0 : i32
    %c0_i32_0 = arith.constant 0 : i32
    %c0_i32_1 = arith.constant 0 : i32
    return %c0_i32, %c0_i32_0 : i32, i32
  }
  func.func @transform_4(%arg0: i32, %arg1: i32) -> (i32, i32, i32, i32) {
    %c0_i32 = arith.constant 0 : i32
    %c0_i32_0 = arith.constant 0 : i32
    %c0_i32_1 = arith.constant 0 : i32
    return %arg0, %arg1, %c0_i32, %c0_i32_0 : i32, i32, i32, i32
  }
  func.func @transform_5(%arg0: i32, %arg1: i32) -> (i32, i32, i32) {
    %c2_i32 = arith.constant 2 : i32
    %0 = arith.muli %arg0, %c2_i32 : i32
    %1 = arith.addi %0, %arg1 : i32
    %c0_i32 = arith.constant 0 : i32
    %c0_i32_0 = arith.constant 0 : i32
    %c0_i32_1 = arith.constant 0 : i32
    return %1, %c0_i32, %c0_i32_0 : i32, i32, i32
  }
}

module attributes {stable_mosaic.version = 11 : i64} {
  func.func @_finalize_kernel(%arg0: i32, %arg1: i32, %arg2: memref<1x4x8x128xbf16, #tpu.memory_space<vmem>>, %arg3: memref<1x128xf32, #tpu.memory_space<vmem>>, %arg4: memref<1x128xf32, #tpu.memory_space<vmem>>, %arg5: memref<1x4x8x128xbf16, #tpu.memory_space<vmem>>, %arg6: memref<1x128xf32, #tpu.memory_space<vmem>>, %arg7: memref<1x128xf32, #tpu.memory_space<vmem>>, %arg8: memref<1x4x8x128xf32, #tpu.memory_space<vmem>>) attributes {dimension_semantics = [#tpu.dimension_semantics<parallel>, #tpu.dimension_semantics<parallel>], iteration_bounds = array<i64: 2, 2>, scalar_prefetch = 0 : i64, scratch_operands = 0 : i64, tpu.core_type = #tpu.core_type<tc>, window_params = [{transform_indices = @transform_0, window_bounds = array<i64: 1, 4, 8, 128>}, {pipeline_mode = #tpu.pipeline_mode<synchronous>, transform_indices = @transform_1, window_bounds = array<i64: 1, 128>}, {pipeline_mode = #tpu.pipeline_mode<synchronous>, transform_indices = @transform_2, window_bounds = array<i64: 1, 128>}, {transform_indices = @transform_3, window_bounds = array<i64: 1, 4, 8, 128>}, {pipeline_mode = #tpu.pipeline_mode<synchronous>, transform_indices = @transform_4, window_bounds = array<i64: 1, 128>}, {pipeline_mode = #tpu.pipeline_mode<synchronous>, transform_indices = @transform_5, window_bounds = array<i64: 1, 128>}, {transform_indices = @transform_6, window_bounds = array<i64: 1, 4, 8, 128>}]} {
    %c0 = arith.constant 0 : index
    %c0_0 = arith.constant 0 : index
    %c0_1 = arith.constant 0 : index
    %c0_2 = arith.constant 0 : index
    %0 = vector.load %arg5[%c0, %c0_0, %c0_1, %c0_2] : memref<1x4x8x128xbf16, #tpu.memory_space<vmem>>, vector<1x4x8x128xbf16>
    %1 = vector.shape_cast %0 : vector<1x4x8x128xbf16> to vector<4x8x128xbf16>
    %2 = arith.extf %1 : vector<4x8x128xbf16> to vector<4x8x128xf32>
    %c0_3 = arith.constant 0 : index
    %c0_4 = arith.constant 0 : index
    %3 = vector.load %arg6[%c0_3, %c0_4] : memref<1x128xf32, #tpu.memory_space<vmem>>, vector<1x128xf32>
    %4 = vector.shape_cast %3 : vector<1x128xf32> to vector<1x1x128xf32>
    %5 = vector.broadcast %4 : vector<1x1x128xf32> to vector<4x8x128xf32>
    %6 = arith.mulf %2, %5 : vector<4x8x128xf32>
    %c0_5 = arith.constant 0 : index
    %c0_6 = arith.constant 0 : index
    %7 = vector.load %arg7[%c0_5, %c0_6] : memref<1x128xf32, #tpu.memory_space<vmem>>, vector<1x128xf32>
    %8 = vector.shape_cast %7 : vector<1x128xf32> to vector<1x1x128xf32>
    %9 = vector.broadcast %8 : vector<1x1x128xf32> to vector<4x8x128xf32>
    %10 = arith.addf %6, %9 : vector<4x8x128xf32>
    %c0_7 = arith.constant 0 : index
    %c0_8 = arith.constant 0 : index
    %c0_9 = arith.constant 0 : index
    %c0_10 = arith.constant 0 : index
    %11 = vector.load %arg2[%c0_7, %c0_8, %c0_9, %c0_10] : memref<1x4x8x128xbf16, #tpu.memory_space<vmem>>, vector<1x4x8x128xbf16>
    %12 = vector.shape_cast %11 : vector<1x4x8x128xbf16> to vector<4x8x128xbf16>
    %13 = arith.extf %12 : vector<4x8x128xbf16> to vector<4x8x128xf32>
    %c0_11 = arith.constant 0 : index
    %c0_12 = arith.constant 0 : index
    %14 = vector.load %arg3[%c0_11, %c0_12] : memref<1x128xf32, #tpu.memory_space<vmem>>, vector<1x128xf32>
    %15 = vector.shape_cast %14 : vector<1x128xf32> to vector<1x1x128xf32>
    %16 = vector.broadcast %15 : vector<1x1x128xf32> to vector<4x8x128xf32>
    %17 = arith.mulf %13, %16 : vector<4x8x128xf32>
    %c0_13 = arith.constant 0 : index
    %c0_14 = arith.constant 0 : index
    %18 = vector.load %arg4[%c0_13, %c0_14] : memref<1x128xf32, #tpu.memory_space<vmem>>, vector<1x128xf32>
    %19 = vector.shape_cast %18 : vector<1x128xf32> to vector<1x1x128xf32>
    %20 = vector.broadcast %19 : vector<1x1x128xf32> to vector<4x8x128xf32>
    %21 = arith.addf %17, %20 : vector<4x8x128xf32>
    %22 = arith.addf %21, %10 : vector<4x8x128xf32>
    %cst = arith.constant 0.000000e+00 : f32
    %23 = vector.broadcast %cst : f32 to vector<4x8x128xf32>
    %24 = arith.maximumf %22, %23 : vector<4x8x128xf32>
    %c0_15 = arith.constant 0 : index
    %c0_16 = arith.constant 0 : index
    %c0_17 = arith.constant 0 : index
    %c0_18 = arith.constant 0 : index
    %25 = vector.load %arg8[%c0_15, %c0_16, %c0_17, %c0_18] : memref<1x4x8x128xf32, #tpu.memory_space<vmem>>, vector<1x4x8x128xf32>
    %26 = vector.shape_cast %25 : vector<1x4x8x128xf32> to vector<4x8x128xf32>
    %27 = vector.shape_cast %24 : vector<4x8x128xf32> to vector<1x4x8x128xf32>
    tpu.vector_store %arg8[%c0_15, %c0_16, %c0_17, %c0_18], %27 {strides = array<i32>} : memref<1x4x8x128xf32, #tpu.memory_space<vmem>>, vector<1x4x8x128xf32>,
    return
  }
  func.func @transform_0(%arg0: i32, %arg1: i32) -> (i32, i32, i32, i32) {
    %c0_i32 = arith.constant 0 : i32
    %c0_i32_0 = arith.constant 0 : i32
    %c0_i32_1 = arith.constant 0 : i32
    return %arg0, %arg1, %c0_i32, %c0_i32_0 : i32, i32, i32, i32
  }
  func.func @transform_1(%arg0: i32, %arg1: i32) -> (i32, i32) {
    %c0_i32 = arith.constant 0 : i32
    %c0_i32_0 = arith.constant 0 : i32
    %c0_i32_1 = arith.constant 0 : i32
    return %c0_i32, %c0_i32_0 : i32, i32
  }
  func.func @transform_2(%arg0: i32, %arg1: i32) -> (i32, i32) {
    %c0_i32 = arith.constant 0 : i32
    %c0_i32_0 = arith.constant 0 : i32
    %c0_i32_1 = arith.constant 0 : i32
    return %c0_i32, %c0_i32_0 : i32, i32
  }
  func.func @transform_3(%arg0: i32, %arg1: i32) -> (i32, i32, i32, i32) {
    %c0_i32 = arith.constant 0 : i32
    %c0_i32_0 = arith.constant 0 : i32
    %c0_i32_1 = arith.constant 0 : i32
    return %arg0, %arg1, %c0_i32, %c0_i32_0 : i32, i32, i32, i32
  }
  func.func @transform_4(%arg0: i32, %arg1: i32) -> (i32, i32) {
    %c0_i32 = arith.constant 0 : i32
    %c0_i32_0 = arith.constant 0 : i32
    %c0_i32_1 = arith.constant 0 : i32
    return %c0_i32, %c0_i32_0 : i32, i32
  }
  func.func @transform_5(%arg0: i32, %arg1: i32) -> (i32, i32) {
    %c0_i32 = arith.constant 0 : i32
    %c0_i32_0 = arith.constant 0 : i32
    %c0_i32_1 = arith.constant 0 : i32
    return %c0_i32, %c0_i32_0 : i32, i32
  }
  func.func @transform_6(%arg0: i32, %arg1: i32) -> (i32, i32, i32, i32) {
    %c0_i32 = arith.constant 0 : i32
    %c0_i32_0 = arith.constant 0 : i32
    %c0_i32_1 = arith.constant 0 : i32
    return %arg0, %arg1, %c0_i32, %c0_i32_0 : i32, i32, i32, i32
  }
}

</mosaic_0001>

<llo_original>
// kernel: basic_block_forward.5
$region0: #{basic_block_forward.5}
  #allocation0 [shape = 'u32[]', space=smem, size = 0x4, offset = 0x4, fixed_abs, tag = 'smem constant byte address 0x4 - core index']
  #allocation1 [shape = 'u32[72,128]{1,0:T(1,128)}', space=vmem, size = 0x9000, scoped, tag = 'internal scratch']
  %s0 = inlined_call_operand.vmem [shape: bf16[2,8,8,128], index: 0, kind: input, shape index: {}]
  %s1 = inlined_call_operand.vmem [shape: f32[1,128], index: 1, kind: input, shape index: {}]
  %s2 = inlined_call_operand.vmem [shape: f32[1,128], index: 2, kind: input, shape index: {}]
  %s3 = inlined_call_operand.vmem [shape: bf16[2,8,8,128], index: 3, kind: input, shape index: {}]
  %s4 = inlined_call_operand.vmem [shape: f32[1,128], index: 4, kind: input, shape index: {}]
  %s5 = inlined_call_operand.vmem [shape: f32[1,128], index: 5, kind: input, shape index: {}]
  %s6 = inlined_call_operand.vmem [shape: f32[2,8,8,128], index: 6, kind: output, shape index: {}]
  %s7 = sld [smem:[#allocation0]]
  $region57: #{basic_block_forward.5} parent=0
    _
  %s9 = ssub.s32 1, %s7
  %s10 = scalar_select 0, %s9, %s7
  loop: start=0, step=1, limit=6
  $region2: #{basic_block_forward.5} parent=0 // loop_pre_header
    _
  $region3: #{basic_block_forward.5} parent=0 // loop_header
    %s12 = sphi 0, %s16
    %p13 = scmp.ge.s32.totalorder %s12, 6
    %s19 = sphi 0, %s31
    %s20 = sphi 0, %s27
    %s21 = sphi 0, %s19
    %s22 = sphi 0, %s20
    %s23 = sphi 0, %s21
    %s24 = sphi 0, %s22
    %s36 = sphi 0, %s38
    %s39 = sphi 0, %s36
    %s40 = sphi 0, %s39
    %s56 = sphi 0, %s40
    %s60 = sphi 0, %s60
    %s62 = sphi 0, %s60
    %s63 = sphi 0, %s62
    %s77 = sphi 0, %s63
    %s81 = sphi 0, %s81
    %s83 = sphi 0, %s81
    %s84 = sphi 0, %s83
    %s98 = sphi 0, %s84
    %s106 = sphi 0, %s108
    %s109 = sphi 0, %s106
    %s110 = sphi 0, %s109
    %s126 = sphi 0, %s110
    %s130 = sphi 0, %s130
    %s132 = sphi 0, %s130
    %s133 = sphi 0, %s132
    %s147 = sphi 0, %s133
    %s151 = sphi 0, %s151
    %s153 = sphi 0, %s151
    %s154 = sphi 0, %s153
    %s168 = sphi 0, %s154
    %s176 = sphi 0, %s178
    %s179 = sphi 0, %s176
    %s180 = sphi 0, %s179
    %s196 = sphi 0, %s180
  $region4: #{basic_block_forward.5} parent=0 // loop_header_branch
    %15 = sbr.rel (%p13) target = $region8
  $region5: #{basic_block_forward.5} parent=0 // loop_body
    %s17 = ssub.s32 %s12, 1
    %s18 = ssub.s32 %s12, 2
    %s25 = sadd.s32 1, %s20
    %p26 = scmp.ge.s32.totalorder %s25, 2
    %s27 = scalar_select %p26, 0, %s25
    %s28 = sadd.s32 1, %s19
    %s29 = scalar_select %p26, %s28, %s19
    %p30 = scmp.ge.s32.totalorder %s29, 2
    %s31 = scalar_select %p30, 0, %s29
    %s32 = ssub.s32 %s19, %s31
    %s33 = ssub.s32 %s20, %s27
    %s34 = sor.u32 %s32, %s33
    %p35 = scmp.eq.s32.totalorder %s34, 0
    %s37 = sadd.s32 %s36, 1
    %s38 = scalar_select %p35, %s36, %s37
    %p41 = pneg %p35
    %p42 = scmp.eq.s32.totalorder %s12, 3
    %p43 = por %p41, %p42
    %p44 = scmp.ne.s32.totalorder %s36, %s39
    %p45 = scmp.eq.s32.totalorder %s12, 0
    %p46 = por %p44, %p45
    %p47 = scmp.ne.s32.totalorder %s36, %s39
    %p48 = scmp.eq.s32.totalorder %s17, 3
    %p49 = por %p47, %p48
    %p50 = scmp.ne.s32.totalorder %s39, %s40
    %p51 = scmp.eq.s32.totalorder %s17, 0
    %p52 = por %p50, %p51
    %p53 = scmp.ne.s32.totalorder %s39, %s40
    %p54 = scmp.eq.s32.totalorder %s18, 3
    %p55 = por %p53, %p54
    %p57 = scmp.ne.s32.totalorder %s40, %s56
    %p58 = scmp.eq.s32.totalorder %s18, 0
    %p59 = por %p57, %p58
    %s61 = sadd.s32 %s60, 1
    %p64 = scmp.eq.s32.totalorder %s12, 3
    %p65 = scmp.ne.s32.totalorder %s60, %s62
    %p66 = scmp.eq.s32.totalorder %s12, 0
    %p67 = por %p65, %p66
    %p68 = scmp.ne.s32.totalorder %s60, %s62
    %p69 = scmp.eq.s32.totalorder %s17, 3
    %p70 = por %p68, %p69
    %p71 = scmp.ne.s32.totalorder %s62, %s63
    %p72 = scmp.eq.s32.totalorder %s17, 0
    %p73 = por %p71, %p72
    %p74 = scmp.ne.s32.totalorder %s62, %s63
    %p75 = scmp.eq.s32.totalorder %s18, 3
    %p76 = por %p74, %p75
    %p78 = scmp.ne.s32.totalorder %s63, %s77
    %p79 = scmp.eq.s32.totalorder %s18, 0
    %p80 = por %p78, %p79
    %s82 = sadd.s32 %s81, 1
    %p85 = scmp.eq.s32.totalorder %s12, 3
    %p86 = scmp.ne.s32.totalorder %s81, %s83
    %p87 = scmp.eq.s32.totalorder %s12, 0
    %p88 = por %p86, %p87
    %p89 = scmp.ne.s32.totalorder %s81, %s83
    %p90 = scmp.eq.s32.totalorder %s17, 3
    %p91 = por %p89, %p90
    %p92 = scmp.ne.s32.totalorder %s83, %s84
    %p93 = scmp.eq.s32.totalorder %s17, 0
    %p94 = por %p92, %p93
    %p95 = scmp.ne.s32.totalorder %s83, %s84
    %p96 = scmp.eq.s32.totalorder %s18, 3
    %p97 = por %p95, %p96
    %p99 = scmp.ne.s32.totalorder %s84, %s98
    %p100 = scmp.eq.s32.totalorder %s18, 0
    %p101 = por %p99, %p100
    %s102 = ssub.s32 %s19, %s31
    %s103 = ssub.s32 %s20, %s27
    %s104 = sor.u32 %s102, %s103
    %p105 = scmp.eq.s32.totalorder %s104, 0
    %s107 = sadd.s32 %s106, 1
    %s108 = scalar_select %p105, %s106, %s107
    %p111 = pneg %p105
    %p112 = scmp.eq.s32.totalorder %s12, 3
    %p113 = por %p111, %p112
    %p114 = scmp.ne.s32.totalorder %s106, %s109
    %p115 = scmp.eq.s32.totalorder %s12, 0
    %p116 = por %p114, %p115
    %p117 = scmp.ne.s32.totalorder %s106, %s109
    %p118 = scmp.eq.s32.totalorder %s17, 3
    %p119 = por %p117, %p118
    %p120 = scmp.ne.s32.totalorder %s109, %s110
    %p121 = scmp.eq.s32.totalorder %s17, 0
    %p122 = por %p120, %p121
    %p123 = scmp.ne.s32.totalorder %s109, %s110
    %p124 = scmp.eq.s32.totalorder %s18, 3
    %p125 = por %p123, %p124
    %p127 = scmp.ne.s32.totalorder %s110, %s126
    %p128 = scmp.eq.s32.totalorder %s18, 0
    %p129 = por %p127, %p128
    %s131 = sadd.s32 %s130, 1
    %p134 = scmp.eq.s32.totalorder %s12, 3
    %p135 = scmp.ne.s32.totalorder %s130, %s132
    %p136 = scmp.eq.s32.totalorder %s12, 0
    %p137 = por %p135, %p136
    %p138 = scmp.ne.s32.totalorder %s130, %s132
    %p139 = scmp.eq.s32.totalorder %s17, 3
    %p140 = por %p138, %p139
    %p141 = scmp.ne.s32.totalorder %s132, %s133
    %p142 = scmp.eq.s32.totalorder %s17, 0
    %p143 = por %p141, %p142
    %p144 = scmp.ne.s32.totalorder %s132, %s133
    %p145 = scmp.eq.s32.totalorder %s18, 3
    %p146 = por %p144, %p145
    %p148 = scmp.ne.s32.totalorder %s133, %s147
    %p149 = scmp.eq.s32.totalorder %s18, 0
    %p150 = por %p148, %p149
    %s152 = sadd.s32 %s151, 1
    %p155 = scmp.eq.s32.totalorder %s12, 3
    %p156 = scmp.ne.s32.totalorder %s151, %s153
    %p157 = scmp.eq.s32.totalorder %s12, 0
    %p158 = por %p156, %p157
    %p159 = scmp.ne.s32.totalorder %s151, %s153
    %p160 = scmp.eq.s32.totalorder %s17, 3
    %p161 = por %p159, %p160
    %p162 = scmp.ne.s32.totalorder %s153, %s154
    %p163 = scmp.eq.s32.totalorder %s17, 0
    %p164 = por %p162, %p163
    %p165 = scmp.ne.s32.totalorder %s153, %s154
    %p166 = scmp.eq.s32.totalorder %s18, 3
    %p167 = por %p165, %p166
    %p169 = scmp.ne.s32.totalorder %s154, %s168
    %p170 = scmp.eq.s32.totalorder %s18, 0
    %p171 = por %p169, %p170
    %s172 = ssub.s32 %s19, %s31
    %s173 = ssub.s32 %s20, %s27
    %s174 = sor.u32 %s172, %s173
    %p175 = scmp.eq.s32.totalorder %s174, 0
    %s177 = sadd.s32 %s176, 1
    %s178 = scalar_select %p175, %s176, %s177
    %p181 = pneg %p175
    %p182 = scmp.eq.s32.totalorder %s12, 3
    %p183 = por %p181, %p182
    %p184 = scmp.ne.s32.totalorder %s176, %s179
    %p185 = scmp.eq.s32.totalorder %s12, 0
    %p186 = por %p184, %p185
    %p187 = scmp.ne.s32.totalorder %s176, %s179
    %p188 = scmp.eq.s32.totalorder %s17, 3
    %p189 = por %p187, %p188
    %p190 = scmp.ne.s32.totalorder %s179, %s180
    %p191 = scmp.eq.s32.totalorder %s17, 0
    %p192 = por %p190, %p191
    %p193 = scmp.ne.s32.totalorder %s179, %s180
    %p194 = scmp.eq.s32.totalorder %s18, 3
    %p195 = por %p193, %p194
    %p197 = scmp.ne.s32.totalorder %s180, %s196
    %p198 = scmp.eq.s32.totalorder %s18, 0
    %p199 = por %p197, %p198
    %p200 = scmp.le.s32.totalorder 1, %s12
    %p201 = scmp.lt.s32.totalorder %s12, 5
    %p202 = pnand %p200, %p201
    %p203 = pneg %p202
    // Predicated region
    $region9: #{basic_block_forward.5} parent=5 // pred_check
      _
    $region10: #{basic_block_forward.5} parent=5 // pred_check_branch
      %205 = sbr.rel (%p202) target = $region12
    $region11: #{basic_block_forward.5} parent=5 // pred_region
      %s206 = ssub.s32 %s12, 1
      // Predicated region
      $region13: #{basic_block_forward.5} parent=11 // pred_check
        %p207 = pneg %p73
      $region14: #{basic_block_forward.5} parent=11 // pred_check_branch
        %209 = sbr.rel (%p207) target = $region16
      $region15: #{basic_block_forward.5} parent=11 // pred_region
        _
      $region16: #{basic_block_forward.5} parent=11 // pred_fallthru
        _
      // Predicated region
      $region17: #{basic_block_forward.5} parent=11 // pred_check
        %p210 = pneg %p94
      $region18: #{basic_block_forward.5} parent=11 // pred_check_branch
        %212 = sbr.rel (%p210) target = $region20
      $region19: #{basic_block_forward.5} parent=11 // pred_region
        _
      $region20: #{basic_block_forward.5} parent=11 // pred_fallthru
        _
      // Predicated region
      $region21: #{basic_block_forward.5} parent=11 // pred_check
        %p213 = pneg %p143
      $region22: #{basic_block_forward.5} parent=11 // pred_check_branch
        %215 = sbr.rel (%p213) target = $region24
      $region23: #{basic_block_forward.5} parent=11 // pred_region
        _
      $region24: #{basic_block_forward.5} parent=11 // pred_fallthru
        _
      // Predicated region
      $region25: #{basic_block_forward.5} parent=11 // pred_check
        %p216 = pneg %p164
      $region26: #{basic_block_forward.5} parent=11 // pred_check_branch
        %218 = sbr.rel (%p216) target = $region28
      $region27: #{basic_block_forward.5} parent=11 // pred_region
        _
      $region28: #{basic_block_forward.5} parent=11 // pred_fallthru
        _
    $region12: #{basic_block_forward.5} parent=5 // pred_fallthru
      _
    %p219 = scmp.lt.s32.totalorder %s12, 4
    // Predicated region
    $region29: #{basic_block_forward.5} parent=5 // pred_check
      %p220 = pneg %p219
    $region30: #{basic_block_forward.5} parent=5 // pred_check_branch
      %222 = sbr.rel (%p220) target = $region32
    $region31: #{basic_block_forward.5} parent=5 // pred_region
      // Predicated region
      $region33: #{basic_block_forward.5} parent=31 // pred_check
        %p223 = pneg %p46
      $region34: #{basic_block_forward.5} parent=31 // pred_check_branch
        %225 = sbr.rel (%p223) target = $region36
      $region35: #{basic_block_forward.5} parent=31 // pred_region
        %s226 = smul.u32 4, %s20
        %p227 = scmp.lt.s32.totalorder %s19, 1
        %s228 = scalar_select %p227, %s19, 1
        %p229 = scmp.lt.s32.totalorder %s226, 7
        %s230 = scalar_select %p229, %s226, 7
        %s231 = smul.addr %s228, 8
        %s232 = sadd.s32 %s230, %s231
        %s233 = smul.addr %s232, 4
        %s234 = scalar_lea.vmem %s0, %s233
        %s235 = smul.u32 4, %s20
      $region36: #{basic_block_forward.5} parent=31 // pred_fallthru
        _
      // Predicated region
      $region37: #{basic_block_forward.5} parent=31 // pred_check
        %p236 = pneg %p116
      $region38: #{basic_block_forward.5} parent=31 // pred_check_branch
        %238 = sbr.rel (%p236) target = $region40
      $region39: #{basic_block_forward.5} parent=31 // pred_region
        %s239 = smul.u32 4, %s20
        %p240 = scmp.lt.s32.totalorder %s19, 1
        %s241 = scalar_select %p240, %s19, 1
        %p242 = scmp.lt.s32.totalorder %s239, 7
        %s243 = scalar_select %p242, %s239, 7
        %s244 = smul.addr %s241, 8
        %s245 = sadd.s32 %s243, %s244
        %s246 = smul.addr %s245, 4
        %s247 = scalar_lea.vmem %s3, %s246
        %s248 = smul.u32 4, %s20
      $region40: #{basic_block_forward.5} parent=31 // pred_fallthru
        _
    $region32: #{basic_block_forward.5} parent=5 // pred_fallthru
      _
    %p249 = scmp.le.s32.totalorder 1, %s12
    %p250 = scmp.lt.s32.totalorder %s12, 5
    %p251 = pnand %p249, %p250
    %p252 = pneg %p251
    // Predicated region
    $region41: #{basic_block_forward.5} parent=5 // pred_check
      _
    $region42: #{basic_block_forward.5} parent=5 // pred_check_branch
      %254 = sbr.rel (%p251) target = $region44
    $region43: #{basic_block_forward.5} parent=5 // pred_region
      %s255 = ssub.s32 %s12, 1
      %s256 = smul.u32 4, %s22
      %p257 = scmp.lt.s32.totalorder %s21, 1
      %s258 = scalar_select %p257, %s21, 1
      %p259 = scmp.lt.s32.totalorder %s256, 7
      %s260 = scalar_select %p259, %s256, 7
      %s261 = smul.addr %s258, 8
      %s262 = sadd.s32 %s260, %s261
      %s263 = smul.addr %s262, 4
      %s264 = scalar_lea.vmem %s0, %s263
      %p265 = pneg %p52
      %p266 = pneg %p49
      %p267 = pneg %p73
      %p268 = pneg %p70
      %p269 = pneg %p94
      %p270 = pneg %p91
      %s271 = smul.u32 4, %s22
      %p272 = scmp.lt.s32.totalorder %s21, 1
      %s273 = scalar_select %p272, %s21, 1
      %p274 = scmp.lt.s32.totalorder %s271, 7
      %s275 = scalar_select %p274, %s271, 7
      %s276 = smul.addr %s273, 8
      %s277 = sadd.s32 %s275, %s276
      %s278 = smul.addr %s277, 4
      %s279 = scalar_lea.vmem %s3, %s278
      %p280 = pneg %p122
      %p281 = pneg %p119
      %p282 = pneg %p143
      %p283 = pneg %p140
      %p284 = pneg %p164
      %p285 = pneg %p161
      %p286 = pneg %p192
      %p287 = pneg %p189
      %s288 = smul.u32 4, %s22
      %p289 = scmp.lt.s32.totalorder %s21, 1
      %s290 = scalar_select %p289, %s21, 1
      %p291 = scmp.lt.s32.totalorder %s288, 7
      %s292 = scalar_select %p291, %s288, 7
      %s293 = smul.addr %s290, 8
      %s294 = sadd.s32 %s292, %s293
      %s295 = smul.addr %s294, 8
      %s296 = scalar_lea.vmem %s6, %s295
      %s297 = smul.u32 4, %s22
      %p298 = scmp.lt.s32.totalorder %s21, 1
      %s299 = scalar_select %p298, %s21, 1
      %p300 = scmp.lt.s32.totalorder %s297, 7
      %s301 = scalar_select %p300, %s297, 7
      %s302 = smul.addr %s299, 8
      %s303 = sadd.s32 %s301, %s302
      %s304 = smul.addr %s303, 4
      %s305 = scalar_lea.vmem %s0, %s304
      %s306 = smul.u32 4, %s22
      %s307 = smul.u32 4, %s22
      %p308 = scmp.lt.s32.totalorder %s21, 1
      %s309 = scalar_select %p308, %s21, 1
      %p310 = scmp.lt.s32.totalorder %s307, 7
      %s311 = scalar_select %p310, %s307, 7
      %s312 = smul.addr %s309, 8
      %s313 = sadd.s32 %s311, %s312
      %s314 = smul.addr %s313, 4
      %s315 = scalar_lea.vmem %s3, %s314
      %s316 = smul.u32 4, %s22
      %s317 = smul.u32 4, %s22
      %p318 = scmp.lt.s32.totalorder %s21, 1
      %s319 = scalar_select %p318, %s21, 1
      %p320 = scmp.lt.s32.totalorder %s317, 7
      %s321 = scalar_select %p320, %s317, 7
      %s322 = smul.addr %s319, 8
      %s323 = sadd.s32 %s321, %s322
      %s324 = smul.addr %s323, 8
      %s325 = scalar_lea.vmem %s6, %s324
      %s326 = smul.u32 4, %s22
      %v327 = vld [vmem:[%s315] sm:$0xf]
      %v328 = vld [vmem:[%s315 + $0x4] sm:$0xf]
      %v329 = vld [vmem:[%s315 + $0x8] sm:$0xf]
      %v330 = vld [vmem:[%s315 + $0xc] sm:$0xf]
      %v331 = vunpack.c.l.bf16 %v327
      %v332 = vunpack.c.l.bf16 %v328
      %v333 = vunpack.c.l.bf16 %v329
      %v334 = vunpack.c.l.bf16 %v330
      %v335 = vld [vmem:[%s4] sm:$0x1]
      %v337 = vperm.slane %v335, 0
      %v339 = vmul.f32 %v331, %v337
      %v340 = vmul.f32 %v332, %v337
      %v341 = vmul.f32 %v333, %v337
      %v342 = vmul.f32 %v334, %v337
      %v343 = vld [vmem:[%s5] sm:$0x1]
      %v345 = vperm.slane %v343, 0
      %v347 = vadd.f32 %v339, %v345
      %v348 = vadd.f32 %v340, %v345
      %v349 = vadd.f32 %v341, %v345
      %v350 = vadd.f32 %v342, %v345
      %v351 = vld [vmem:[%s305] sm:$0xf]
      %v352 = vld [vmem:[%s305 + $0x4] sm:$0xf]
      %v353 = vld [vmem:[%s305 + $0x8] sm:$0xf]
      %v354 = vld [vmem:[%s305 + $0xc] sm:$0xf]
      %v355 = vunpack.c.l.bf16 %v351
      %v356 = vunpack.c.l.bf16 %v352
      %v357 = vunpack.c.l.bf16 %v353
      %v358 = vunpack.c.l.bf16 %v354
      %v359 = vld [vmem:[%s1] sm:$0x1]
      %v361 = vperm.slane %v359, 0
      %v363 = vmul.f32 %v355, %v361
      %v364 = vmul.f32 %v356, %v361
      %v365 = vmul.f32 %v357, %v361
      %v366 = vmul.f32 %v358, %v361
      %v367 = vld [vmem:[%s2] sm:$0x1]
      %v369 = vperm.slane %v367, 0
      %v371 = vadd.f32 %v363, %v369
      %v372 = vadd.f32 %v364, %v369
      %v373 = vadd.f32 %v365, %v369
      %v374 = vadd.f32 %v366, %v369
      %v375 = vadd.f32 %v371, %v347
      %v376 = vadd.f32 %v372, %v348
      %v377 = vadd.f32 %v373, %v349
      %v378 = vadd.f32 %v374, %v350
      %v379 = vmax.f32 %v375, 0.0
      %v380 = vmax.f32 %v376, 0.0
      %v381 = vmax.f32 %v377, 0.0
      %v382 = vmax.f32 %v378, 0.0
      %383 = vst [vmem:[%s325] sm:$0xff] %v379
      %384 = vst [vmem:[%s325 + $0x8] sm:$0xff] %v380
      %385 = vst [vmem:[%s325 + $0x10] sm:$0xff] %v381
      %386 = vst [vmem:[%s325 + $0x18] sm:$0xff] %v382
      %s387 = smul.u32 4, %s22
      %p388 = scmp.lt.s32.totalorder %s21, 1
      %s389 = scalar_select %p388, %s21, 1
      %p390 = scmp.lt.s32.totalorder %s387, 7
      %s391 = scalar_select %p390, %s387, 7
      %s392 = smul.addr %s389, 8
      %s393 = sadd.s32 %s391, %s392
      %s394 = smul.addr %s393, 8
      %s395 = scalar_lea.vmem %s6, %s394
      // Predicated region
      $region45: #{basic_block_forward.5} parent=43 // pred_check
        %p396 = pneg %p189
      $region46: #{basic_block_forward.5} parent=43 // pred_check_branch
        %398 = sbr.rel (%p396) target = $region48
      $region47: #{basic_block_forward.5} parent=43 // pred_region
        %s399 = smul.u32 4, %s22
      $region48: #{basic_block_forward.5} parent=43 // pred_fallthru
        _
    $region44: #{basic_block_forward.5} parent=5 // pred_fallthru
      _
    %p400 = scmp.le.s32.totalorder 2, %s12
    // Predicated region
    $region49: #{basic_block_forward.5} parent=5 // pred_check
      %p401 = pneg %p400
    $region50: #{basic_block_forward.5} parent=5 // pred_check_branch
      %403 = sbr.rel (%p401) target = $region52
    $region51: #{basic_block_forward.5} parent=5 // pred_region
      %s404 = ssub.s32 %s12, 2
      // Predicated region
      $region53: #{basic_block_forward.5} parent=51 // pred_check
        %p405 = pneg %p195
      $region54: #{basic_block_forward.5} parent=51 // pred_check_branch
        %407 = sbr.rel (%p405) target = $region56
      $region55: #{basic_block_forward.5} parent=51 // pred_region
        %s408 = smul.u32 4, %s24
        %p409 = scmp.lt.s32.totalorder %s23, 1
        %s410 = scalar_select %p409, %s23, 1
        %p411 = scmp.lt.s32.totalorder %s408, 7
        %s412 = scalar_select %p411, %s408, 7
        %s413 = smul.addr %s410, 8
        %s414 = sadd.s32 %s412, %s413
        %s415 = smul.addr %s414, 8
        %s416 = scalar_lea.vmem %s6, %s415
      $region56: #{basic_block_forward.5} parent=51 // pred_fallthru
        _
    $region52: #{basic_block_forward.5} parent=5 // pred_fallthru
      _
  $region6: #{basic_block_forward.5} parent=0 // loop_footer
    %s16 = sadd.s32 1, %s12
  $region7: #{basic_block_forward.5} parent=0 // loop_footer_branch
    %11 = sbr.rel target = $region3
  $region8: #{basic_block_forward.5} parent=0 // loop_exit
    _

// kernel: basic_block_forward.3
$region0: #{basic_block_forward.3}
  #allocation0 [shape = 'u32[]', space=smem, size = 0x4, offset = 0x4, fixed_abs, tag = 'smem constant byte address 0x4 - core index']
  #allocation1 [shape = 'u32[72,128]{1,0:T(1,128)}', space=vmem, size = 0x9000, scoped, tag = 'internal scratch']
  %s0 = inlined_call_operand.vmem [shape: bf16[2,4,9,9,128], index: 0, kind: input, shape index: {}]
  %s1 = inlined_call_operand.vmem [shape: bf16[9,128,128], index: 1, kind: input, shape index: {}]
  %s2 = inlined_call_operand.vmem [shape: bf16[128,128], index: 2, kind: input, shape index: {}]
  %s3 = inlined_call_operand.vmem [shape: bf16[2,10,10,128], index: 3, kind: output, shape index: {0}]
  %s4 = inlined_call_operand.vmem [shape: f32[4,2,128], index: 4, kind: output, shape index: {1}]
  %s5 = inlined_call_operand.vmem [shape: bf16[2,8,8,128], index: 5, kind: output, shape index: {2}]
  %s6 = inlined_call_operand.vmem [shape: f32[4,2,128], index: 6, kind: output, shape index: {3}]
  %7 = xla_tuple %s3, %s4, %s5, %s6
  %s8 = sld [smem:[#allocation0]]
  $region73: #{basic_block_forward.3} parent=0
    _
  %s10 = ssub.s32 1, %s8
  %s11 = scalar_select 0, %s10, %s8
  loop: start=0, step=1, limit=6
  $region2: #{basic_block_forward.3} parent=0 // loop_pre_header
    _
  $region3: #{basic_block_forward.3} parent=0 // loop_header
    %s13 = sphi 0, %s17
    %p14 = scmp.ge.s32.totalorder %s13, 6
    %s20 = sphi 0, %s32
    %s21 = sphi 0, %s28
    %s22 = sphi 0, %s20
    %s23 = sphi 0, %s21
    %s24 = sphi 0, %s22
    %s25 = sphi 0, %s23
    %s35 = sphi 0, %s37
    %s38 = sphi 0, %s35
    %s39 = sphi 0, %s38
    %s55 = sphi 0, %s39
    %s59 = sphi 0, %s59
    %s61 = sphi 0, %s59
    %s62 = sphi 0, %s61
    %s76 = sphi 0, %s62
    %s80 = sphi 0, %s80
    %s82 = sphi 0, %s80
    %s83 = sphi 0, %s82
    %s97 = sphi 0, %s83
    %s103 = sphi 0, %s105
    %s106 = sphi 0, %s103
    %s107 = sphi 0, %s106
    %s123 = sphi 0, %s107
    %s133 = sphi 0, %s135
    %s136 = sphi 0, %s133
    %s137 = sphi 0, %s136
    %s153 = sphi 0, %s137
    %s161 = sphi 0, %s163
    %s164 = sphi 0, %s161
    %s165 = sphi 0, %s164
    %s181 = sphi 0, %s165
    %s191 = sphi 0, %s193
    %s194 = sphi 0, %s191
    %s195 = sphi 0, %s194
    %s211 = sphi 0, %s195
  $region4: #{basic_block_forward.3} parent=0 // loop_header_branch
    %16 = sbr.rel (%p14) target = $region8
  $region5: #{basic_block_forward.3} parent=0 // loop_body
    %s18 = ssub.s32 %s13, 1
    %s19 = ssub.s32 %s13, 2
    %s26 = sadd.s32 1, %s21
    %p27 = scmp.ge.s32.totalorder %s26, 2
    %s28 = scalar_select %p27, 0, %s26
    %s29 = sadd.s32 1, %s20
    %s30 = scalar_select %p27, %s29, %s20
    %p31 = scmp.ge.s32.totalorder %s30, 2
    %s32 = scalar_select %p31, 0, %s30
    %s33 = ssub.s32 %s20, %s32
    %p34 = scmp.eq.s32.totalorder %s33, 0
    %s36 = sadd.s32 %s35, 1
    %s37 = scalar_select %p34, %s35, %s36
    %p40 = pneg %p34
    %p41 = scmp.eq.s32.totalorder %s13, 3
    %p42 = por %p40, %p41
    %p43 = scmp.ne.s32.totalorder %s35, %s38
    %p44 = scmp.eq.s32.totalorder %s13, 0
    %p45 = por %p43, %p44
    %p46 = scmp.ne.s32.totalorder %s35, %s38
    %p47 = scmp.eq.s32.totalorder %s18, 3
    %p48 = por %p46, %p47
    %p49 = scmp.ne.s32.totalorder %s38, %s39
    %p50 = scmp.eq.s32.totalorder %s18, 0
    %p51 = por %p49, %p50
    %p52 = scmp.ne.s32.totalorder %s38, %s39
    %p53 = scmp.eq.s32.totalorder %s19, 3
    %p54 = por %p52, %p53
    %p56 = scmp.ne.s32.totalorder %s39, %s55
    %p57 = scmp.eq.s32.totalorder %s19, 0
    %p58 = por %p56, %p57
    %s60 = sadd.s32 %s59, 1
    %p63 = scmp.eq.s32.totalorder %s13, 3
    %p64 = scmp.ne.s32.totalorder %s59, %s61
    %p65 = scmp.eq.s32.totalorder %s13, 0
    %p66 = por %p64, %p65
    %p67 = scmp.ne.s32.totalorder %s59, %s61
    %p68 = scmp.eq.s32.totalorder %s18, 3
    %p69 = por %p67, %p68
    %p70 = scmp.ne.s32.totalorder %s61, %s62
    %p71 = scmp.eq.s32.totalorder %s18, 0
    %p72 = por %p70, %p71
    %p73 = scmp.ne.s32.totalorder %s61, %s62
    %p74 = scmp.eq.s32.totalorder %s19, 3
    %p75 = por %p73, %p74
    %p77 = scmp.ne.s32.totalorder %s62, %s76
    %p78 = scmp.eq.s32.totalorder %s19, 0
    %p79 = por %p77, %p78
    %s81 = sadd.s32 %s80, 1
    %p84 = scmp.eq.s32.totalorder %s13, 3
    %p85 = scmp.ne.s32.totalorder %s80, %s82
    %p86 = scmp.eq.s32.totalorder %s13, 0
    %p87 = por %p85, %p86
    %p88 = scmp.ne.s32.totalorder %s80, %s82
    %p89 = scmp.eq.s32.totalorder %s18, 3
    %p90 = por %p88, %p89
    %p91 = scmp.ne.s32.totalorder %s82, %s83
    %p92 = scmp.eq.s32.totalorder %s18, 0
    %p93 = por %p91, %p92
    %p94 = scmp.ne.s32.totalorder %s82, %s83
    %p95 = scmp.eq.s32.totalorder %s19, 3
    %p96 = por %p94, %p95
    %p98 = scmp.ne.s32.totalorder %s83, %s97
    %p99 = scmp.eq.s32.totalorder %s19, 0
    %p100 = por %p98, %p99
    %s101 = ssub.s32 %s20, %s32
    %p102 = scmp.eq.s32.totalorder %s101, 0
    %s104 = sadd.s32 %s103, 1
    %s105 = scalar_select %p102, %s103, %s104
    %p108 = pneg %p102
    %p109 = scmp.eq.s32.totalorder %s13, 3
    %p110 = por %p108, %p109
    %p111 = scmp.ne.s32.totalorder %s103, %s106
    %p112 = scmp.eq.s32.totalorder %s13, 0
    %p113 = por %p111, %p112
    %p114 = scmp.ne.s32.totalorder %s103, %s106
    %p115 = scmp.eq.s32.totalorder %s18, 3
    %p116 = por %p114, %p115
    %p117 = scmp.ne.s32.totalorder %s106, %s107
    %p118 = scmp.eq.s32.totalorder %s18, 0
    %p119 = por %p117, %p118
    %p120 = scmp.ne.s32.totalorder %s106, %s107
    %p121 = scmp.eq.s32.totalorder %s19, 3
    %p122 = por %p120, %p121
    %p124 = scmp.ne.s32.totalorder %s107, %s123
    %p125 = scmp.eq.s32.totalorder %s19, 0
    %p126 = por %p124, %p125
    %s127 = smul.u32 %s20, 2
    %s128 = sadd.s32 %s127, %s21
    %s129 = smul.u32 %s32, 2
    %s130 = sadd.s32 %s129, %s28
    %s131 = ssub.s32 %s128, %s130
    %p132 = scmp.eq.s32.totalorder %s131, 0
    %s134 = sadd.s32 %s133, 1
    %s135 = scalar_select %p132, %s133, %s134
    %p138 = pneg %p132
    %p139 = scmp.eq.s32.totalorder %s13, 3
    %p140 = por %p138, %p139
    %p141 = scmp.ne.s32.totalorder %s133, %s136
    %p142 = scmp.eq.s32.totalorder %s13, 0
    %p143 = por %p141, %p142
    %p144 = scmp.ne.s32.totalorder %s133, %s136
    %p145 = scmp.eq.s32.totalorder %s18, 3
    %p146 = por %p144, %p145
    %p147 = scmp.ne.s32.totalorder %s136, %s137
    %p148 = scmp.eq.s32.totalorder %s18, 0
    %p149 = por %p147, %p148
    %p150 = scmp.ne.s32.totalorder %s136, %s137
    %p151 = scmp.eq.s32.totalorder %s19, 3
    %p152 = por %p150, %p151
    %p154 = scmp.ne.s32.totalorder %s137, %s153
    %p155 = scmp.eq.s32.totalorder %s19, 0
    %p156 = por %p154, %p155
    %s157 = ssub.s32 %s20, %s32
    %s158 = ssub.s32 %s21, %s28
    %s159 = sor.u32 %s157, %s158
    %p160 = scmp.eq.s32.totalorder %s159, 0
    %s162 = sadd.s32 %s161, 1
    %s163 = scalar_select %p160, %s161, %s162
    %p166 = pneg %p160
    %p167 = scmp.eq.s32.totalorder %s13, 3
    %p168 = por %p166, %p167
    %p169 = scmp.ne.s32.totalorder %s161, %s164
    %p170 = scmp.eq.s32.totalorder %s13, 0
    %p171 = por %p169, %p170
    %p172 = scmp.ne.s32.totalorder %s161, %s164
    %p173 = scmp.eq.s32.totalorder %s18, 3
    %p174 = por %p172, %p173
    %p175 = scmp.ne.s32.totalorder %s164, %s165
    %p176 = scmp.eq.s32.totalorder %s18, 0
    %p177 = por %p175, %p176
    %p178 = scmp.ne.s32.totalorder %s164, %s165
    %p179 = scmp.eq.s32.totalorder %s19, 3
    %p180 = por %p178, %p179
    %p182 = scmp.ne.s32.totalorder %s165, %s181
    %p183 = scmp.eq.s32.totalorder %s19, 0
    %p184 = por %p182, %p183
    %s185 = smul.u32 %s20, 2
    %s186 = sadd.s32 %s185, %s21
    %s187 = smul.u32 %s32, 2
    %s188 = sadd.s32 %s187, %s28
    %s189 = ssub.s32 %s186, %s188
    %p190 = scmp.eq.s32.totalorder %s189, 0
    %s192 = sadd.s32 %s191, 1
    %s193 = scalar_select %p190, %s191, %s192
    %p196 = pneg %p190
    %p197 = scmp.eq.s32.totalorder %s13, 3
    %p198 = por %p196, %p197
    %p199 = scmp.ne.s32.totalorder %s191, %s194
    %p200 = scmp.eq.s32.totalorder %s13, 0
    %p201 = por %p199, %p200
    %p202 = scmp.ne.s32.totalorder %s191, %s194
    %p203 = scmp.eq.s32.totalorder %s18, 3
    %p204 = por %p202, %p203
    %p205 = scmp.ne.s32.totalorder %s194, %s195
    %p206 = scmp.eq.s32.totalorder %s18, 0
    %p207 = por %p205, %p206
    %p208 = scmp.ne.s32.totalorder %s194, %s195
    %p209 = scmp.eq.s32.totalorder %s19, 3
    %p210 = por %p208, %p209
    %p212 = scmp.ne.s32.totalorder %s195, %s211
    %p213 = scmp.eq.s32.totalorder %s19, 0
    %p214 = por %p212, %p213
    %p215 = scmp.le.s32.totalorder 1, %s13
    %p216 = scmp.lt.s32.totalorder %s13, 5
    %p217 = pnand %p215, %p216
    %p218 = pneg %p217
    // Predicated region
    $region9: #{basic_block_forward.3} parent=5 // pred_check
      _
    $region10: #{basic_block_forward.3} parent=5 // pred_check_branch
      %220 = sbr.rel (%p217) target = $region12
    $region11: #{basic_block_forward.3} parent=5 // pred_region
      %s221 = ssub.s32 %s13, 1
      // Predicated region
      $region13: #{basic_block_forward.3} parent=11 // pred_check
        %p222 = pneg %p72
      $region14: #{basic_block_forward.3} parent=11 // pred_check_branch
        %224 = sbr.rel (%p222) target = $region16
      $region15: #{basic_block_forward.3} parent=11 // pred_region
        _
      $region16: #{basic_block_forward.3} parent=11 // pred_fallthru
        _
      // Predicated region
      $region17: #{basic_block_forward.3} parent=11 // pred_check
        %p225 = pneg %p93
      $region18: #{basic_block_forward.3} parent=11 // pred_check_branch
        %227 = sbr.rel (%p225) target = $region20
      $region19: #{basic_block_forward.3} parent=11 // pred_region
        _
      $region20: #{basic_block_forward.3} parent=11 // pred_fallthru
        _
    $region12: #{basic_block_forward.3} parent=5 // pred_fallthru
      _
    %p228 = scmp.lt.s32.totalorder %s13, 4
    // Predicated region
    $region21: #{basic_block_forward.3} parent=5 // pred_check
      %p229 = pneg %p228
    $region22: #{basic_block_forward.3} parent=5 // pred_check_branch
      %231 = sbr.rel (%p229) target = $region24
    $region23: #{basic_block_forward.3} parent=5 // pred_region
      // Predicated region
      $region25: #{basic_block_forward.3} parent=23 // pred_check
        %p232 = pneg %p45
      $region26: #{basic_block_forward.3} parent=23 // pred_check_branch
        %234 = sbr.rel (%p232) target = $region28
      $region27: #{basic_block_forward.3} parent=23 // pred_region
        %p235 = scmp.lt.s32.totalorder %s20, 1
        %s236 = scalar_select %p235, %s20, 1
        %s237 = smul.addr %s236, 72
        %s238 = smul.addr %s237, 4
        %s239 = scalar_lea.vmem %s0, %s238
      $region28: #{basic_block_forward.3} parent=23 // pred_fallthru
        _
    $region24: #{basic_block_forward.3} parent=5 // pred_fallthru
      _
    %p240 = scmp.le.s32.totalorder 1, %s13
    %p241 = scmp.lt.s32.totalorder %s13, 5
    %p242 = pnand %p240, %p241
    %p243 = pneg %p242
    // Predicated region
    $region29: #{basic_block_forward.3} parent=5 // pred_check
      _
    $region30: #{basic_block_forward.3} parent=5 // pred_check_branch
      %245 = sbr.rel (%p242) target = $region32
    $region31: #{basic_block_forward.3} parent=5 // pred_region
      %s246 = ssub.s32 %s13, 1
      %p247 = scmp.lt.s32.totalorder %s22, 1
      %s248 = scalar_select %p247, %s22, 1
      %s249 = smul.addr %s248, 72
      %s250 = smul.addr %s249, 4
      %s251 = scalar_lea.vmem %s0, %s250
      %p252 = pneg %p51
      %p253 = pneg %p48
      %p254 = pneg %p72
      %p255 = pneg %p69
      %p256 = pneg %p93
      %p257 = pneg %p90
      %p258 = pneg %p119
      %p259 = pneg %p116
      %p260 = scmp.lt.s32.totalorder %s22, 1
      %s261 = scalar_select %p260, %s22, 1
      %s262 = smul.addr %s261, 20
      %s263 = smul.addr %s262, 4
      %s264 = scalar_lea.vmem %s3, %s263
      %p265 = pneg %p149
      %p266 = pneg %p146
      %s267 = smul.u32 %s22, 2
      %s268 = sadd.s32 %s267, %s23
      %p269 = scmp.lt.s32.totalorder %s268, 3
      %s270 = scalar_select %p269, %s268, 3
      %s271 = smul.addr %s270, 2
      %s272 = scalar_lea.vmem %s4, %s271
      %p273 = pneg %p177
      %p274 = pneg %p174
      %s275 = smul.u32 4, %s23
      %p276 = scmp.lt.s32.totalorder %s22, 1
      %s277 = scalar_select %p276, %s22, 1
      %p278 = scmp.lt.s32.totalorder %s275, 7
      %s279 = scalar_select %p278, %s275, 7
      %s280 = smul.addr %s277, 8
      %s281 = sadd.s32 %s279, %s280
      %s282 = smul.addr %s281, 4
      %s283 = scalar_lea.vmem %s5, %s282
      %p284 = pneg %p207
      %p285 = pneg %p204
      %s286 = smul.u32 %s22, 2
      %s287 = sadd.s32 %s286, %s23
      %p288 = scmp.lt.s32.totalorder %s287, 3
      %s289 = scalar_select %p288, %s287, 3
      %s290 = smul.addr %s289, 2
      %s291 = scalar_lea.vmem %s6, %s290
      %p292 = scmp.lt.s32.totalorder %s22, 1
      %s293 = scalar_select %p292, %s22, 1
      %s294 = smul.addr %s293, 72
      %s295 = smul.addr %s294, 4
      %s296 = scalar_lea.vmem %s0, %s295
      %p297 = scmp.lt.s32.totalorder %s22, 1
      %s298 = scalar_select %p297, %s22, 1
      %s299 = smul.addr %s298, 20
      %s300 = smul.addr %s299, 4
      %s301 = scalar_lea.vmem %s3, %s300
      %s302 = smul.u32 %s22, 2
      %s303 = sadd.s32 %s302, %s23
      %p304 = scmp.lt.s32.totalorder %s303, 3
      %s305 = scalar_select %p304, %s303, 3
      %s306 = smul.addr %s305, 2
      %s307 = scalar_lea.vmem %s4, %s306
      %s308 = smul.u32 %s22, 2
      %s309 = sadd.s32 %s308, %s23
      %s310 = smul.u32 4, %s23
      %p311 = scmp.lt.s32.totalorder %s22, 1
      %s312 = scalar_select %p311, %s22, 1
      %p313 = scmp.lt.s32.totalorder %s310, 7
      %s314 = scalar_select %p313, %s310, 7
      %s315 = smul.addr %s312, 8
      %s316 = sadd.s32 %s314, %s315
      %s317 = smul.addr %s316, 4
      %s318 = scalar_lea.vmem %s5, %s317
      %s319 = smul.u32 4, %s23
      %s320 = smul.u32 %s22, 2
      %s321 = sadd.s32 %s320, %s23
      %p322 = scmp.lt.s32.totalorder %s321, 3
      %s323 = scalar_select %p322, %s321, 3
      %s324 = smul.addr %s323, 2
      %s325 = scalar_lea.vmem %s6, %s324
      %s326 = smul.u32 %s22, 2
      %s327 = sadd.s32 %s326, %s23
      %s329 = smul.u32 %s23, 4
      %p330 = scmp.eq.s32.totalorder %s23, 0
      // Predicated region
      $region33: #{basic_block_forward.3} parent=31 // pred_check
        %p331 = pneg %p330
      $region34: #{basic_block_forward.3} parent=31 // pred_check_branch
        %333 = sbr.rel (%p331) target = $region36
      $region35: #{basic_block_forward.3} parent=31 // pred_region
        %334 = vst [vmem:[%s301] sm:$0xf] 0
        %335 = vst [vmem:[%s301 + $0x4] sm:$0x1] 0
        %336 = vst [vmem:[%s301 + $0x8] sm:$0xf] 0
        %337 = vst [vmem:[%s301 + $0xc] sm:$0x1] 0
        %338 = vst [vmem:[%s301 + $0x10] sm:$0xf] 0
        %339 = vst [vmem:[%s301 + $0x14] sm:$0x1] 0
        %340 = vst [vmem:[%s301 + $0x18] sm:$0xf] 0
        %341 = vst [vmem:[%s301 + $0x1c] sm:$0x1] 0
        %342 = vst [vmem:[%s301 + $0x20] sm:$0xf] 0
        %343 = vst [vmem:[%s301 + $0x24] sm:$0x1] 0
        %344 = vst [vmem:[%s301 + $0x28] sm:$0xf] 0
        %345 = vst [vmem:[%s301 + $0x2c] sm:$0x1] 0
        %346 = vst [vmem:[%s301 + $0x30] sm:$0xf] 0
        %347 = vst [vmem:[%s301 + $0x34] sm:$0x1] 0
        %348 = vst [vmem:[%s301 + $0x38] sm:$0xf] 0
        %349 = vst [vmem:[%s301 + $0x3c] sm:$0x1] 0
        %350 = vst [vmem:[%s301 + $0x40] sm:$0xf] 0
        %351 = vst [vmem:[%s301 + $0x44] sm:$0x1] 0
        %352 = vst [vmem:[%s301 + $0x48] sm:$0xf] 0
        %353 = vst [vmem:[%s301 + $0x4c] sm:$0x1] 0
      $region36: #{basic_block_forward.3} parent=31 // pred_fallthru
        _
      %s354 = smul.u32 %s329, 2
      %s355 = smul.addr %s354, 4
      %s356 = scalar_lea.vmem %s296, %s355
      %v357 = vld [vmem:[%s356] sm:$0xf]
      %v358 = vld [vmem:[%s356 + $0x8] sm:$0xf]
      %v359 = vld [vmem:[%s356 + $0x10] sm:$0xf]
      %v360 = vld [vmem:[%s356 + $0x18] sm:$0xf]
      %v361 = vld [vmem:[%s1] sm:$0xf]
      %v362 = vld [vmem:[%s1 + $0x4] sm:$0xf]
      %v363 = vld [vmem:[%s1 + $0x8] sm:$0xf]
      %v364 = vld [vmem:[%s1 + $0xc] sm:$0xf]
      %v365 = vld [vmem:[%s1 + $0x10] sm:$0xf]
      %v366 = vld [vmem:[%s1 + $0x14] sm:$0xf]
      %v367 = vld [vmem:[%s1 + $0x18] sm:$0xf]
      %v368 = vld [vmem:[%s1 + $0x1c] sm:$0xf]
      %v369 = vld [vmem:[%s1 + $0x20] sm:$0xf]
      %v370 = vld [vmem:[%s1 + $0x24] sm:$0xf]
      %v371 = vld [vmem:[%s1 + $0x28] sm:$0xf]
      %v372 = vld [vmem:[%s1 + $0x2c] sm:$0xf]
      %v373 = vld [vmem:[%s1 + $0x30] sm:$0xf]
      %v374 = vld [vmem:[%s1 + $0x34] sm:$0xf]
      %v375 = vld [vmem:[%s1 + $0x38] sm:$0xf]
      %v376 = vld [vmem:[%s1 + $0x3c] sm:$0xf]
      %s377 = sadd.s32 %s354, 18
      %s378 = smul.addr %s377, 4
      %s379 = scalar_lea.vmem %s296, %s378
      %v380 = vld [vmem:[%s379] sm:$0xf]
      %v381 = vld [vmem:[%s379 + $0x8] sm:$0xf]
      %v382 = vld [vmem:[%s379 + $0x10] sm:$0xf]
      %v383 = vld [vmem:[%s379 + $0x18] sm:$0xf]
      %s384 = scalar_lea.vmem %s1, 64
      %v385 = vld [vmem:[%s384] sm:$0xf]
      %v386 = vld [vmem:[%s384 + $0x4] sm:$0xf]
      %v387 = vld [vmem:[%s384 + $0x8] sm:$0xf]
      %v388 = vld [vmem:[%s384 + $0xc] sm:$0xf]
      %v389 = vld [vmem:[%s384 + $0x10] sm:$0xf]
      %v390 = vld [vmem:[%s384 + $0x14] sm:$0xf]
      %v391 = vld [vmem:[%s384 + $0x18] sm:$0xf]
      %v392 = vld [vmem:[%s384 + $0x1c] sm:$0xf]
      %v393 = vld [vmem:[%s384 + $0x20] sm:$0xf]
      %v394 = vld [vmem:[%s384 + $0x24] sm:$0xf]
      %v395 = vld [vmem:[%s384 + $0x28] sm:$0xf]
      %v396 = vld [vmem:[%s384 + $0x2c] sm:$0xf]
      %v397 = vld [vmem:[%s384 + $0x30] sm:$0xf]
      %v398 = vld [vmem:[%s384 + $0x34] sm:$0xf]
      %v399 = vld [vmem:[%s384 + $0x38] sm:$0xf]
      %v400 = vld [vmem:[%s384 + $0x3c] sm:$0xf]
      %v405 = vunpack.c.l.b16 %v380
      %v406 = vunpack.c.l.b16 %v381
      %v407 = vunpack.c.l.b16 %v382
      %v408 = vunpack.c.l.b16 %v383
      %v409 = vpack.c.b16 %v406, %v405
      %v410 = vpack.c.b16 %v408, %v407
      %v429 = vunpack.c.l.b16 %v385
      %v430 = vunpack.c.l.b16 %v386
      %v431 = vunpack.c.l.b16 %v387
      %v432 = vunpack.c.l.b16 %v388
      %v433 = vunpack.c.l.b16 %v389
      %v434 = vunpack.c.l.b16 %v390
      %v435 = vunpack.c.l.b16 %v391
      %v436 = vunpack.c.l.b16 %v392
      %v437 = vunpack.c.l.b16 %v393
      %v438 = vunpack.c.l.b16 %v394
      %v439 = vunpack.c.l.b16 %v395
      %v440 = vunpack.c.l.b16 %v396
      %v441 = vunpack.c.l.b16 %v397
      %v442 = vunpack.c.l.b16 %v398
      %v443 = vunpack.c.l.b16 %v399
      %v444 = vunpack.c.l.b16 %v400
      %v445 = vpack.c.b16 %v430, %v429
      %v446 = vpack.c.b16 %v432, %v431
      %v447 = vpack.c.b16 %v434, %v433
      %v448 = vpack.c.b16 %v436, %v435
      %v449 = vpack.c.b16 %v438, %v437
      %v450 = vpack.c.b16 %v440, %v439
      %v451 = vpack.c.b16 %v442, %v441
      %v452 = vpack.c.b16 %v444, %v443
      %461 = vmatpush.bf16.msra.mxu0 %v452
      %462 = vmatpush.bf16.msra.mxu0 %v451
      %463 = vmatpush.bf16.msra.mxu0 %v450
      %464 = vmatpush.bf16.msra.mxu0 %v449
      %465 = vmatpush.bf16.msra.mxu0 %v448
      %466 = vmatpush.bf16.msra.mxu0 %v447
      %467 = vmatpush.bf16.msra.mxu0 %v446
      %468 = vmatpush.bf16.msra.mxu0 %v445
      %469 = vmatmul.bf16.gmra.mxu0 %v409
      %v470 = vpop.f32.mrf.mxu0
      %v471 = vadd.f32 0.0, %v470
      %v472 = vpop.f32.mrf.mxu0
      %v473 = vadd.f32 0.0, %v472
      %474 = vmatmul.bf16.gmra.mxu0 %v410
      %v475 = vpop.f32.mrf.mxu0
      %v476 = vadd.f32 0.0, %v475
      %v477 = vpop.f32.mrf.mxu0
      %v478 = vadd.f32 0.0, %v477
      %479 = vdwg.mxu0
      %v484 = vunpack.c.l.b16 %v357
      %v485 = vunpack.c.l.b16 %v358
      %v486 = vunpack.c.l.b16 %v359
      %v487 = vunpack.c.l.b16 %v360
      %v488 = vpack.c.b16 %v485, %v484
      %v489 = vpack.c.b16 %v487, %v486
      %v508 = vunpack.c.l.b16 %v361
      %v509 = vunpack.c.l.b16 %v362
      %v510 = vunpack.c.l.b16 %v363
      %v511 = vunpack.c.l.b16 %v364
      %v512 = vunpack.c.l.b16 %v365
      %v513 = vunpack.c.l.b16 %v366
      %v514 = vunpack.c.l.b16 %v367
      %v515 = vunpack.c.l.b16 %v368
      %v516 = vunpack.c.l.b16 %v369
      %v517 = vunpack.c.l.b16 %v370
      %v518 = vunpack.c.l.b16 %v371
      %v519 = vunpack.c.l.b16 %v372
      %v520 = vunpack.c.l.b16 %v373
      %v521 = vunpack.c.l.b16 %v374
      %v522 = vunpack.c.l.b16 %v375
      %v523 = vunpack.c.l.b16 %v376
      %v524 = vpack.c.b16 %v509, %v508
      %v525 = vpack.c.b16 %v511, %v510
      %v526 = vpack.c.b16 %v513, %v512
      %v527 = vpack.c.b16 %v515, %v514
      %v528 = vpack.c.b16 %v517, %v516
      %v529 = vpack.c.b16 %v519, %v518
      %v530 = vpack.c.b16 %v521, %v520
      %v531 = vpack.c.b16 %v523, %v522
      %540 = vmatpush.bf16.msra.mxu0 %v531
      %541 = vmatpush.bf16.msra.mxu0 %v530
      %542 = vmatpush.bf16.msra.mxu0 %v529
      %543 = vmatpush.bf16.msra.mxu0 %v528
      %544 = vmatpush.bf16.msra.mxu0 %v527
      %545 = vmatpush.bf16.msra.mxu0 %v526
      %546 = vmatpush.bf16.msra.mxu0 %v525
      %547 = vmatpush.bf16.msra.mxu0 %v524
      %548 = vmatmul.bf16.gmra.mxu0 %v488
      %v549 = vpop.f32.mrf.mxu0
      %v550 = vadd.f32 %v471, %v549
      %v551 = vpop.f32.mrf.mxu0
      %v552 = vadd.f32 %v473, %v551
      %553 = vmatmul.bf16.gmra.mxu0 %v489
      %v554 = vpop.f32.mrf.mxu0
      %v555 = vadd.f32 %v476, %v554
      %v556 = vpop.f32.mrf.mxu0
      %v557 = vadd.f32 %v478, %v556
      %558 = vdwg.mxu0
      %v559 = vld [vmem:[%s356] sm:$0xf]
      %v560 = vld [vmem:[%s356 + $0x4] sm:$0x1]
      %v561 = vld [vmem:[%s356 + $0x8] sm:$0xf]
      %v562 = vld [vmem:[%s356 + $0xc] sm:$0x1]
      %v563 = vld [vmem:[%s356 + $0x10] sm:$0xf]
      %v564 = vld [vmem:[%s356 + $0x14] sm:$0x1]
      %v565 = vld [vmem:[%s356 + $0x18] sm:$0xf]
      %v566 = vld [vmem:[%s356 + $0x1c] sm:$0x1]
      %vm567 = vsmask.f32 3328
      %vm568 = vsmask.f32 7440
      %vm569 = vmor %vm567, %vm568
      %v571 = vshrl.u32 %v559, 16
      %v573 = vrot.slane %v571, 4
      %v574 = vshll.u32 %v559, 16
      %v576 = vrot.slane %v574, 5
      %v577 = vor.u32 %v573, %v576
      %v578 = vrot.slane %v577, 4
      %v580 = vshll.u32 %v560, 16
      %v582 = vrot.slane %v580, 5
      %v583 = vsel %vm569, %v578, %v582
      %v585 = vshrl.u32 %v561, 16
      %v587 = vrot.slane %v585, 4
      %v588 = vshll.u32 %v561, 16
      %v590 = vrot.slane %v588, 5
      %v591 = vor.u32 %v587, %v590
      %v592 = vrot.slane %v591, 4
      %v594 = vshll.u32 %v562, 16
      %v596 = vrot.slane %v594, 5
      %v597 = vsel %vm569, %v592, %v596
      %v599 = vshrl.u32 %v563, 16
      %v601 = vrot.slane %v599, 4
      %v602 = vshll.u32 %v563, 16
      %v604 = vrot.slane %v602, 5
      %v605 = vor.u32 %v601, %v604
      %v606 = vrot.slane %v605, 4
      %v608 = vshll.u32 %v564, 16
      %v610 = vrot.slane %v608, 5
      %v611 = vsel %vm569, %v606, %v610
      %v613 = vshrl.u32 %v565, 16
      %v615 = vrot.slane %v613, 4
      %v616 = vshll.u32 %v565, 16
      %v618 = vrot.slane %v616, 5
      %v619 = vor.u32 %v615, %v618
      %v620 = vrot.slane %v619, 4
      %v622 = vshll.u32 %v566, 16
      %v624 = vrot.slane %v622, 5
      %v625 = vsel %vm569, %v620, %v624
      %s626 = scalar_lea.vmem %s1, 128
      %v627 = vld [vmem:[%s626] sm:$0xf]
      %v628 = vld [vmem:[%s626 + $0x4] sm:$0xf]
      %v629 = vld [vmem:[%s626 + $0x8] sm:$0xf]
      %v630 = vld [vmem:[%s626 + $0xc] sm:$0xf]
      %v631 = vld [vmem:[%s626 + $0x10] sm:$0xf]
      %v632 = vld [vmem:[%s626 + $0x14] sm:$0xf]
      %v633 = vld [vmem:[%s626 + $0x18] sm:$0xf]
      %v634 = vld [vmem:[%s626 + $0x1c] sm:$0xf]
      %v635 = vld [vmem:[%s626 + $0x20] sm:$0xf]
      %v636 = vld [vmem:[%s626 + $0x24] sm:$0xf]
      %v637 = vld [vmem:[%s626 + $0x28] sm:$0xf]
      %v638 = vld [vmem:[%s626 + $0x2c] sm:$0xf]
      %v639 = vld [vmem:[%s626 + $0x30] sm:$0xf]
      %v640 = vld [vmem:[%s626 + $0x34] sm:$0xf]
      %v641 = vld [vmem:[%s626 + $0x38] sm:$0xf]
      %v642 = vld [vmem:[%s626 + $0x3c] sm:$0xf]
      %v643 = vunpack.c.l.b16 %v583
      %v644 = vunpack.c.l.b16 %v597
      %v645 = vunpack.c.l.b16 %v611
      %v646 = vunpack.c.l.b16 %v625
      %v647 = vpack.c.b16 %v644, %v643
      %v648 = vpack.c.b16 %v646, %v645
      %v667 = vunpack.c.l.b16 %v627
      %v668 = vunpack.c.l.b16 %v628
      %v669 = vunpack.c.l.b16 %v629
      %v670 = vunpack.c.l.b16 %v630
      %v671 = vunpack.c.l.b16 %v631
      %v672 = vunpack.c.l.b16 %v632
      %v673 = vunpack.c.l.b16 %v633
      %v674 = vunpack.c.l.b16 %v634
      %v675 = vunpack.c.l.b16 %v635
      %v676 = vunpack.c.l.b16 %v636
      %v677 = vunpack.c.l.b16 %v637
      %v678 = vunpack.c.l.b16 %v638
      %v679 = vunpack.c.l.b16 %v639
      %v680 = vunpack.c.l.b16 %v640
      %v681 = vunpack.c.l.b16 %v641
      %v682 = vunpack.c.l.b16 %v642
      %v683 = vpack.c.b16 %v668, %v667
      %v684 = vpack.c.b16 %v670, %v669
      %v685 = vpack.c.b16 %v672, %v671
      %v686 = vpack.c.b16 %v674, %v673
      %v687 = vpack.c.b16 %v676, %v675
      %v688 = vpack.c.b16 %v678, %v677
      %v689 = vpack.c.b16 %v680, %v679
      %v690 = vpack.c.b16 %v682, %v681
      %699 = vmatpush.bf16.msra.mxu0 %v690
      %700 = vmatpush.bf16.msra.mxu0 %v689
      %701 = vmatpush.bf16.msra.mxu0 %v688
      %702 = vmatpush.bf16.msra.mxu0 %v687
      %703 = vmatpush.bf16.msra.mxu0 %v686
      %704 = vmatpush.bf16.msra.mxu0 %v685
      %705 = vmatpush.bf16.msra.mxu0 %v684
      %706 = vmatpush.bf16.msra.mxu0 %v683
      %707 = vmatmul.bf16.gmra.mxu0 %v647
      %v708 = vpop.f32.mrf.mxu0
      %v709 = vadd.f32 0.0, %v708
      %v710 = vpop.f32.mrf.mxu0
      %v711 = vadd.f32 0.0, %v710
      %712 = vmatmul.bf16.gmra.mxu0 %v648
      %v713 = vpop.f32.mrf.mxu0
      %v714 = vadd.f32 0.0, %v713
      %v715 = vpop.f32.mrf.mxu0
      %v716 = vadd.f32 0.0, %v715
      %717 = vdwg.mxu0
      %v718 = vadd.f32 %v550, %v709
      %v719 = vadd.f32 %v552, %v711
      %v720 = vadd.f32 %v555, %v714
      %v721 = vadd.f32 %v557, %v716
      %s722 = sadd.s32 %s354, 36
      %s723 = smul.addr %s722, 4
      %s724 = scalar_lea.vmem %s296, %s723
      %v725 = vld [vmem:[%s724] sm:$0xf]
      %v726 = vld [vmem:[%s724 + $0x8] sm:$0xf]
      %v727 = vld [vmem:[%s724 + $0x10] sm:$0xf]
      %v728 = vld [vmem:[%s724 + $0x18] sm:$0xf]
      %s729 = scalar_lea.vmem %s1, 192
      %v730 = vld [vmem:[%s729] sm:$0xf]
      %v731 = vld [vmem:[%s729 + $0x4] sm:$0xf]
      %v732 = vld [vmem:[%s729 + $0x8] sm:$0xf]
      %v733 = vld [vmem:[%s729 + $0xc] sm:$0xf]
      %v734 = vld [vmem:[%s729 + $0x10] sm:$0xf]
      %v735 = vld [vmem:[%s729 + $0x14] sm:$0xf]
      %v736 = vld [vmem:[%s729 + $0x18] sm:$0xf]
      %v737 = vld [vmem:[%s729 + $0x1c] sm:$0xf]
      %v738 = vld [vmem:[%s729 + $0x20] sm:$0xf]
      %v739 = vld [vmem:[%s729 + $0x24] sm:$0xf]
      %v740 = vld [vmem:[%s729 + $0x28] sm:$0xf]
      %v741 = vld [vmem:[%s729 + $0x2c] sm:$0xf]
      %v742 = vld [vmem:[%s729 + $0x30] sm:$0xf]
      %v743 = vld [vmem:[%s729 + $0x34] sm:$0xf]
      %v744 = vld [vmem:[%s729 + $0x38] sm:$0xf]
      %v745 = vld [vmem:[%s729 + $0x3c] sm:$0xf]
      %v750 = vunpack.c.l.b16 %v725
      %v751 = vunpack.c.l.b16 %v726
      %v752 = vunpack.c.l.b16 %v727
      %v753 = vunpack.c.l.b16 %v728
      %v754 = vpack.c.b16 %v751, %v750
      %v755 = vpack.c.b16 %v753, %v752
      %v774 = vunpack.c.l.b16 %v730
      %v775 = vunpack.c.l.b16 %v731
      %v776 = vunpack.c.l.b16 %v732
      %v777 = vunpack.c.l.b16 %v733
      %v778 = vunpack.c.l.b16 %v734
      %v779 = vunpack.c.l.b16 %v735
      %v780 = vunpack.c.l.b16 %v736
      %v781 = vunpack.c.l.b16 %v737
      %v782 = vunpack.c.l.b16 %v738
      %v783 = vunpack.c.l.b16 %v739
      %v784 = vunpack.c.l.b16 %v740
      %v785 = vunpack.c.l.b16 %v741
      %v786 = vunpack.c.l.b16 %v742
      %v787 = vunpack.c.l.b16 %v743
      %v788 = vunpack.c.l.b16 %v744
      %v789 = vunpack.c.l.b16 %v745
      %v790 = vpack.c.b16 %v775, %v774
      %v791 = vpack.c.b16 %v777, %v776
      %v792 = vpack.c.b16 %v779, %v778
      %v793 = vpack.c.b16 %v781, %v780
      %v794 = vpack.c.b16 %v783, %v782
      %v795 = vpack.c.b16 %v785, %v784
      %v796 = vpack.c.b16 %v787, %v786
      %v797 = vpack.c.b16 %v789, %v788
      %806 = vmatpush.bf16.msra.mxu0 %v797
      %807 = vmatpush.bf16.msra.mxu0 %v796
      %808 = vmatpush.bf16.msra.mxu0 %v795
      %809 = vmatpush.bf16.msra.mxu0 %v794
      %810 = vmatpush.bf16.msra.mxu0 %v793
      %811 = vmatpush.bf16.msra.mxu0 %v792
      %812 = vmatpush.bf16.msra.mxu0 %v791
      %813 = vmatpush.bf16.msra.mxu0 %v790
      %814 = vmatmul.bf16.gmra.mxu0 %v754
      %v815 = vpop.f32.mrf.mxu0
      %v816 = vadd.f32 0.0, %v815
      %v817 = vpop.f32.mrf.mxu0
      %v818 = vadd.f32 0.0, %v817
      %819 = vmatmul.bf16.gmra.mxu0 %v755
      %v820 = vpop.f32.mrf.mxu0
      %v821 = vadd.f32 0.0, %v820
      %v822 = vpop.f32.mrf.mxu0
      %v823 = vadd.f32 0.0, %v822
      %824 = vdwg.mxu0
      %v825 = vadd.f32 %v718, %v816
      %v826 = vadd.f32 %v719, %v818
      %v827 = vadd.f32 %v720, %v821
      %v828 = vadd.f32 %v721, %v823
      %s829 = sadd.s32 %s354, 54
      %s830 = smul.addr %s829, 4
      %s831 = scalar_lea.vmem %s296, %s830
      %v832 = vld [vmem:[%s831] sm:$0xf]
      %v833 = vld [vmem:[%s831 + $0x8] sm:$0xf]
      %v834 = vld [vmem:[%s831 + $0x10] sm:$0xf]
      %v835 = vld [vmem:[%s831 + $0x18] sm:$0xf]
      %s836 = scalar_lea.vmem %s1, 256
      %v837 = vld [vmem:[%s836] sm:$0xf]
      %v838 = vld [vmem:[%s836 + $0x4] sm:$0xf]
      %v839 = vld [vmem:[%s836 + $0x8] sm:$0xf]
      %v840 = vld [vmem:[%s836 + $0xc] sm:$0xf]
      %v841 = vld [vmem:[%s836 + $0x10] sm:$0xf]
      %v842 = vld [vmem:[%s836 + $0x14] sm:$0xf]
      %v843 = vld [vmem:[%s836 + $0x18] sm:$0xf]
      %v844 = vld [vmem:[%s836 + $0x1c] sm:$0xf]
      %v845 = vld [vmem:[%s836 + $0x20] sm:$0xf]
      %v846 = vld [vmem:[%s836 + $0x24] sm:$0xf]
      %v847 = vld [vmem:[%s836 + $0x28] sm:$0xf]
      %v848 = vld [vmem:[%s836 + $0x2c] sm:$0xf]
      %v849 = vld [vmem:[%s836 + $0x30] sm:$0xf]
      %v850 = vld [vmem:[%s836 + $0x34] sm:$0xf]
      %v851 = vld [vmem:[%s836 + $0x38] sm:$0xf]
      %v852 = vld [vmem:[%s836 + $0x3c] sm:$0xf]
      %v857 = vunpack.c.l.b16 %v832
      %v858 = vunpack.c.l.b16 %v833
      %v859 = vunpack.c.l.b16 %v834
      %v860 = vunpack.c.l.b16 %v835
      %v861 = vpack.c.b16 %v858, %v857
      %v862 = vpack.c.b16 %v860, %v859
      %v881 = vunpack.c.l.b16 %v837
      %v882 = vunpack.c.l.b16 %v838
      %v883 = vunpack.c.l.b16 %v839
      %v884 = vunpack.c.l.b16 %v840
      %v885 = vunpack.c.l.b16 %v841
      %v886 = vunpack.c.l.b16 %v842
      %v887 = vunpack.c.l.b16 %v843
      %v888 = vunpack.c.l.b16 %v844
      %v889 = vunpack.c.l.b16 %v845
      %v890 = vunpack.c.l.b16 %v846
      %v891 = vunpack.c.l.b16 %v847
      %v892 = vunpack.c.l.b16 %v848
      %v893 = vunpack.c.l.b16 %v849
      %v894 = vunpack.c.l.b16 %v850
      %v895 = vunpack.c.l.b16 %v851
      %v896 = vunpack.c.l.b16 %v852
      %v897 = vpack.c.b16 %v882, %v881
      %v898 = vpack.c.b16 %v884, %v883
      %v899 = vpack.c.b16 %v886, %v885
      %v900 = vpack.c.b16 %v888, %v887
      %v901 = vpack.c.b16 %v890, %v889
      %v902 = vpack.c.b16 %v892, %v891
      %v903 = vpack.c.b16 %v894, %v893
      %v904 = vpack.c.b16 %v896, %v895
      %913 = vmatpush.bf16.msra.mxu0 %v904
      %914 = vmatpush.bf16.msra.mxu0 %v903
      %915 = vmatpush.bf16.msra.mxu0 %v902
      %916 = vmatpush.bf16.msra.mxu0 %v901
      %917 = vmatpush.bf16.msra.mxu0 %v900
      %918 = vmatpush.bf16.msra.mxu0 %v899
      %919 = vmatpush.bf16.msra.mxu0 %v898
      %920 = vmatpush.bf16.msra.mxu0 %v897
      %921 = vmatmul.bf16.gmra.mxu0 %v861
      %v922 = vpop.f32.mrf.mxu0
      %v923 = vadd.f32 0.0, %v922
      %v924 = vpop.f32.mrf.mxu0
      %v925 = vadd.f32 0.0, %v924
      %926 = vmatmul.bf16.gmra.mxu0 %v862
      %v927 = vpop.f32.mrf.mxu0
      %v928 = vadd.f32 0.0, %v927
      %v929 = vpop.f32.mrf.mxu0
      %v930 = vadd.f32 0.0, %v929
      %931 = vdwg.mxu0
      %v932 = vadd.f32 %v825, %v923
      %v933 = vadd.f32 %v826, %v925
      %v934 = vadd.f32 %v827, %v928
      %v935 = vadd.f32 %v828, %v930
      %v936 = vld [vmem:[%s724] sm:$0xf]
      %v937 = vld [vmem:[%s724 + $0x4] sm:$0x1]
      %v938 = vld [vmem:[%s724 + $0x8] sm:$0xf]
      %v939 = vld [vmem:[%s724 + $0xc] sm:$0x1]
      %v940 = vld [vmem:[%s724 + $0x10] sm:$0xf]
      %v941 = vld [vmem:[%s724 + $0x14] sm:$0x1]
      %v942 = vld [vmem:[%s724 + $0x18] sm:$0xf]
      %v943 = vld [vmem:[%s724 + $0x1c] sm:$0x1]
      %v945 = vshrl.u32 %v936, 16
      %v947 = vrot.slane %v945, 4
      %v948 = vshll.u32 %v936, 16
      %v950 = vrot.slane %v948, 5
      %v951 = vor.u32 %v947, %v950
      %v952 = vrot.slane %v951, 4
      %v954 = vshll.u32 %v937, 16
      %v956 = vrot.slane %v954, 5
      %v957 = vsel %vm569, %v952, %v956
      %v959 = vshrl.u32 %v938, 16
      %v961 = vrot.slane %v959, 4
      %v962 = vshll.u32 %v938, 16
      %v964 = vrot.slane %v962, 5
      %v965 = vor.u32 %v961, %v964
      %v966 = vrot.slane %v965, 4
      %v968 = vshll.u32 %v939, 16
      %v970 = vrot.slane %v968, 5
      %v971 = vsel %vm569, %v966, %v970
      %v973 = vshrl.u32 %v940, 16
      %v975 = vrot.slane %v973, 4
      %v976 = vshll.u32 %v940, 16
      %v978 = vrot.slane %v976, 5
      %v979 = vor.u32 %v975, %v978
      %v980 = vrot.slane %v979, 4
      %v982 = vshll.u32 %v941, 16
      %v984 = vrot.slane %v982, 5
      %v985 = vsel %vm569, %v980, %v984
      %v987 = vshrl.u32 %v942, 16
      %v989 = vrot.slane %v987, 4
      %v990 = vshll.u32 %v942, 16
      %v992 = vrot.slane %v990, 5
      %v993 = vor.u32 %v989, %v992
      %v994 = vrot.slane %v993, 4
      %v996 = vshll.u32 %v943, 16
      %v998 = vrot.slane %v996, 5
      %v999 = vsel %vm569, %v994, %v998
      %s1000 = scalar_lea.vmem %s1, 320
      %v1001 = vld [vmem:[%s1000] sm:$0xf]
      %v1002 = vld [vmem:[%s1000 + $0x4] sm:$0xf]
      %v1003 = vld [vmem:[%s1000 + $0x8] sm:$0xf]
      %v1004 = vld [vmem:[%s1000 + $0xc] sm:$0xf]
      %v1005 = vld [vmem:[%s1000 + $0x10] sm:$0xf]
      %v1006 = vld [vmem:[%s1000 + $0x14] sm:$0xf]
      %v1007 = vld [vmem:[%s1000 + $0x18] sm:$0xf]
      %v1008 = vld [vmem:[%s1000 + $0x1c] sm:$0xf]
      %v1009 = vld [vmem:[%s1000 + $0x20] sm:$0xf]
      %v1010 = vld [vmem:[%s1000 + $0x24] sm:$0xf]
      %v1011 = vld [vmem:[%s1000 + $0x28] sm:$0xf]
      %v1012 = vld [vmem:[%s1000 + $0x2c] sm:$0xf]
      %v1013 = vld [vmem:[%s1000 + $0x30] sm:$0xf]
      %v1014 = vld [vmem:[%s1000 + $0x34] sm:$0xf]
      %v1015 = vld [vmem:[%s1000 + $0x38] sm:$0xf]
      %v1016 = vld [vmem:[%s1000 + $0x3c] sm:$0xf]
      %v1017 = vunpack.c.l.b16 %v957
      %v1018 = vunpack.c.l.b16 %v971
      %v1019 = vunpack.c.l.b16 %v985
      %v1020 = vunpack.c.l.b16 %v999
      %v1021 = vpack.c.b16 %v1018, %v1017
      %v1022 = vpack.c.b16 %v1020, %v1019
      %v1041 = vunpack.c.l.b16 %v1001
      %v1042 = vunpack.c.l.b16 %v1002
      %v1043 = vunpack.c.l.b16 %v1003
      %v1044 = vunpack.c.l.b16 %v1004
      %v1045 = vunpack.c.l.b16 %v1005
      %v1046 = vunpack.c.l.b16 %v1006
      %v1047 = vunpack.c.l.b16 %v1007
      %v1048 = vunpack.c.l.b16 %v1008
      %v1049 = vunpack.c.l.b16 %v1009
      %v1050 = vunpack.c.l.b16 %v1010
      %v1051 = vunpack.c.l.b16 %v1011
      %v1052 = vunpack.c.l.b16 %v1012
      %v1053 = vunpack.c.l.b16 %v1013
      %v1054 = vunpack.c.l.b16 %v1014
      %v1055 = vunpack.c.l.b16 %v1015
      %v1056 = vunpack.c.l.b16 %v1016
      %v1057 = vpack.c.b16 %v1042, %v1041
      %v1058 = vpack.c.b16 %v1044, %v1043
      %v1059 = vpack.c.b16 %v1046, %v1045
      %v1060 = vpack.c.b16 %v1048, %v1047
      %v1061 = vpack.c.b16 %v1050, %v1049
      %v1062 = vpack.c.b16 %v1052, %v1051
      %v1063 = vpack.c.b16 %v1054, %v1053
      %v1064 = vpack.c.b16 %v1056, %v1055
      %1073 = vmatpush.bf16.msra.mxu0 %v1064
      %1074 = vmatpush.bf16.msra.mxu0 %v1063
      %1075 = vmatpush.bf16.msra.mxu0 %v1062
      %1076 = vmatpush.bf16.msra.mxu0 %v1061
      %1077 = vmatpush.bf16.msra.mxu0 %v1060
      %1078 = vmatpush.bf16.msra.mxu0 %v1059
      %1079 = vmatpush.bf16.msra.mxu0 %v1058
      %1080 = vmatpush.bf16.msra.mxu0 %v1057
      %1081 = vmatmul.bf16.gmra.mxu0 %v1021
      %v1082 = vpop.f32.mrf.mxu0
      %v1083 = vadd.f32 0.0, %v1082
      %v1084 = vpop.f32.mrf.mxu0
      %v1085 = vadd.f32 0.0, %v1084
      %1086 = vmatmul.bf16.gmra.mxu0 %v1022
      %v1087 = vpop.f32.mrf.mxu0
      %v1088 = vadd.f32 0.0, %v1087
      %v1089 = vpop.f32.mrf.mxu0
      %v1090 = vadd.f32 0.0, %v1089
      %1091 = vdwg.mxu0
      %v1092 = vadd.f32 %v932, %v1083
      %v1093 = vadd.f32 %v933, %v1085
      %v1094 = vadd.f32 %v934, %v1088
      %v1095 = vadd.f32 %v935, %v1090
      %s1096 = sadd.s32 %s329, 1
      %s1097 = smul.u32 %s1096, 2
      %s1098 = smul.addr %s1097, 4
      %s1099 = scalar_lea.vmem %s296, %s1098
      %v1100 = vld [vmem:[%s1099] sm:$0xf]
      %v1101 = vld [vmem:[%s1099 + $0x8] sm:$0xf]
      %v1102 = vld [vmem:[%s1099 + $0x10] sm:$0xf]
      %v1103 = vld [vmem:[%s1099 + $0x18] sm:$0xf]
      %s1104 = scalar_lea.vmem %s1, 384
      %v1105 = vld [vmem:[%s1104] sm:$0xf]
      %v1106 = vld [vmem:[%s1104 + $0x4] sm:$0xf]
      %v1107 = vld [vmem:[%s1104 + $0x8] sm:$0xf]
      %v1108 = vld [vmem:[%s1104 + $0xc] sm:$0xf]
      %v1109 = vld [vmem:[%s1104 + $0x10] sm:$0xf]
      %v1110 = vld [vmem:[%s1104 + $0x14] sm:$0xf]
      %v1111 = vld [vmem:[%s1104 + $0x18] sm:$0xf]
      %v1112 = vld [vmem:[%s1104 + $0x1c] sm:$0xf]
      %v1113 = vld [vmem:[%s1104 + $0x20] sm:$0xf]
      %v1114 = vld [vmem:[%s1104 + $0x24] sm:$0xf]
      %v1115 = vld [vmem:[%s1104 + $0x28] sm:$0xf]
      %v1116 = vld [vmem:[%s1104 + $0x2c] sm:$0xf]
      %v1117 = vld [vmem:[%s1104 + $0x30] sm:$0xf]
      %v1118 = vld [vmem:[%s1104 + $0x34] sm:$0xf]
      %v1119 = vld [vmem:[%s1104 + $0x38] sm:$0xf]
      %v1120 = vld [vmem:[%s1104 + $0x3c] sm:$0xf]
      %v1125 = vunpack.c.l.b16 %v1100
      %v1126 = vunpack.c.l.b16 %v1101
      %v1127 = vunpack.c.l.b16 %v1102
      %v1128 = vunpack.c.l.b16 %v1103
      %v1129 = vpack.c.b16 %v1126, %v1125
      %v1130 = vpack.c.b16 %v1128, %v1127
      %v1149 = vunpack.c.l.b16 %v1105
      %v1150 = vunpack.c.l.b16 %v1106
      %v1151 = vunpack.c.l.b16 %v1107
      %v1152 = vunpack.c.l.b16 %v1108
      %v1153 = vunpack.c.l.b16 %v1109
      %v1154 = vunpack.c.l.b16 %v1110
      %v1155 = vunpack.c.l.b16 %v1111
      %v1156 = vunpack.c.l.b16 %v1112
      %v1157 = vunpack.c.l.b16 %v1113
      %v1158 = vunpack.c.l.b16 %v1114
      %v1159 = vunpack.c.l.b16 %v1115
      %v1160 = vunpack.c.l.b16 %v1116
      %v1161 = vunpack.c.l.b16 %v1117
      %v1162 = vunpack.c.l.b16 %v1118
      %v1163 = vunpack.c.l.b16 %v1119
      %v1164 = vunpack.c.l.b16 %v1120
      %v1165 = vpack.c.b16 %v1150, %v1149
      %v1166 = vpack.c.b16 %v1152, %v1151
      %v1167 = vpack.c.b16 %v1154, %v1153
      %v1168 = vpack.c.b16 %v1156, %v1155
      %v1169 = vpack.c.b16 %v1158, %v1157
      %v1170 = vpack.c.b16 %v1160, %v1159
      %v1171 = vpack.c.b16 %v1162, %v1161
      %v1172 = vpack.c.b16 %v1164, %v1163
      %1181 = vmatpush.bf16.msra.mxu0 %v1172
      %1182 = vmatpush.bf16.msra.mxu0 %v1171
      %1183 = vmatpush.bf16.msra.mxu0 %v1170
      %1184 = vmatpush.bf16.msra.mxu0 %v1169
      %1185 = vmatpush.bf16.msra.mxu0 %v1168
      %1186 = vmatpush.bf16.msra.mxu0 %v1167
      %1187 = vmatpush.bf16.msra.mxu0 %v1166
      %1188 = vmatpush.bf16.msra.mxu0 %v1165
      %1189 = vmatmul.bf16.gmra.mxu0 %v1129
      %v1190 = vpop.f32.mrf.mxu0
      %v1191 = vadd.f32 0.0, %v1190
      %v1192 = vpop.f32.mrf.mxu0
      %v1193 = vadd.f32 0.0, %v1192
      %1194 = vmatmul.bf16.gmra.mxu0 %v1130
      %v1195 = vpop.f32.mrf.mxu0
      %v1196 = vadd.f32 0.0, %v1195
      %v1197 = vpop.f32.mrf.mxu0
      %v1198 = vadd.f32 0.0, %v1197
      %1199 = vdwg.mxu0
      %v1200 = vadd.f32 %v1092, %v1191
      %v1201 = vadd.f32 %v1093, %v1193
      %v1202 = vadd.f32 %v1094, %v1196
      %v1203 = vadd.f32 %v1095, %v1198
      %s1204 = sadd.s32 %s1097, 18
      %s1205 = smul.addr %s1204, 4
      %s1206 = scalar_lea.vmem %s296, %s1205
      %v1207 = vld [vmem:[%s1206] sm:$0xf]
      %v1208 = vld [vmem:[%s1206 + $0x8] sm:$0xf]
      %v1209 = vld [vmem:[%s1206 + $0x10] sm:$0xf]
      %v1210 = vld [vmem:[%s1206 + $0x18] sm:$0xf]
      %s1211 = scalar_lea.vmem %s1, 448
      %v1212 = vld [vmem:[%s1211] sm:$0xf]
      %v1213 = vld [vmem:[%s1211 + $0x4] sm:$0xf]
      %v1214 = vld [vmem:[%s1211 + $0x8] sm:$0xf]
      %v1215 = vld [vmem:[%s1211 + $0xc] sm:$0xf]
      %v1216 = vld [vmem:[%s1211 + $0x10] sm:$0xf]
      %v1217 = vld [vmem:[%s1211 + $0x14] sm:$0xf]
      %v1218 = vld [vmem:[%s1211 + $0x18] sm:$0xf]
      %v1219 = vld [vmem:[%s1211 + $0x1c] sm:$0xf]
      %v1220 = vld [vmem:[%s1211 + $0x20] sm:$0xf]
      %v1221 = vld [vmem:[%s1211 + $0x24] sm:$0xf]
      %v1222 = vld [vmem:[%s1211 + $0x28] sm:$0xf]
      %v1223 = vld [vmem:[%s1211 + $0x2c] sm:$0xf]
      %v1224 = vld [vmem:[%s1211 + $0x30] sm:$0xf]
      %v1225 = vld [vmem:[%s1211 + $0x34] sm:$0xf]
      %v1226 = vld [vmem:[%s1211 + $0x38] sm:$0xf]
      %v1227 = vld [vmem:[%s1211 + $0x3c] sm:$0xf]
      %v1232 = vunpack.c.l.b16 %v1207
      %v1233 = vunpack.c.l.b16 %v1208
      %v1234 = vunpack.c.l.b16 %v1209
      %v1235 = vunpack.c.l.b16 %v1210
      %v1236 = vpack.c.b16 %v1233, %v1232
      %v1237 = vpack.c.b16 %v1235, %v1234
      %v1256 = vunpack.c.l.b16 %v1212
      %v1257 = vunpack.c.l.b16 %v1213
      %v1258 = vunpack.c.l.b16 %v1214
      %v1259 = vunpack.c.l.b16 %v1215
      %v1260 = vunpack.c.l.b16 %v1216
      %v1261 = vunpack.c.l.b16 %v1217
      %v1262 = vunpack.c.l.b16 %v1218
      %v1263 = vunpack.c.l.b16 %v1219
      %v1264 = vunpack.c.l.b16 %v1220
      %v1265 = vunpack.c.l.b16 %v1221
      %v1266 = vunpack.c.l.b16 %v1222
      %v1267 = vunpack.c.l.b16 %v1223
      %v1268 = vunpack.c.l.b16 %v1224
      %v1269 = vunpack.c.l.b16 %v1225
      %v1270 = vunpack.c.l.b16 %v1226
      %v1271 = vunpack.c.l.b16 %v1227
      %v1272 = vpack.c.b16 %v1257, %v1256
      %v1273 = vpack.c.b16 %v1259, %v1258
      %v1274 = vpack.c.b16 %v1261, %v1260
      %v1275 = vpack.c.b16 %v1263, %v1262
      %v1276 = vpack.c.b16 %v1265, %v1264
      %v1277 = vpack.c.b16 %v1267, %v1266
      %v1278 = vpack.c.b16 %v1269, %v1268
      %v1279 = vpack.c.b16 %v1271, %v1270
      %1288 = vmatpush.bf16.msra.mxu0 %v1279
      %1289 = vmatpush.bf16.msra.mxu0 %v1278
      %1290 = vmatpush.bf16.msra.mxu0 %v1277
      %1291 = vmatpush.bf16.msra.mxu0 %v1276
      %1292 = vmatpush.bf16.msra.mxu0 %v1275
      %1293 = vmatpush.bf16.msra.mxu0 %v1274
      %1294 = vmatpush.bf16.msra.mxu0 %v1273
      %1295 = vmatpush.bf16.msra.mxu0 %v1272
      %1296 = vmatmul.bf16.gmra.mxu0 %v1236
      %v1297 = vpop.f32.mrf.mxu0
      %v1298 = vadd.f32 0.0, %v1297
      %v1299 = vpop.f32.mrf.mxu0
      %v1300 = vadd.f32 0.0, %v1299
      %1301 = vmatmul.bf16.gmra.mxu0 %v1237
      %v1302 = vpop.f32.mrf.mxu0
      %v1303 = vadd.f32 0.0, %v1302
      %v1304 = vpop.f32.mrf.mxu0
      %v1305 = vadd.f32 0.0, %v1304
      %1306 = vdwg.mxu0
      %v1307 = vadd.f32 %v1200, %v1298
      %v1308 = vadd.f32 %v1201, %v1300
      %v1309 = vadd.f32 %v1202, %v1303
      %v1310 = vadd.f32 %v1203, %v1305
      %v1311 = vld [vmem:[%s1099] sm:$0xf]
      %v1312 = vld [vmem:[%s1099 + $0x4] sm:$0x1]
      %v1313 = vld [vmem:[%s1099 + $0x8] sm:$0xf]
      %v1314 = vld [vmem:[%s1099 + $0xc] sm:$0x1]
      %v1315 = vld [vmem:[%s1099 + $0x10] sm:$0xf]
      %v1316 = vld [vmem:[%s1099 + $0x14] sm:$0x1]
      %v1317 = vld [vmem:[%s1099 + $0x18] sm:$0xf]
      %v1318 = vld [vmem:[%s1099 + $0x1c] sm:$0x1]
      %v1320 = vshrl.u32 %v1311, 16
      %v1322 = vrot.slane %v1320, 4
      %v1323 = vshll.u32 %v1311, 16
      %v1325 = vrot.slane %v1323, 5
      %v1326 = vor.u32 %v1322, %v1325
      %v1327 = vrot.slane %v1326, 4
      %v1329 = vshll.u32 %v1312, 16
      %v1331 = vrot.slane %v1329, 5
      %v1332 = vsel %vm569, %v1327, %v1331
      %v1334 = vshrl.u32 %v1313, 16
      %v1336 = vrot.slane %v1334, 4
      %v1337 = vshll.u32 %v1313, 16
      %v1339 = vrot.slane %v1337, 5
      %v1340 = vor.u32 %v1336, %v1339
      %v1341 = vrot.slane %v1340, 4
      %v1343 = vshll.u32 %v1314, 16
      %v1345 = vrot.slane %v1343, 5
      %v1346 = vsel %vm569, %v1341, %v1345
      %v1348 = vshrl.u32 %v1315, 16
      %v1350 = vrot.slane %v1348, 4
      %v1351 = vshll.u32 %v1315, 16
      %v1353 = vrot.slane %v1351, 5
      %v1354 = vor.u32 %v1350, %v1353
      %v1355 = vrot.slane %v1354, 4
      %v1357 = vshll.u32 %v1316, 16
      %v1359 = vrot.slane %v1357, 5
      %v1360 = vsel %vm569, %v1355, %v1359
      %v1362 = vshrl.u32 %v1317, 16
      %v1364 = vrot.slane %v1362, 4
      %v1365 = vshll.u32 %v1317, 16
      %v1367 = vrot.slane %v1365, 5
      %v1368 = vor.u32 %v1364, %v1367
      %v1369 = vrot.slane %v1368, 4
      %v1371 = vshll.u32 %v1318, 16
      %v1373 = vrot.slane %v1371, 5
      %v1374 = vsel %vm569, %v1369, %v1373
      %s1375 = scalar_lea.vmem %s1, 512
      %v1376 = vld [vmem:[%s1375] sm:$0xf]
      %v1377 = vld [vmem:[%s1375 + $0x4] sm:$0xf]
      %v1378 = vld [vmem:[%s1375 + $0x8] sm:$0xf]
      %v1379 = vld [vmem:[%s1375 + $0xc] sm:$0xf]
      %v1380 = vld [vmem:[%s1375 + $0x10] sm:$0xf]
      %v1381 = vld [vmem:[%s1375 + $0x14] sm:$0xf]
      %v1382 = vld [vmem:[%s1375 + $0x18] sm:$0xf]
      %v1383 = vld [vmem:[%s1375 + $0x1c] sm:$0xf]
      %v1384 = vld [vmem:[%s1375 + $0x20] sm:$0xf]
      %v1385 = vld [vmem:[%s1375 + $0x24] sm:$0xf]
      %v1386 = vld [vmem:[%s1375 + $0x28] sm:$0xf]
      %v1387 = vld [vmem:[%s1375 + $0x2c] sm:$0xf]
      %v1388 = vld [vmem:[%s1375 + $0x30] sm:$0xf]
      %v1389 = vld [vmem:[%s1375 + $0x34] sm:$0xf]
      %v1390 = vld [vmem:[%s1375 + $0x38] sm:$0xf]
      %v1391 = vld [vmem:[%s1375 + $0x3c] sm:$0xf]
      %v1392 = vunpack.c.l.b16 %v1332
      %v1393 = vunpack.c.l.b16 %v1346
      %v1394 = vunpack.c.l.b16 %v1360
      %v1395 = vunpack.c.l.b16 %v1374
      %v1396 = vpack.c.b16 %v1393, %v1392
      %v1397 = vpack.c.b16 %v1395, %v1394
      %v1416 = vunpack.c.l.b16 %v1376
      %v1417 = vunpack.c.l.b16 %v1377
      %v1418 = vunpack.c.l.b16 %v1378
      %v1419 = vunpack.c.l.b16 %v1379
      %v1420 = vunpack.c.l.b16 %v1380
      %v1421 = vunpack.c.l.b16 %v1381
      %v1422 = vunpack.c.l.b16 %v1382
      %v1423 = vunpack.c.l.b16 %v1383
      %v1424 = vunpack.c.l.b16 %v1384
      %v1425 = vunpack.c.l.b16 %v1385
      %v1426 = vunpack.c.l.b16 %v1386
      %v1427 = vunpack.c.l.b16 %v1387
      %v1428 = vunpack.c.l.b16 %v1388
      %v1429 = vunpack.c.l.b16 %v1389
      %v1430 = vunpack.c.l.b16 %v1390
      %v1431 = vunpack.c.l.b16 %v1391
      %v1432 = vpack.c.b16 %v1417, %v1416
      %v1433 = vpack.c.b16 %v1419, %v1418
      %v1434 = vpack.c.b16 %v1421, %v1420
      %v1435 = vpack.c.b16 %v1423, %v1422
      %v1436 = vpack.c.b16 %v1425, %v1424
      %v1437 = vpack.c.b16 %v1427, %v1426
      %v1438 = vpack.c.b16 %v1429, %v1428
      %v1439 = vpack.c.b16 %v1431, %v1430
      %1448 = vmatpush.bf16.msra.mxu0 %v1439
      %1449 = vmatpush.bf16.msra.mxu0 %v1438
      %1450 = vmatpush.bf16.msra.mxu0 %v1437
      %1451 = vmatpush.bf16.msra.mxu0 %v1436
      %1452 = vmatpush.bf16.msra.mxu0 %v1435
      %1453 = vmatpush.bf16.msra.mxu0 %v1434
      %1454 = vmatpush.bf16.msra.mxu0 %v1433
      %1455 = vmatpush.bf16.msra.mxu0 %v1432
      %1456 = vmatmul.bf16.gmra.mxu0 %v1396
      %v1457 = vpop.f32.mrf.mxu0
      %v1458 = vadd.f32 0.0, %v1457
      %v1459 = vpop.f32.mrf.mxu0
      %v1460 = vadd.f32 0.0, %v1459
      %1461 = vmatmul.bf16.gmra.mxu0 %v1397
      %v1462 = vpop.f32.mrf.mxu0
      %v1463 = vadd.f32 0.0, %v1462
      %v1464 = vpop.f32.mrf.mxu0
      %v1465 = vadd.f32 0.0, %v1464
      %1466 = vdwg.mxu0
      %v1467 = vadd.f32 %v1307, %v1458
      %v1468 = vadd.f32 %v1308, %v1460
      %v1469 = vadd.f32 %v1309, %v1463
      %v1470 = vadd.f32 %v1310, %v1465
      %v1471 = vpack.c.bf16 %v1467, %v1467
      %v1472 = vpack.c.bf16 %v1468, %v1468
      %v1473 = vpack.c.bf16 %v1469, %v1469
      %v1474 = vpack.c.bf16 %v1470, %v1470
      %v1476 = vshrl.u32 %v1471, 16
      %v1478 = vrot.slane %v1476, 7
      %v1479 = vshll.u32 %v1471, 16
      %v1481 = vor.u32 %v1478, %v1479
      %v1482 = vrot.slane %v1478, 4
      %v1484 = vshrl.u32 %v1472, 16
      %v1486 = vrot.slane %v1484, 7
      %v1487 = vshll.u32 %v1472, 16
      %v1489 = vor.u32 %v1486, %v1487
      %v1490 = vrot.slane %v1486, 4
      %v1492 = vshrl.u32 %v1473, 16
      %v1494 = vrot.slane %v1492, 7
      %v1495 = vshll.u32 %v1473, 16
      %v1497 = vor.u32 %v1494, %v1495
      %v1498 = vrot.slane %v1494, 4
      %v1500 = vshrl.u32 %v1474, 16
      %v1502 = vrot.slane %v1500, 7
      %v1503 = vshll.u32 %v1474, 16
      %v1505 = vor.u32 %v1502, %v1503
      %v1506 = vrot.slane %v1502, 4
      %s1515 = smul.addr %s1097, 4
      %s1516 = scalar_lea.vmem %s301, %s1515
      %vm1517 = vcmask 1043456
      %vm1518 = vsmask.f32 7938
      %vm1519 = vmand %vm1517, %vm1518
      %v1520 = vld [vmem:[%s1516] sm:$0xf]
      %v1521 = vsel %vm1519, %v1481, %v1520
      %1522 = vst [vmem:[%s1516] sm:$0xf] %v1521
      %vm1523 = vcmask 1040384
      %vm1524 = vsmask.f32 256
      %vm1525 = vmand %vm1523, %vm1524
      %v1526 = vld [vmem:[%s1516 + $0x4] sm:$0x1]
      %v1527 = vsel %vm1525, %v1482, %v1526
      %1528 = vst [vmem:[%s1516 + $0x4] sm:$0x1] %v1527
      %v1529 = vld [vmem:[%s1516 + $0x8] sm:$0xf]
      %v1530 = vsel %vm1519, %v1489, %v1529
      %1531 = vst [vmem:[%s1516 + $0x8] sm:$0xf] %v1530
      %v1532 = vld [vmem:[%s1516 + $0xc] sm:$0x1]
      %v1533 = vsel %vm1525, %v1490, %v1532
      %1534 = vst [vmem:[%s1516 + $0xc] sm:$0x1] %v1533
      %v1535 = vld [vmem:[%s1516 + $0x10] sm:$0xf]
      %v1536 = vsel %vm1519, %v1497, %v1535
      %1537 = vst [vmem:[%s1516 + $0x10] sm:$0xf] %v1536
      %v1538 = vld [vmem:[%s1516 + $0x14] sm:$0x1]
      %v1539 = vsel %vm1525, %v1498, %v1538
      %1540 = vst [vmem:[%s1516 + $0x14] sm:$0x1] %v1539
      %v1541 = vld [vmem:[%s1516 + $0x18] sm:$0xf]
      %v1542 = vsel %vm1519, %v1505, %v1541
      %1543 = vst [vmem:[%s1516 + $0x18] sm:$0xf] %v1542
      %v1544 = vld [vmem:[%s1516 + $0x1c] sm:$0x1]
      %v1545 = vsel %vm1525, %v1506, %v1544
      %1546 = vst [vmem:[%s1516 + $0x1c] sm:$0x1] %v1545
      %v1547 = vadd.f32 %v1467, %v1468
      %v1548 = vadd.f32 %v1547, %v1469
      %v1549 = vadd.f32 %v1548, %v1470
      %v1550 = vrot.slane %v1549, 4
      %v1551 = vadd.f32 %v1549, %v1550
      %v1552 = vrot.slane %v1551, 2
      %v1553 = vadd.f32 %v1551, %v1552
      %v1554 = vrot.slane %v1553, 1
      %v1555 = vadd.f32 %v1553, %v1554
      %v1556 = vadd.f32 %v1555, 0.0
      %v1557 = vmul.f32 %v1467, %v1467
      %v1558 = vmul.f32 %v1468, %v1468
      %v1559 = vmul.f32 %v1469, %v1469
      %v1560 = vmul.f32 %v1470, %v1470
      %v1561 = vadd.f32 %v1557, %v1558
      %v1562 = vadd.f32 %v1561, %v1559
      %v1563 = vadd.f32 %v1562, %v1560
      %v1564 = vrot.slane %v1563, 4
      %v1565 = vadd.f32 %v1563, %v1564
      %v1566 = vrot.slane %v1565, 2
      %v1567 = vadd.f32 %v1565, %v1566
      %v1568 = vrot.slane %v1567, 1
      %v1569 = vadd.f32 %v1567, %v1568
      %v1570 = vadd.f32 %v1569, 0.0
      %vm1571 = vcmask 1040384
      %v1572 = vsel %vm1571, %v1556, %v1570
      %1573 = vst [vmem:[%s307] sm:$0x3] %v1572
      %v1574 = vld [vmem:[%s831] sm:$0xf]
      %v1575 = vld [vmem:[%s831 + $0x8] sm:$0xf]
      %v1576 = vld [vmem:[%s831 + $0x10] sm:$0xf]
      %v1577 = vld [vmem:[%s831 + $0x18] sm:$0xf]
      %v1578 = vld [vmem:[%s2] sm:$0xf]
      %v1579 = vld [vmem:[%s2 + $0x4] sm:$0xf]
      %v1580 = vld [vmem:[%s2 + $0x8] sm:$0xf]
      %v1581 = vld [vmem:[%s2 + $0xc] sm:$0xf]
      %v1582 = vld [vmem:[%s2 + $0x10] sm:$0xf]
      %v1583 = vld [vmem:[%s2 + $0x14] sm:$0xf]
      %v1584 = vld [vmem:[%s2 + $0x18] sm:$0xf]
      %v1585 = vld [vmem:[%s2 + $0x1c] sm:$0xf]
      %v1586 = vld [vmem:[%s2 + $0x20] sm:$0xf]
      %v1587 = vld [vmem:[%s2 + $0x24] sm:$0xf]
      %v1588 = vld [vmem:[%s2 + $0x28] sm:$0xf]
      %v1589 = vld [vmem:[%s2 + $0x2c] sm:$0xf]
      %v1590 = vld [vmem:[%s2 + $0x30] sm:$0xf]
      %v1591 = vld [vmem:[%s2 + $0x34] sm:$0xf]
      %v1592 = vld [vmem:[%s2 + $0x38] sm:$0xf]
      %v1593 = vld [vmem:[%s2 + $0x3c] sm:$0xf]
      %v1598 = vunpack.c.l.b16 %v1574
      %v1599 = vunpack.c.l.b16 %v1575
      %v1600 = vunpack.c.l.b16 %v1576
      %v1601 = vunpack.c.l.b16 %v1577
      %v1602 = vpack.c.b16 %v1599, %v1598
      %v1603 = vpack.c.b16 %v1601, %v1600
      %v1622 = vunpack.c.l.b16 %v1578
      %v1623 = vunpack.c.l.b16 %v1579
      %v1624 = vunpack.c.l.b16 %v1580
      %v1625 = vunpack.c.l.b16 %v1581
      %v1626 = vunpack.c.l.b16 %v1582
      %v1627 = vunpack.c.l.b16 %v1583
      %v1628 = vunpack.c.l.b16 %v1584
      %v1629 = vunpack.c.l.b16 %v1585
      %v1630 = vunpack.c.l.b16 %v1586
      %v1631 = vunpack.c.l.b16 %v1587
      %v1632 = vunpack.c.l.b16 %v1588
      %v1633 = vunpack.c.l.b16 %v1589
      %v1634 = vunpack.c.l.b16 %v1590
      %v1635 = vunpack.c.l.b16 %v1591
      %v1636 = vunpack.c.l.b16 %v1592
      %v1637 = vunpack.c.l.b16 %v1593
      %v1638 = vpack.c.b16 %v1623, %v1622
      %v1639 = vpack.c.b16 %v1625, %v1624
      %v1640 = vpack.c.b16 %v1627, %v1626
      %v1641 = vpack.c.b16 %v1629, %v1628
      %v1642 = vpack.c.b16 %v1631, %v1630
      %v1643 = vpack.c.b16 %v1633, %v1632
      %v1644 = vpack.c.b16 %v1635, %v1634
      %v1645 = vpack.c.b16 %v1637, %v1636
      %1654 = vmatpush.bf16.msra.mxu0 %v1645
      %1655 = vmatpush.bf16.msra.mxu0 %v1644
      %1656 = vmatpush.bf16.msra.mxu0 %v1643
      %1657 = vmatpush.bf16.msra.mxu0 %v1642
      %1658 = vmatpush.bf16.msra.mxu0 %v1641
      %1659 = vmatpush.bf16.msra.mxu0 %v1640
      %1660 = vmatpush.bf16.msra.mxu0 %v1639
      %1661 = vmatpush.bf16.msra.mxu0 %v1638
      %1662 = vmatmul.bf16.gmra.mxu0 %v1602
      %v1663 = vpop.f32.mrf.mxu0
      %v1664 = vadd.f32 0.0, %v1663
      %v1665 = vpop.f32.mrf.mxu0
      %v1666 = vadd.f32 0.0, %v1665
      %1667 = vmatmul.bf16.gmra.mxu0 %v1603
      %v1668 = vpop.f32.mrf.mxu0
      %v1669 = vadd.f32 0.0, %v1668
      %v1670 = vpop.f32.mrf.mxu0
      %v1671 = vadd.f32 0.0, %v1670
      %1672 = vdwg.mxu0
      %v1673 = vpack.c.bf16 %v1664, %v1664
      %v1674 = vpack.c.bf16 %v1666, %v1666
      %v1675 = vpack.c.bf16 %v1669, %v1669
      %v1676 = vpack.c.bf16 %v1671, %v1671
      %1677 = vst [vmem:[%s318] sm:$0xf] %v1673
      %1678 = vst [vmem:[%s318 + $0x4] sm:$0xf] %v1674
      %1679 = vst [vmem:[%s318 + $0x8] sm:$0xf] %v1675
      %1680 = vst [vmem:[%s318 + $0xc] sm:$0xf] %v1676
      %v1681 = vadd.f32 %v1664, %v1666
      %v1682 = vadd.f32 %v1681, %v1669
      %v1683 = vadd.f32 %v1682, %v1671
      %v1684 = vrot.slane %v1683, 4
      %v1685 = vadd.f32 %v1683, %v1684
      %v1686 = vrot.slane %v1685, 2
      %v1687 = vadd.f32 %v1685, %v1686
      %v1688 = vrot.slane %v1687, 1
      %v1689 = vadd.f32 %v1687, %v1688
      %v1690 = vadd.f32 %v1689, 0.0
      %v1691 = vmul.f32 %v1664, %v1664
      %v1692 = vmul.f32 %v1666, %v1666
      %v1693 = vmul.f32 %v1669, %v1669
      %v1694 = vmul.f32 %v1671, %v1671
      %v1695 = vadd.f32 %v1691, %v1692
      %v1696 = vadd.f32 %v1695, %v1693
      %v1697 = vadd.f32 %v1696, %v1694
      %v1698 = vrot.slane %v1697, 4
      %v1699 = vadd.f32 %v1697, %v1698
      %v1700 = vrot.slane %v1699, 2
      %v1701 = vadd.f32 %v1699, %v1700
      %v1702 = vrot.slane %v1701, 1
      %v1703 = vadd.f32 %v1701, %v1702
      %v1704 = vadd.f32 %v1703, 0.0
      %v1705 = vsel %vm1571, %v1690, %v1704
      %1706 = vst [vmem:[%s325] sm:$0x3] %v1705
      %p1707 = scmp.lt.s32.totalorder %s22, 1
      %s1708 = scalar_select %p1707, %s22, 1
      %s1709 = smul.addr %s1708, 20
      %s1710 = smul.addr %s1709, 4
      %s1711 = scalar_lea.vmem %s3, %s1710
      %s1712 = smul.u32 %s22, 2
      %s1713 = sadd.s32 %s1712, %s23
      %p1714 = scmp.lt.s32.totalorder %s1713, 3
      %s1715 = scalar_select %p1714, %s1713, 3
      %s1716 = smul.addr %s1715, 2
      %s1717 = scalar_lea.vmem %s4, %s1716
      %s1718 = smul.u32 4, %s23
      %p1719 = scmp.lt.s32.totalorder %s22, 1
      %s1720 = scalar_select %p1719, %s22, 1
      %p1721 = scmp.lt.s32.totalorder %s1718, 7
      %s1722 = scalar_select %p1721, %s1718, 7
      %s1723 = smul.addr %s1720, 8
      %s1724 = sadd.s32 %s1722, %s1723
      %s1725 = smul.addr %s1724, 4
      %s1726 = scalar_lea.vmem %s5, %s1725
      %s1727 = smul.u32 %s22, 2
      %s1728 = sadd.s32 %s1727, %s23
      %p1729 = scmp.lt.s32.totalorder %s1728, 3
      %s1730 = scalar_select %p1729, %s1728, 3
      %s1731 = smul.addr %s1730, 2
      %s1732 = scalar_lea.vmem %s6, %s1731
      // Predicated region
      $region37: #{basic_block_forward.3} parent=31 // pred_check
        %p1733 = pneg %p116
      $region38: #{basic_block_forward.3} parent=31 // pred_check_branch
        %1735 = sbr.rel (%p1733) target = $region40
      $region39: #{basic_block_forward.3} parent=31 // pred_region
        _
      $region40: #{basic_block_forward.3} parent=31 // pred_fallthru
        _
      // Predicated region
      $region41: #{basic_block_forward.3} parent=31 // pred_check
        %p1736 = pneg %p146
      $region42: #{basic_block_forward.3} parent=31 // pred_check_branch
        %1738 = sbr.rel (%p1736) target = $region44
      $region43: #{basic_block_forward.3} parent=31 // pred_region
        %s1739 = smul.u32 %s22, 2
        %s1740 = sadd.s32 %s1739, %s23
      $region44: #{basic_block_forward.3} parent=31 // pred_fallthru
        _
      // Predicated region
      $region45: #{basic_block_forward.3} parent=31 // pred_check
        %p1741 = pneg %p174
      $region46: #{basic_block_forward.3} parent=31 // pred_check_branch
        %1743 = sbr.rel (%p1741) target = $region48
      $region47: #{basic_block_forward.3} parent=31 // pred_region
        %s1744 = smul.u32 4, %s23
      $region48: #{basic_block_forward.3} parent=31 // pred_fallthru
        _
      // Predicated region
      $region49: #{basic_block_forward.3} parent=31 // pred_check
        %p1745 = pneg %p204
      $region50: #{basic_block_forward.3} parent=31 // pred_check_branch
        %1747 = sbr.rel (%p1745) target = $region52
      $region51: #{basic_block_forward.3} parent=31 // pred_region
        %s1748 = smul.u32 %s22, 2
        %s1749 = sadd.s32 %s1748, %s23
      $region52: #{basic_block_forward.3} parent=31 // pred_fallthru
        _
    $region32: #{basic_block_forward.3} parent=5 // pred_fallthru
      _
    %p1750 = scmp.le.s32.totalorder 2, %s13
    // Predicated region
    $region53: #{basic_block_forward.3} parent=5 // pred_check
      %p1751 = pneg %p1750
    $region54: #{basic_block_forward.3} parent=5 // pred_check_branch
      %1753 = sbr.rel (%p1751) target = $region56
    $region55: #{basic_block_forward.3} parent=5 // pred_region
      %s1754 = ssub.s32 %s13, 2
      // Predicated region
      $region57: #{basic_block_forward.3} parent=55 // pred_check
        %p1755 = pneg %p122
      $region58: #{basic_block_forward.3} parent=55 // pred_check_branch
        %1757 = sbr.rel (%p1755) target = $region60
      $region59: #{basic_block_forward.3} parent=55 // pred_region
        %p1758 = scmp.lt.s32.totalorder %s24, 1
        %s1759 = scalar_select %p1758, %s24, 1
        %s1760 = smul.addr %s1759, 20
        %s1761 = smul.addr %s1760, 4
        %s1762 = scalar_lea.vmem %s3, %s1761
      $region60: #{basic_block_forward.3} parent=55 // pred_fallthru
        _
      // Predicated region
      $region61: #{basic_block_forward.3} parent=55 // pred_check
        %p1763 = pneg %p152
      $region62: #{basic_block_forward.3} parent=55 // pred_check_branch
        %1765 = sbr.rel (%p1763) target = $region64
      $region63: #{basic_block_forward.3} parent=55 // pred_region
        %s1766 = smul.u32 %s24, 2
        %s1767 = sadd.s32 %s1766, %s25
        %p1768 = scmp.lt.s32.totalorder %s1767, 3
        %s1769 = scalar_select %p1768, %s1767, 3
        %s1770 = smul.addr %s1769, 2
        %s1771 = scalar_lea.vmem %s4, %s1770
      $region64: #{basic_block_forward.3} parent=55 // pred_fallthru
        _
      // Predicated region
      $region65: #{basic_block_forward.3} parent=55 // pred_check
        %p1772 = pneg %p180
      $region66: #{basic_block_forward.3} parent=55 // pred_check_branch
        %1774 = sbr.rel (%p1772) target = $region68
      $region67: #{basic_block_forward.3} parent=55 // pred_region
        %s1775 = smul.u32 4, %s25
        %p1776 = scmp.lt.s32.totalorder %s24, 1
        %s1777 = scalar_select %p1776, %s24, 1
        %p1778 = scmp.lt.s32.totalorder %s1775, 7
        %s1779 = scalar_select %p1778, %s1775, 7
        %s1780 = smul.addr %s1777, 8
        %s1781 = sadd.s32 %s1779, %s1780
        %s1782 = smul.addr %s1781, 4
        %s1783 = scalar_lea.vmem %s5, %s1782
      $region68: #{basic_block_forward.3} parent=55 // pred_fallthru
        _
      // Predicated region
      $region69: #{basic_block_forward.3} parent=55 // pred_check
        %p1784 = pneg %p210
      $region70: #{basic_block_forward.3} parent=55 // pred_check_branch
        %1786 = sbr.rel (%p1784) target = $region72
      $region71: #{basic_block_forward.3} parent=55 // pred_region
        %s1787 = smul.u32 %s24, 2
        %s1788 = sadd.s32 %s1787, %s25
        %p1789 = scmp.lt.s32.totalorder %s1788, 3
        %s1790 = scalar_select %p1789, %s1788, 3
        %s1791 = smul.addr %s1790, 2
        %s1792 = scalar_lea.vmem %s6, %s1791
      $region72: #{basic_block_forward.3} parent=55 // pred_fallthru
        _
    $region56: #{basic_block_forward.3} parent=5 // pred_fallthru
      _
  $region6: #{basic_block_forward.3} parent=0 // loop_footer
    %s17 = sadd.s32 1, %s13
  $region7: #{basic_block_forward.3} parent=0 // loop_footer_branch
    %12 = sbr.rel target = $region3
  $region8: #{basic_block_forward.3} parent=0 // loop_exit
    _

// kernel: basic_block_forward.4
$region0: #{basic_block_forward.4}
  #allocation0 [shape = 'u32[]', space=smem, size = 0x4, offset = 0x4, fixed_abs, tag = 'smem constant byte address 0x4 - core index']
  #allocation1 [shape = 'u32[72,128]{1,0:T(1,128)}', space=vmem, size = 0x9000, scoped, tag = 'internal scratch']
  #allocation2 [shape = 'bf16[6,10,128]{2,1,0:T(8,128)(2,1)}', space=vmem, size = 0x6000, scoped, tag = 'scratch operand']
  %s0 = inlined_call_operand.vmem [shape: bf16[2,10,10,128], index: 0, kind: input, shape index: {}]
  %s1 = inlined_call_operand.vmem [shape: bf16[9,128,128], index: 1, kind: input, shape index: {}]
  %s2 = inlined_call_operand.vmem [shape: f32[1,128], index: 2, kind: input, shape index: {}]
  %s3 = inlined_call_operand.vmem [shape: f32[1,128], index: 3, kind: input, shape index: {}]
  %s4 = inlined_call_operand.vmem [shape: bf16[2,8,8,128], index: 4, kind: output, shape index: {0}]
  %s5 = inlined_call_operand.vmem [shape: f32[4,2,128], index: 5, kind: output, shape index: {1}]
  %6 = xla_tuple %s4, %s5
  %s7 = sld [smem:[#allocation0]]
  $region57: #{basic_block_forward.4} parent=0
    _
  %s9 = ssub.s32 1, %s7
  %s10 = scalar_select 0, %s9, %s7
  loop: start=0, step=1, limit=6
  $region2: #{basic_block_forward.4} parent=0 // loop_pre_header
    _
  $region3: #{basic_block_forward.4} parent=0 // loop_header
    %s12 = sphi 0, %s16
    %p13 = scmp.ge.s32.totalorder %s12, 6
    %s19 = sphi 0, %s31
    %s20 = sphi 0, %s27
    %s21 = sphi 0, %s19
    %s22 = sphi 0, %s20
    %s23 = sphi 0, %s21
    %s24 = sphi 0, %s22
    %s34 = sphi 0, %s36
    %s37 = sphi 0, %s34
    %s38 = sphi 0, %s37
    %s54 = sphi 0, %s38
    %s58 = sphi 0, %s58
    %s60 = sphi 0, %s58
    %s61 = sphi 0, %s60
    %s75 = sphi 0, %s61
    %s79 = sphi 0, %s79
    %s81 = sphi 0, %s79
    %s82 = sphi 0, %s81
    %s96 = sphi 0, %s82
    %s100 = sphi 0, %s100
    %s102 = sphi 0, %s100
    %s103 = sphi 0, %s102
    %s117 = sphi 0, %s103
    %s125 = sphi 0, %s127
    %s128 = sphi 0, %s125
    %s129 = sphi 0, %s128
    %s145 = sphi 0, %s129
    %s155 = sphi 0, %s157
    %s158 = sphi 0, %s155
    %s159 = sphi 0, %s158
    %s175 = sphi 0, %s159
  $region4: #{basic_block_forward.4} parent=0 // loop_header_branch
    %15 = sbr.rel (%p13) target = $region8
  $region5: #{basic_block_forward.4} parent=0 // loop_body
    %s17 = ssub.s32 %s12, 1
    %s18 = ssub.s32 %s12, 2
    %s25 = sadd.s32 1, %s20
    %p26 = scmp.ge.s32.totalorder %s25, 2
    %s27 = scalar_select %p26, 0, %s25
    %s28 = sadd.s32 1, %s19
    %s29 = scalar_select %p26, %s28, %s19
    %p30 = scmp.ge.s32.totalorder %s29, 2
    %s31 = scalar_select %p30, 0, %s29
    %s32 = ssub.s32 %s19, %s31
    %p33 = scmp.eq.s32.totalorder %s32, 0
    %s35 = sadd.s32 %s34, 1
    %s36 = scalar_select %p33, %s34, %s35
    %p39 = pneg %p33
    %p40 = scmp.eq.s32.totalorder %s12, 3
    %p41 = por %p39, %p40
    %p42 = scmp.ne.s32.totalorder %s34, %s37
    %p43 = scmp.eq.s32.totalorder %s12, 0
    %p44 = por %p42, %p43
    %p45 = scmp.ne.s32.totalorder %s34, %s37
    %p46 = scmp.eq.s32.totalorder %s17, 3
    %p47 = por %p45, %p46
    %p48 = scmp.ne.s32.totalorder %s37, %s38
    %p49 = scmp.eq.s32.totalorder %s17, 0
    %p50 = por %p48, %p49
    %p51 = scmp.ne.s32.totalorder %s37, %s38
    %p52 = scmp.eq.s32.totalorder %s18, 3
    %p53 = por %p51, %p52
    %p55 = scmp.ne.s32.totalorder %s38, %s54
    %p56 = scmp.eq.s32.totalorder %s18, 0
    %p57 = por %p55, %p56
    %s59 = sadd.s32 %s58, 1
    %p62 = scmp.eq.s32.totalorder %s12, 3
    %p63 = scmp.ne.s32.totalorder %s58, %s60
    %p64 = scmp.eq.s32.totalorder %s12, 0
    %p65 = por %p63, %p64
    %p66 = scmp.ne.s32.totalorder %s58, %s60
    %p67 = scmp.eq.s32.totalorder %s17, 3
    %p68 = por %p66, %p67
    %p69 = scmp.ne.s32.totalorder %s60, %s61
    %p70 = scmp.eq.s32.totalorder %s17, 0
    %p71 = por %p69, %p70
    %p72 = scmp.ne.s32.totalorder %s60, %s61
    %p73 = scmp.eq.s32.totalorder %s18, 3
    %p74 = por %p72, %p73
    %p76 = scmp.ne.s32.totalorder %s61, %s75
    %p77 = scmp.eq.s32.totalorder %s18, 0
    %p78 = por %p76, %p77
    %s80 = sadd.s32 %s79, 1
    %p83 = scmp.eq.s32.totalorder %s12, 3
    %p84 = scmp.ne.s32.totalorder %s79, %s81
    %p85 = scmp.eq.s32.totalorder %s12, 0
    %p86 = por %p84, %p85
    %p87 = scmp.ne.s32.totalorder %s79, %s81
    %p88 = scmp.eq.s32.totalorder %s17, 3
    %p89 = por %p87, %p88
    %p90 = scmp.ne.s32.totalorder %s81, %s82
    %p91 = scmp.eq.s32.totalorder %s17, 0
    %p92 = por %p90, %p91
    %p93 = scmp.ne.s32.totalorder %s81, %s82
    %p94 = scmp.eq.s32.totalorder %s18, 3
    %p95 = por %p93, %p94
    %p97 = scmp.ne.s32.totalorder %s82, %s96
    %p98 = scmp.eq.s32.totalorder %s18, 0
    %p99 = por %p97, %p98
    %s101 = sadd.s32 %s100, 1
    %p104 = scmp.eq.s32.totalorder %s12, 3
    %p105 = scmp.ne.s32.totalorder %s100, %s102
    %p106 = scmp.eq.s32.totalorder %s12, 0
    %p107 = por %p105, %p106
    %p108 = scmp.ne.s32.totalorder %s100, %s102
    %p109 = scmp.eq.s32.totalorder %s17, 3
    %p110 = por %p108, %p109
    %p111 = scmp.ne.s32.totalorder %s102, %s103
    %p112 = scmp.eq.s32.totalorder %s17, 0
    %p113 = por %p111, %p112
    %p114 = scmp.ne.s32.totalorder %s102, %s103
    %p115 = scmp.eq.s32.totalorder %s18, 3
    %p116 = por %p114, %p115
    %p118 = scmp.ne.s32.totalorder %s103, %s117
    %p119 = scmp.eq.s32.totalorder %s18, 0
    %p120 = por %p118, %p119
    %s121 = ssub.s32 %s19, %s31
    %s122 = ssub.s32 %s20, %s27
    %s123 = sor.u32 %s121, %s122
    %p124 = scmp.eq.s32.totalorder %s123, 0
    %s126 = sadd.s32 %s125, 1
    %s127 = scalar_select %p124, %s125, %s126
    %p130 = pneg %p124
    %p131 = scmp.eq.s32.totalorder %s12, 3
    %p132 = por %p130, %p131
    %p133 = scmp.ne.s32.totalorder %s125, %s128
    %p134 = scmp.eq.s32.totalorder %s12, 0
    %p135 = por %p133, %p134
    %p136 = scmp.ne.s32.totalorder %s125, %s128
    %p137 = scmp.eq.s32.totalorder %s17, 3
    %p138 = por %p136, %p137
    %p139 = scmp.ne.s32.totalorder %s128, %s129
    %p140 = scmp.eq.s32.totalorder %s17, 0
    %p141 = por %p139, %p140
    %p142 = scmp.ne.s32.totalorder %s128, %s129
    %p143 = scmp.eq.s32.totalorder %s18, 3
    %p144 = por %p142, %p143
    %p146 = scmp.ne.s32.totalorder %s129, %s145
    %p147 = scmp.eq.s32.totalorder %s18, 0
    %p148 = por %p146, %p147
    %s149 = smul.u32 %s19, 2
    %s150 = sadd.s32 %s149, %s20
    %s151 = smul.u32 %s31, 2
    %s152 = sadd.s32 %s151, %s27
    %s153 = ssub.s32 %s150, %s152
    %p154 = scmp.eq.s32.totalorder %s153, 0
    %s156 = sadd.s32 %s155, 1
    %s157 = scalar_select %p154, %s155, %s156
    %p160 = pneg %p154
    %p161 = scmp.eq.s32.totalorder %s12, 3
    %p162 = por %p160, %p161
    %p163 = scmp.ne.s32.totalorder %s155, %s158
    %p164 = scmp.eq.s32.totalorder %s12, 0
    %p165 = por %p163, %p164
    %p166 = scmp.ne.s32.totalorder %s155, %s158
    %p167 = scmp.eq.s32.totalorder %s17, 3
    %p168 = por %p166, %p167
    %p169 = scmp.ne.s32.totalorder %s158, %s159
    %p170 = scmp.eq.s32.totalorder %s17, 0
    %p171 = por %p169, %p170
    %p172 = scmp.ne.s32.totalorder %s158, %s159
    %p173 = scmp.eq.s32.totalorder %s18, 3
    %p174 = por %p172, %p173
    %p176 = scmp.ne.s32.totalorder %s159, %s175
    %p177 = scmp.eq.s32.totalorder %s18, 0
    %p178 = por %p176, %p177
    %p179 = scmp.le.s32.totalorder 1, %s12
    %p180 = scmp.lt.s32.totalorder %s12, 5
    %p181 = pnand %p179, %p180
    %p182 = pneg %p181
    // Predicated region
    $region9: #{basic_block_forward.4} parent=5 // pred_check
      _
    $region10: #{basic_block_forward.4} parent=5 // pred_check_branch
      %184 = sbr.rel (%p181) target = $region12
    $region11: #{basic_block_forward.4} parent=5 // pred_region
      %s185 = ssub.s32 %s12, 1
      // Predicated region
      $region13: #{basic_block_forward.4} parent=11 // pred_check
        %p186 = pneg %p71
      $region14: #{basic_block_forward.4} parent=11 // pred_check_branch
        %188 = sbr.rel (%p186) target = $region16
      $region15: #{basic_block_forward.4} parent=11 // pred_region
        _
      $region16: #{basic_block_forward.4} parent=11 // pred_fallthru
        _
      // Predicated region
      $region17: #{basic_block_forward.4} parent=11 // pred_check
        %p189 = pneg %p92
      $region18: #{basic_block_forward.4} parent=11 // pred_check_branch
        %191 = sbr.rel (%p189) target = $region20
      $region19: #{basic_block_forward.4} parent=11 // pred_region
        _
      $region20: #{basic_block_forward.4} parent=11 // pred_fallthru
        _
      // Predicated region
      $region21: #{basic_block_forward.4} parent=11 // pred_check
        %p192 = pneg %p113
      $region22: #{basic_block_forward.4} parent=11 // pred_check_branch
        %194 = sbr.rel (%p192) target = $region24
      $region23: #{basic_block_forward.4} parent=11 // pred_region
        _
      $region24: #{basic_block_forward.4} parent=11 // pred_fallthru
        _
    $region12: #{basic_block_forward.4} parent=5 // pred_fallthru
      _
    %p195 = scmp.lt.s32.totalorder %s12, 4
    // Predicated region
    $region25: #{basic_block_forward.4} parent=5 // pred_check
      %p196 = pneg %p195
    $region26: #{basic_block_forward.4} parent=5 // pred_check_branch
      %198 = sbr.rel (%p196) target = $region28
    $region27: #{basic_block_forward.4} parent=5 // pred_region
      // Predicated region
      $region29: #{basic_block_forward.4} parent=27 // pred_check
        %p199 = pneg %p44
      $region30: #{basic_block_forward.4} parent=27 // pred_check_branch
        %201 = sbr.rel (%p199) target = $region32
      $region31: #{basic_block_forward.4} parent=27 // pred_region
        %p202 = scmp.lt.s32.totalorder %s19, 1
        %s203 = scalar_select %p202, %s19, 1
        %s204 = smul.addr %s203, 20
        %s205 = smul.addr %s204, 4
        %s206 = scalar_lea.vmem %s0, %s205
      $region32: #{basic_block_forward.4} parent=27 // pred_fallthru
        _
    $region28: #{basic_block_forward.4} parent=5 // pred_fallthru
      _
    %p207 = scmp.le.s32.totalorder 1, %s12
    %p208 = scmp.lt.s32.totalorder %s12, 5
    %p209 = pnand %p207, %p208
    %p210 = pneg %p209
    // Predicated region
    $region33: #{basic_block_forward.4} parent=5 // pred_check
      _
    $region34: #{basic_block_forward.4} parent=5 // pred_check_branch
      %212 = sbr.rel (%p209) target = $region36
    $region35: #{basic_block_forward.4} parent=5 // pred_region
      %s213 = ssub.s32 %s12, 1
      %p214 = scmp.lt.s32.totalorder %s21, 1
      %s215 = scalar_select %p214, %s21, 1
      %s216 = smul.addr %s215, 20
      %s217 = smul.addr %s216, 4
      %s218 = scalar_lea.vmem %s0, %s217
      %p219 = pneg %p50
      %p220 = pneg %p47
      %p221 = pneg %p71
      %p222 = pneg %p68
      %p223 = pneg %p92
      %p224 = pneg %p89
      %p225 = pneg %p113
      %p226 = pneg %p110
      %p227 = pneg %p141
      %p228 = pneg %p138
      %s229 = smul.u32 4, %s22
      %p230 = scmp.lt.s32.totalorder %s21, 1
      %s231 = scalar_select %p230, %s21, 1
      %p232 = scmp.lt.s32.totalorder %s229, 7
      %s233 = scalar_select %p232, %s229, 7
      %s234 = smul.addr %s231, 8
      %s235 = sadd.s32 %s233, %s234
      %s236 = smul.addr %s235, 4
      %s237 = scalar_lea.vmem %s4, %s236
      %p238 = pneg %p171
      %p239 = pneg %p168
      %s240 = smul.u32 %s21, 2
      %s241 = sadd.s32 %s240, %s22
      %p242 = scmp.lt.s32.totalorder %s241, 3
      %s243 = scalar_select %p242, %s241, 3
      %s244 = smul.addr %s243, 2
      %s245 = scalar_lea.vmem %s5, %s244
      %p246 = scmp.lt.s32.totalorder %s21, 1
      %s247 = scalar_select %p246, %s21, 1
      %s248 = smul.addr %s247, 20
      %s249 = smul.addr %s248, 4
      %s250 = scalar_lea.vmem %s0, %s249
      %s251 = smul.u32 4, %s22
      %p252 = scmp.lt.s32.totalorder %s21, 1
      %s253 = scalar_select %p252, %s21, 1
      %p254 = scmp.lt.s32.totalorder %s251, 7
      %s255 = scalar_select %p254, %s251, 7
      %s256 = smul.addr %s253, 8
      %s257 = sadd.s32 %s255, %s256
      %s258 = smul.addr %s257, 4
      %s259 = scalar_lea.vmem %s4, %s258
      %s260 = smul.u32 4, %s22
      %s261 = smul.u32 %s21, 2
      %s262 = sadd.s32 %s261, %s22
      %p263 = scmp.lt.s32.totalorder %s262, 3
      %s264 = scalar_select %p263, %s262, 3
      %s265 = smul.addr %s264, 2
      %s266 = scalar_lea.vmem %s5, %s265
      %s267 = smul.u32 %s21, 2
      %s268 = sadd.s32 %s267, %s22
      %s269 = smul.u32 %s22, 4
      %v270 = vld [vmem:[%s2] sm:$0x1]
      %v271 = vld [vmem:[%s3] sm:$0x1]
      %s272 = smul.u32 %s269, 2
      %s273 = smul.addr %s272, 4
      %s274 = scalar_lea.vmem %s250, %s273
      %v275 = vld [vmem:[%s274] sm:$0xf]
      %v276 = vld [vmem:[%s274 + $0x4] sm:$0x1]
      %v277 = vld [vmem:[%s274 + $0x8] sm:$0xf]
      %v278 = vld [vmem:[%s274 + $0xc] sm:$0x1]
      %v279 = vld [vmem:[%s274 + $0x10] sm:$0xf]
      %v280 = vld [vmem:[%s274 + $0x14] sm:$0x1]
      %v281 = vld [vmem:[%s274 + $0x18] sm:$0xf]
      %v282 = vld [vmem:[%s274 + $0x1c] sm:$0x1]
      %v283 = vld [vmem:[%s274 + $0x20] sm:$0xf]
      %v284 = vld [vmem:[%s274 + $0x24] sm:$0x1]
      %v285 = vld [vmem:[%s274 + $0x28] sm:$0xf]
      %v286 = vld [vmem:[%s274 + $0x2c] sm:$0x1]
      %v287 = vunpack.c.l.bf16 %v275
      %v288 = vunpack.c.l.bf16 %v276
      %v289 = vunpack.c.l.bf16 %v277
      %v290 = vunpack.c.l.bf16 %v278
      %v291 = vunpack.c.l.bf16 %v279
      %v292 = vunpack.c.l.bf16 %v280
      %v293 = vunpack.c.l.bf16 %v281
      %v294 = vunpack.c.l.bf16 %v282
      %v295 = vunpack.c.l.bf16 %v283
      %v296 = vunpack.c.l.bf16 %v284
      %v297 = vunpack.c.l.bf16 %v285
      %v298 = vunpack.c.l.bf16 %v286
      %v300 = vperm.slane %v270, 0
      %v302 = vmul.f32 %v287, %v300
      %v303 = vmul.f32 %v288, %v300
      %v304 = vmul.f32 %v289, %v300
      %v305 = vmul.f32 %v290, %v300
      %v306 = vmul.f32 %v291, %v300
      %v307 = vmul.f32 %v292, %v300
      %v308 = vmul.f32 %v293, %v300
      %v309 = vmul.f32 %v294, %v300
      %v310 = vmul.f32 %v295, %v300
      %v311 = vmul.f32 %v296, %v300
      %v312 = vmul.f32 %v297, %v300
      %v313 = vmul.f32 %v298, %v300
      %v315 = vperm.slane %v271, 0
      %v317 = vadd.f32 %v302, %v315
      %v318 = vadd.f32 %v303, %v315
      %v319 = vadd.f32 %v304, %v315
      %v320 = vadd.f32 %v305, %v315
      %v321 = vadd.f32 %v306, %v315
      %v322 = vadd.f32 %v307, %v315
      %v323 = vadd.f32 %v308, %v315
      %v324 = vadd.f32 %v309, %v315
      %v325 = vadd.f32 %v310, %v315
      %v326 = vadd.f32 %v311, %v315
      %v327 = vadd.f32 %v312, %v315
      %v328 = vadd.f32 %v313, %v315
      %v329 = vmax.f32 %v317, 0.0
      %v330 = vmax.f32 %v318, 0.0
      %v331 = vmax.f32 %v319, 0.0
      %v332 = vmax.f32 %v320, 0.0
      %v333 = vmax.f32 %v321, 0.0
      %v334 = vmax.f32 %v322, 0.0
      %v335 = vmax.f32 %v323, 0.0
      %v336 = vmax.f32 %v324, 0.0
      %v337 = vmax.f32 %v325, 0.0
      %v338 = vmax.f32 %v326, 0.0
      %v339 = vmax.f32 %v327, 0.0
      %v340 = vmax.f32 %v328, 0.0
      %v341 = vstv %s269
      %v342 = vadd.s32 %v341, 1
      %v343 = vadd.s32 %v341, 2
      %v344 = vadd.s32 %v341, 3
      %v345 = vadd.s32 %v341, 4
      %v346 = vadd.s32 %v341, 5
      %v347 = vlaneseq
      %v348 = vshrl.u32 %v347, 7
      %v349 = vadd.s32 %v348, 8
      %vm350 = vcmp.ge.s32.totalorder %v341, 1
      %vm351 = vcmp.ge.s32.totalorder %v342, 1
      %vm352 = vcmp.ge.s32.totalorder %v343, 1
      %vm353 = vcmp.ge.s32.totalorder %v344, 1
      %vm354 = vcmp.ge.s32.totalorder %v345, 1
      %vm355 = vcmp.ge.s32.totalorder %v346, 1
      %vm356 = vcmp.le.s32.totalorder %v341, 8
      %vm357 = vcmp.le.s32.totalorder %v342, 8
      %vm358 = vcmp.le.s32.totalorder %v343, 8
      %vm359 = vcmp.le.s32.totalorder %v344, 8
      %vm360 = vcmp.le.s32.totalorder %v345, 8
      %vm361 = vcmp.le.s32.totalorder %v346, 8
      %vm362 = vmand %vm350, %vm356
      %vm363 = vmand %vm351, %vm357
      %vm364 = vmand %vm352, %vm358
      %vm365 = vmand %vm353, %vm359
      %vm366 = vmand %vm354, %vm360
      %vm367 = vmand %vm355, %vm361
      %vm368 = vcmp.ge.s32.totalorder %v348, 1
      %vm369 = vcmp.ge.s32.totalorder %v349, 1
      %vm370 = vmand %vm362, %vm368
      %vm371 = vmand %vm362, %vm369
      %vm372 = vmand %vm363, %vm368
      %vm373 = vmand %vm363, %vm369
      %vm374 = vmand %vm364, %vm368
      %vm375 = vmand %vm364, %vm369
      %vm376 = vmand %vm365, %vm368
      %vm377 = vmand %vm365, %vm369
      %vm378 = vmand %vm366, %vm368
      %vm379 = vmand %vm366, %vm369
      %vm380 = vmand %vm367, %vm368
      %vm381 = vmand %vm367, %vm369
      %vm382 = vcmp.le.s32.totalorder %v348, 8
      %vm383 = vcmp.le.s32.totalorder %v349, 8
      %vm384 = vmand %vm370, %vm382
      %vm385 = vmand %vm371, %vm383
      %vm386 = vmand %vm372, %vm382
      %vm387 = vmand %vm373, %vm383
      %vm388 = vmand %vm374, %vm382
      %vm389 = vmand %vm375, %vm383
      %vm390 = vmand %vm376, %vm382
      %vm391 = vmand %vm377, %vm383
      %vm392 = vmand %vm378, %vm382
      %vm393 = vmand %vm379, %vm383
      %vm394 = vmand %vm380, %vm382
      %vm395 = vmand %vm381, %vm383
      %v396 = vsel %vm384, 1, 0
      %v397 = vsel %vm385, 1, 0
      %v398 = vsel %vm386, 1, 0
      %v399 = vsel %vm387, 1, 0
      %v400 = vsel %vm388, 1, 0
      %v401 = vsel %vm389, 1, 0
      %v402 = vsel %vm390, 1, 0
      %v403 = vsel %vm391, 1, 0
      %v404 = vsel %vm392, 1, 0
      %v405 = vsel %vm393, 1, 0
      %v406 = vsel %vm394, 1, 0
      %v407 = vsel %vm395, 1, 0
      %vm408 = vcmp.eq.s32.totalorder %v396, 1
      %vm409 = vcmp.eq.s32.totalorder %v397, 1
      %vm410 = vcmp.eq.s32.totalorder %v398, 1
      %vm411 = vcmp.eq.s32.totalorder %v399, 1
      %vm412 = vcmp.eq.s32.totalorder %v400, 1
      %vm413 = vcmp.eq.s32.totalorder %v401, 1
      %vm414 = vcmp.eq.s32.totalorder %v402, 1
      %vm415 = vcmp.eq.s32.totalorder %v403, 1
      %vm416 = vcmp.eq.s32.totalorder %v404, 1
      %vm417 = vcmp.eq.s32.totalorder %v405, 1
      %vm418 = vcmp.eq.s32.totalorder %v406, 1
      %vm419 = vcmp.eq.s32.totalorder %v407, 1
      %v420 = vsel %vm408, %v329, 0.0
      %v421 = vsel %vm409, %v330, 0.0
      %v422 = vsel %vm410, %v331, 0.0
      %v423 = vsel %vm411, %v332, 0.0
      %v424 = vsel %vm412, %v333, 0.0
      %v425 = vsel %vm413, %v334, 0.0
      %v426 = vsel %vm414, %v335, 0.0
      %v427 = vsel %vm415, %v336, 0.0
      %v428 = vsel %vm416, %v337, 0.0
      %v429 = vsel %vm417, %v338, 0.0
      %v430 = vsel %vm418, %v339, 0.0
      %v431 = vsel %vm419, %v340, 0.0
      %v432 = vpack.c.bf16 %v420, %v420
      %v433 = vpack.c.bf16 %v421, %v421
      %v434 = vpack.c.bf16 %v422, %v422
      %v435 = vpack.c.bf16 %v423, %v423
      %v436 = vpack.c.bf16 %v424, %v424
      %v437 = vpack.c.bf16 %v425, %v425
      %v438 = vpack.c.bf16 %v426, %v426
      %v439 = vpack.c.bf16 %v427, %v427
      %v440 = vpack.c.bf16 %v428, %v428
      %v441 = vpack.c.bf16 %v429, %v429
      %v442 = vpack.c.bf16 %v430, %v430
      %v443 = vpack.c.bf16 %v431, %v431
      %444 = vst [vmem:[#allocation2] sm:$0xf] %v432
      %445 = vst [vmem:[#allocation2 + $0x4] sm:$0x1] %v433
      %446 = vst [vmem:[#allocation2 + $0x8] sm:$0xf] %v434
      %447 = vst [vmem:[#allocation2 + $0xc] sm:$0x1] %v435
      %448 = vst [vmem:[#allocation2 + $0x10] sm:$0xf] %v436
      %449 = vst [vmem:[#allocation2 + $0x14] sm:$0x1] %v437
      %450 = vst [vmem:[#allocation2 + $0x18] sm:$0xf] %v438
      %451 = vst [vmem:[#allocation2 + $0x1c] sm:$0x1] %v439
      %452 = vst [vmem:[#allocation2 + $0x20] sm:$0xf] %v440
      %453 = vst [vmem:[#allocation2 + $0x24] sm:$0x1] %v441
      %454 = vst [vmem:[#allocation2 + $0x28] sm:$0xf] %v442
      %455 = vst [vmem:[#allocation2 + $0x2c] sm:$0x1] %v443
      %v456 = vld [vmem:[#allocation2] sm:$0xf]
      %v457 = vld [vmem:[#allocation2 + $0x8] sm:$0xf]
      %v458 = vld [vmem:[#allocation2 + $0x10] sm:$0xf]
      %v459 = vld [vmem:[#allocation2 + $0x18] sm:$0xf]
      %v460 = vld [vmem:[%s1] sm:$0xf]
      %v461 = vld [vmem:[%s1 + $0x4] sm:$0xf]
      %v462 = vld [vmem:[%s1 + $0x8] sm:$0xf]
      %v463 = vld [vmem:[%s1 + $0xc] sm:$0xf]
      %v464 = vld [vmem:[%s1 + $0x10] sm:$0xf]
      %v465 = vld [vmem:[%s1 + $0x14] sm:$0xf]
      %v466 = vld [vmem:[%s1 + $0x18] sm:$0xf]
      %v467 = vld [vmem:[%s1 + $0x1c] sm:$0xf]
      %v468 = vld [vmem:[%s1 + $0x20] sm:$0xf]
      %v469 = vld [vmem:[%s1 + $0x24] sm:$0xf]
      %v470 = vld [vmem:[%s1 + $0x28] sm:$0xf]
      %v471 = vld [vmem:[%s1 + $0x2c] sm:$0xf]
      %v472 = vld [vmem:[%s1 + $0x30] sm:$0xf]
      %v473 = vld [vmem:[%s1 + $0x34] sm:$0xf]
      %v474 = vld [vmem:[%s1 + $0x38] sm:$0xf]
      %v475 = vld [vmem:[%s1 + $0x3c] sm:$0xf]
      %v476 = vld [vmem:[#allocation2 + $0x4] sm:$0x1]
      %v477 = vld [vmem:[#allocation2 + $0xc] sm:$0x1]
      %v478 = vld [vmem:[#allocation2 + $0x14] sm:$0x1]
      %v479 = vld [vmem:[#allocation2 + $0x1c] sm:$0x1]
      %vm480 = vsmask.f32 3328
      %vm481 = vsmask.f32 7440
      %vm482 = vmor %vm480, %vm481
      %v484 = vshrl.u32 %v456, 16
      %v486 = vrot.slane %v484, 4
      %v487 = vshll.u32 %v456, 16
      %v489 = vrot.slane %v487, 5
      %v490 = vor.u32 %v486, %v489
      %v491 = vrot.slane %v490, 4
      %v493 = vshll.u32 %v476, 16
      %v495 = vrot.slane %v493, 5
      %v496 = vsel %vm482, %v491, %v495
      %v498 = vshrl.u32 %v457, 16
      %v500 = vrot.slane %v498, 4
      %v501 = vshll.u32 %v457, 16
      %v503 = vrot.slane %v501, 5
      %v504 = vor.u32 %v500, %v503
      %v505 = vrot.slane %v504, 4
      %v507 = vshll.u32 %v477, 16
      %v509 = vrot.slane %v507, 5
      %v510 = vsel %vm482, %v505, %v509
      %v512 = vshrl.u32 %v458, 16
      %v514 = vrot.slane %v512, 4
      %v515 = vshll.u32 %v458, 16
      %v517 = vrot.slane %v515, 5
      %v518 = vor.u32 %v514, %v517
      %v519 = vrot.slane %v518, 4
      %v521 = vshll.u32 %v478, 16
      %v523 = vrot.slane %v521, 5
      %v524 = vsel %vm482, %v519, %v523
      %v526 = vshrl.u32 %v459, 16
      %v528 = vrot.slane %v526, 4
      %v529 = vshll.u32 %v459, 16
      %v531 = vrot.slane %v529, 5
      %v532 = vor.u32 %v528, %v531
      %v533 = vrot.slane %v532, 4
      %v535 = vshll.u32 %v479, 16
      %v537 = vrot.slane %v535, 5
      %v538 = vsel %vm482, %v533, %v537
      %s539 = scalar_lea.vmem %s1, 64
      %v540 = vld [vmem:[%s539] sm:$0xf]
      %v541 = vld [vmem:[%s539 + $0x4] sm:$0xf]
      %v542 = vld [vmem:[%s539 + $0x8] sm:$0xf]
      %v543 = vld [vmem:[%s539 + $0xc] sm:$0xf]
      %v544 = vld [vmem:[%s539 + $0x10] sm:$0xf]
      %v545 = vld [vmem:[%s539 + $0x14] sm:$0xf]
      %v546 = vld [vmem:[%s539 + $0x18] sm:$0xf]
      %v547 = vld [vmem:[%s539 + $0x1c] sm:$0xf]
      %v548 = vld [vmem:[%s539 + $0x20] sm:$0xf]
      %v549 = vld [vmem:[%s539 + $0x24] sm:$0xf]
      %v550 = vld [vmem:[%s539 + $0x28] sm:$0xf]
      %v551 = vld [vmem:[%s539 + $0x2c] sm:$0xf]
      %v552 = vld [vmem:[%s539 + $0x30] sm:$0xf]
      %v553 = vld [vmem:[%s539 + $0x34] sm:$0xf]
      %v554 = vld [vmem:[%s539 + $0x38] sm:$0xf]
      %v555 = vld [vmem:[%s539 + $0x3c] sm:$0xf]
      %v556 = vunpack.c.l.b16 %v496
      %v557 = vunpack.c.l.b16 %v510
      %v558 = vunpack.c.l.b16 %v524
      %v559 = vunpack.c.l.b16 %v538
      %v560 = vpack.c.b16 %v557, %v556
      %v561 = vpack.c.b16 %v559, %v558
      %v580 = vunpack.c.l.b16 %v540
      %v581 = vunpack.c.l.b16 %v541
      %v582 = vunpack.c.l.b16 %v542
      %v583 = vunpack.c.l.b16 %v543
      %v584 = vunpack.c.l.b16 %v544
      %v585 = vunpack.c.l.b16 %v545
      %v586 = vunpack.c.l.b16 %v546
      %v587 = vunpack.c.l.b16 %v547
      %v588 = vunpack.c.l.b16 %v548
      %v589 = vunpack.c.l.b16 %v549
      %v590 = vunpack.c.l.b16 %v550
      %v591 = vunpack.c.l.b16 %v551
      %v592 = vunpack.c.l.b16 %v552
      %v593 = vunpack.c.l.b16 %v553
      %v594 = vunpack.c.l.b16 %v554
      %v595 = vunpack.c.l.b16 %v555
      %v596 = vpack.c.b16 %v581, %v580
      %v597 = vpack.c.b16 %v583, %v582
      %v598 = vpack.c.b16 %v585, %v584
      %v599 = vpack.c.b16 %v587, %v586
      %v600 = vpack.c.b16 %v589, %v588
      %v601 = vpack.c.b16 %v591, %v590
      %v602 = vpack.c.b16 %v593, %v592
      %v603 = vpack.c.b16 %v595, %v594
      %612 = vmatpush.bf16.msra.mxu0 %v603
      %613 = vmatpush.bf16.msra.mxu0 %v602
      %614 = vmatpush.bf16.msra.mxu0 %v601
      %615 = vmatpush.bf16.msra.mxu0 %v600
      %616 = vmatpush.bf16.msra.mxu0 %v599
      %617 = vmatpush.bf16.msra.mxu0 %v598
      %618 = vmatpush.bf16.msra.mxu0 %v597
      %619 = vmatpush.bf16.msra.mxu0 %v596
      %620 = vmatmul.bf16.gmra.mxu0 %v560
      %v621 = vpop.f32.mrf.mxu0
      %v622 = vadd.f32 0.0, %v621
      %v623 = vpop.f32.mrf.mxu0
      %v624 = vadd.f32 0.0, %v623
      %625 = vmatmul.bf16.gmra.mxu0 %v561
      %v626 = vpop.f32.mrf.mxu0
      %v627 = vadd.f32 0.0, %v626
      %v628 = vpop.f32.mrf.mxu0
      %v629 = vadd.f32 0.0, %v628
      %630 = vdwg.mxu0
      %v635 = vunpack.c.l.b16 %v456
      %v636 = vunpack.c.l.b16 %v457
      %v637 = vunpack.c.l.b16 %v458
      %v638 = vunpack.c.l.b16 %v459
      %v639 = vpack.c.b16 %v636, %v635
      %v640 = vpack.c.b16 %v638, %v637
      %v659 = vunpack.c.l.b16 %v460
      %v660 = vunpack.c.l.b16 %v461
      %v661 = vunpack.c.l.b16 %v462
      %v662 = vunpack.c.l.b16 %v463
      %v663 = vunpack.c.l.b16 %v464
      %v664 = vunpack.c.l.b16 %v465
      %v665 = vunpack.c.l.b16 %v466
      %v666 = vunpack.c.l.b16 %v467
      %v667 = vunpack.c.l.b16 %v468
      %v668 = vunpack.c.l.b16 %v469
      %v669 = vunpack.c.l.b16 %v470
      %v670 = vunpack.c.l.b16 %v471
      %v671 = vunpack.c.l.b16 %v472
      %v672 = vunpack.c.l.b16 %v473
      %v673 = vunpack.c.l.b16 %v474
      %v674 = vunpack.c.l.b16 %v475
      %v675 = vpack.c.b16 %v660, %v659
      %v676 = vpack.c.b16 %v662, %v661
      %v677 = vpack.c.b16 %v664, %v663
      %v678 = vpack.c.b16 %v666, %v665
      %v679 = vpack.c.b16 %v668, %v667
      %v680 = vpack.c.b16 %v670, %v669
      %v681 = vpack.c.b16 %v672, %v671
      %v682 = vpack.c.b16 %v674, %v673
      %691 = vmatpush.bf16.msra.mxu0 %v682
      %692 = vmatpush.bf16.msra.mxu0 %v681
      %693 = vmatpush.bf16.msra.mxu0 %v680
      %694 = vmatpush.bf16.msra.mxu0 %v679
      %695 = vmatpush.bf16.msra.mxu0 %v678
      %696 = vmatpush.bf16.msra.mxu0 %v677
      %697 = vmatpush.bf16.msra.mxu0 %v676
      %698 = vmatpush.bf16.msra.mxu0 %v675
      %699 = vmatmul.bf16.gmra.mxu0 %v639
      %v700 = vpop.f32.mrf.mxu0
      %v701 = vadd.f32 %v622, %v700
      %v702 = vpop.f32.mrf.mxu0
      %v703 = vadd.f32 %v624, %v702
      %704 = vmatmul.bf16.gmra.mxu0 %v640
      %v705 = vpop.f32.mrf.mxu0
      %v706 = vadd.f32 %v627, %v705
      %v707 = vpop.f32.mrf.mxu0
      %v708 = vadd.f32 %v629, %v707
      %709 = vdwg.mxu0
      %v710 = vld [vmem:[#allocation2] sm:$0xe]
      %v711 = vld [vmem:[#allocation2 + $0x8] sm:$0xe]
      %v712 = vld [vmem:[#allocation2 + $0x10] sm:$0xe]
      %v713 = vld [vmem:[#allocation2 + $0x18] sm:$0xe]
      %vm722 = vcmask 1042432
      %vm723 = vcmask 1046532
      %vm724 = vmor %vm722, %vm723
      %v725 = vrot.slane %v710, 5
      %v726 = vrot.slane %v725, 4
      %v727 = vrot.slane %v476, 5
      %v728 = vsel %vm724, %v726, %v727
      %v729 = vrot.slane %v711, 5
      %v730 = vrot.slane %v729, 4
      %v731 = vrot.slane %v477, 5
      %v732 = vsel %vm724, %v730, %v731
      %v733 = vrot.slane %v712, 5
      %v734 = vrot.slane %v733, 4
      %v735 = vrot.slane %v478, 5
      %v736 = vsel %vm724, %v734, %v735
      %v737 = vrot.slane %v713, 5
      %v738 = vrot.slane %v737, 4
      %v739 = vrot.slane %v479, 5
      %v740 = vsel %vm724, %v738, %v739
      %s741 = scalar_lea.vmem %s1, 128
      %v742 = vld [vmem:[%s741] sm:$0xf]
      %v743 = vld [vmem:[%s741 + $0x4] sm:$0xf]
      %v744 = vld [vmem:[%s741 + $0x8] sm:$0xf]
      %v745 = vld [vmem:[%s741 + $0xc] sm:$0xf]
      %v746 = vld [vmem:[%s741 + $0x10] sm:$0xf]
      %v747 = vld [vmem:[%s741 + $0x14] sm:$0xf]
      %v748 = vld [vmem:[%s741 + $0x18] sm:$0xf]
      %v749 = vld [vmem:[%s741 + $0x1c] sm:$0xf]
      %v750 = vld [vmem:[%s741 + $0x20] sm:$0xf]
      %v751 = vld [vmem:[%s741 + $0x24] sm:$0xf]
      %v752 = vld [vmem:[%s741 + $0x28] sm:$0xf]
      %v753 = vld [vmem:[%s741 + $0x2c] sm:$0xf]
      %v754 = vld [vmem:[%s741 + $0x30] sm:$0xf]
      %v755 = vld [vmem:[%s741 + $0x34] sm:$0xf]
      %v756 = vld [vmem:[%s741 + $0x38] sm:$0xf]
      %v757 = vld [vmem:[%s741 + $0x3c] sm:$0xf]
      %v758 = vunpack.c.l.b16 %v728
      %v759 = vunpack.c.l.b16 %v732
      %v760 = vunpack.c.l.b16 %v736
      %v761 = vunpack.c.l.b16 %v740
      %v762 = vpack.c.b16 %v759, %v758
      %v763 = vpack.c.b16 %v761, %v760
      %v782 = vunpack.c.l.b16 %v742
      %v783 = vunpack.c.l.b16 %v743
      %v784 = vunpack.c.l.b16 %v744
      %v785 = vunpack.c.l.b16 %v745
      %v786 = vunpack.c.l.b16 %v746
      %v787 = vunpack.c.l.b16 %v747
      %v788 = vunpack.c.l.b16 %v748
      %v789 = vunpack.c.l.b16 %v749
      %v790 = vunpack.c.l.b16 %v750
      %v791 = vunpack.c.l.b16 %v751
      %v792 = vunpack.c.l.b16 %v752
      %v793 = vunpack.c.l.b16 %v753
      %v794 = vunpack.c.l.b16 %v754
      %v795 = vunpack.c.l.b16 %v755
      %v796 = vunpack.c.l.b16 %v756
      %v797 = vunpack.c.l.b16 %v757
      %v798 = vpack.c.b16 %v783, %v782
      %v799 = vpack.c.b16 %v785, %v784
      %v800 = vpack.c.b16 %v787, %v786
      %v801 = vpack.c.b16 %v789, %v788
      %v802 = vpack.c.b16 %v791, %v790
      %v803 = vpack.c.b16 %v793, %v792
      %v804 = vpack.c.b16 %v795, %v794
      %v805 = vpack.c.b16 %v797, %v796
      %814 = vmatpush.bf16.msra.mxu0 %v805
      %815 = vmatpush.bf16.msra.mxu0 %v804
      %816 = vmatpush.bf16.msra.mxu0 %v803
      %817 = vmatpush.bf16.msra.mxu0 %v802
      %818 = vmatpush.bf16.msra.mxu0 %v801
      %819 = vmatpush.bf16.msra.mxu0 %v800
      %820 = vmatpush.bf16.msra.mxu0 %v799
      %821 = vmatpush.bf16.msra.mxu0 %v798
      %822 = vmatmul.bf16.gmra.mxu0 %v762
      %v823 = vpop.f32.mrf.mxu0
      %v824 = vadd.f32 0.0, %v823
      %v825 = vpop.f32.mrf.mxu0
      %v826 = vadd.f32 0.0, %v825
      %827 = vmatmul.bf16.gmra.mxu0 %v763
      %v828 = vpop.f32.mrf.mxu0
      %v829 = vadd.f32 0.0, %v828
      %v830 = vpop.f32.mrf.mxu0
      %v831 = vadd.f32 0.0, %v830
      %832 = vdwg.mxu0
      %v833 = vadd.f32 %v701, %v824
      %v834 = vadd.f32 %v703, %v826
      %v835 = vadd.f32 %v706, %v829
      %v836 = vadd.f32 %v708, %v831
      %s837 = scalar_lea.vmem [#allocation2], 8
      %v838 = vld [vmem:[%s837] sm:$0xf]
      %v839 = vld [vmem:[%s837 + $0x8] sm:$0xf]
      %v840 = vld [vmem:[%s837 + $0x10] sm:$0xf]
      %v841 = vld [vmem:[%s837 + $0x18] sm:$0xf]
      %s842 = scalar_lea.vmem %s1, 192
      %v843 = vld [vmem:[%s842] sm:$0xf]
      %v844 = vld [vmem:[%s842 + $0x4] sm:$0xf]
      %v845 = vld [vmem:[%s842 + $0x8] sm:$0xf]
      %v846 = vld [vmem:[%s842 + $0xc] sm:$0xf]
      %v847 = vld [vmem:[%s842 + $0x10] sm:$0xf]
      %v848 = vld [vmem:[%s842 + $0x14] sm:$0xf]
      %v849 = vld [vmem:[%s842 + $0x18] sm:$0xf]
      %v850 = vld [vmem:[%s842 + $0x1c] sm:$0xf]
      %v851 = vld [vmem:[%s842 + $0x20] sm:$0xf]
      %v852 = vld [vmem:[%s842 + $0x24] sm:$0xf]
      %v853 = vld [vmem:[%s842 + $0x28] sm:$0xf]
      %v854 = vld [vmem:[%s842 + $0x2c] sm:$0xf]
      %v855 = vld [vmem:[%s842 + $0x30] sm:$0xf]
      %v856 = vld [vmem:[%s842 + $0x34] sm:$0xf]
      %v857 = vld [vmem:[%s842 + $0x38] sm:$0xf]
      %v858 = vld [vmem:[%s842 + $0x3c] sm:$0xf]
      %v863 = vunpack.c.l.b16 %v838
      %v864 = vunpack.c.l.b16 %v839
      %v865 = vunpack.c.l.b16 %v840
      %v866 = vunpack.c.l.b16 %v841
      %v867 = vpack.c.b16 %v864, %v863
      %v868 = vpack.c.b16 %v866, %v865
      %v887 = vunpack.c.l.b16 %v843
      %v888 = vunpack.c.l.b16 %v844
      %v889 = vunpack.c.l.b16 %v845
      %v890 = vunpack.c.l.b16 %v846
      %v891 = vunpack.c.l.b16 %v847
      %v892 = vunpack.c.l.b16 %v848
      %v893 = vunpack.c.l.b16 %v849
      %v894 = vunpack.c.l.b16 %v850
      %v895 = vunpack.c.l.b16 %v851
      %v896 = vunpack.c.l.b16 %v852
      %v897 = vunpack.c.l.b16 %v853
      %v898 = vunpack.c.l.b16 %v854
      %v899 = vunpack.c.l.b16 %v855
      %v900 = vunpack.c.l.b16 %v856
      %v901 = vunpack.c.l.b16 %v857
      %v902 = vunpack.c.l.b16 %v858
      %v903 = vpack.c.b16 %v888, %v887
      %v904 = vpack.c.b16 %v890, %v889
      %v905 = vpack.c.b16 %v892, %v891
      %v906 = vpack.c.b16 %v894, %v893
      %v907 = vpack.c.b16 %v896, %v895
      %v908 = vpack.c.b16 %v898, %v897
      %v909 = vpack.c.b16 %v900, %v899
      %v910 = vpack.c.b16 %v902, %v901
      %919 = vmatpush.bf16.msra.mxu0 %v910
      %920 = vmatpush.bf16.msra.mxu0 %v909
      %921 = vmatpush.bf16.msra.mxu0 %v908
      %922 = vmatpush.bf16.msra.mxu0 %v907
      %923 = vmatpush.bf16.msra.mxu0 %v906
      %924 = vmatpush.bf16.msra.mxu0 %v905
      %925 = vmatpush.bf16.msra.mxu0 %v904
      %926 = vmatpush.bf16.msra.mxu0 %v903
      %927 = vmatmul.bf16.gmra.mxu0 %v867
      %v928 = vpop.f32.mrf.mxu0
      %v929 = vadd.f32 0.0, %v928
      %v930 = vpop.f32.mrf.mxu0
      %v931 = vadd.f32 0.0, %v930
      %932 = vmatmul.bf16.gmra.mxu0 %v868
      %v933 = vpop.f32.mrf.mxu0
      %v934 = vadd.f32 0.0, %v933
      %v935 = vpop.f32.mrf.mxu0
      %v936 = vadd.f32 0.0, %v935
      %937 = vdwg.mxu0
      %v938 = vadd.f32 %v833, %v929
      %v939 = vadd.f32 %v834, %v931
      %v940 = vadd.f32 %v835, %v934
      %v941 = vadd.f32 %v836, %v936
      %v942 = vld [vmem:[%s837] sm:$0xf]
      %v943 = vld [vmem:[%s837 + $0x4] sm:$0x1]
      %v944 = vld [vmem:[%s837 + $0x8] sm:$0xf]
      %v945 = vld [vmem:[%s837 + $0xc] sm:$0x1]
      %v946 = vld [vmem:[%s837 + $0x10] sm:$0xf]
      %v947 = vld [vmem:[%s837 + $0x14] sm:$0x1]
      %v948 = vld [vmem:[%s837 + $0x18] sm:$0xf]
      %v949 = vld [vmem:[%s837 + $0x1c] sm:$0x1]
      %v951 = vshrl.u32 %v942, 16
      %v953 = vrot.slane %v951, 4
      %v954 = vshll.u32 %v942, 16
      %v956 = vrot.slane %v954, 5
      %v957 = vor.u32 %v953, %v956
      %v958 = vrot.slane %v957, 4
      %v960 = vshll.u32 %v943, 16
      %v962 = vrot.slane %v960, 5
      %v963 = vsel %vm482, %v958, %v962
      %v965 = vshrl.u32 %v944, 16
      %v967 = vrot.slane %v965, 4
      %v968 = vshll.u32 %v944, 16
      %v970 = vrot.slane %v968, 5
      %v971 = vor.u32 %v967, %v970
      %v972 = vrot.slane %v971, 4
      %v974 = vshll.u32 %v945, 16
      %v976 = vrot.slane %v974, 5
      %v977 = vsel %vm482, %v972, %v976
      %v979 = vshrl.u32 %v946, 16
      %v981 = vrot.slane %v979, 4
      %v982 = vshll.u32 %v946, 16
      %v984 = vrot.slane %v982, 5
      %v985 = vor.u32 %v981, %v984
      %v986 = vrot.slane %v985, 4
      %v988 = vshll.u32 %v947, 16
      %v990 = vrot.slane %v988, 5
      %v991 = vsel %vm482, %v986, %v990
      %v993 = vshrl.u32 %v948, 16
      %v995 = vrot.slane %v993, 4
      %v996 = vshll.u32 %v948, 16
      %v998 = vrot.slane %v996, 5
      %v999 = vor.u32 %v995, %v998
      %v1000 = vrot.slane %v999, 4
      %v1002 = vshll.u32 %v949, 16
      %v1004 = vrot.slane %v1002, 5
      %v1005 = vsel %vm482, %v1000, %v1004
      %s1006 = scalar_lea.vmem %s1, 256
      %v1007 = vld [vmem:[%s1006] sm:$0xf]
      %v1008 = vld [vmem:[%s1006 + $0x4] sm:$0xf]
      %v1009 = vld [vmem:[%s1006 + $0x8] sm:$0xf]
      %v1010 = vld [vmem:[%s1006 + $0xc] sm:$0xf]
      %v1011 = vld [vmem:[%s1006 + $0x10] sm:$0xf]
      %v1012 = vld [vmem:[%s1006 + $0x14] sm:$0xf]
      %v1013 = vld [vmem:[%s1006 + $0x18] sm:$0xf]
      %v1014 = vld [vmem:[%s1006 + $0x1c] sm:$0xf]
      %v1015 = vld [vmem:[%s1006 + $0x20] sm:$0xf]
      %v1016 = vld [vmem:[%s1006 + $0x24] sm:$0xf]
      %v1017 = vld [vmem:[%s1006 + $0x28] sm:$0xf]
      %v1018 = vld [vmem:[%s1006 + $0x2c] sm:$0xf]
      %v1019 = vld [vmem:[%s1006 + $0x30] sm:$0xf]
      %v1020 = vld [vmem:[%s1006 + $0x34] sm:$0xf]
      %v1021 = vld [vmem:[%s1006 + $0x38] sm:$0xf]
      %v1022 = vld [vmem:[%s1006 + $0x3c] sm:$0xf]
      %v1023 = vunpack.c.l.b16 %v963
      %v1024 = vunpack.c.l.b16 %v977
      %v1025 = vunpack.c.l.b16 %v991
      %v1026 = vunpack.c.l.b16 %v1005
      %v1027 = vpack.c.b16 %v1024, %v1023
      %v1028 = vpack.c.b16 %v1026, %v1025
      %v1047 = vunpack.c.l.b16 %v1007
      %v1048 = vunpack.c.l.b16 %v1008
      %v1049 = vunpack.c.l.b16 %v1009
      %v1050 = vunpack.c.l.b16 %v1010
      %v1051 = vunpack.c.l.b16 %v1011
      %v1052 = vunpack.c.l.b16 %v1012
      %v1053 = vunpack.c.l.b16 %v1013
      %v1054 = vunpack.c.l.b16 %v1014
      %v1055 = vunpack.c.l.b16 %v1015
      %v1056 = vunpack.c.l.b16 %v1016
      %v1057 = vunpack.c.l.b16 %v1017
      %v1058 = vunpack.c.l.b16 %v1018
      %v1059 = vunpack.c.l.b16 %v1019
      %v1060 = vunpack.c.l.b16 %v1020
      %v1061 = vunpack.c.l.b16 %v1021
      %v1062 = vunpack.c.l.b16 %v1022
      %v1063 = vpack.c.b16 %v1048, %v1047
      %v1064 = vpack.c.b16 %v1050, %v1049
      %v1065 = vpack.c.b16 %v1052, %v1051
      %v1066 = vpack.c.b16 %v1054, %v1053
      %v1067 = vpack.c.b16 %v1056, %v1055
      %v1068 = vpack.c.b16 %v1058, %v1057
      %v1069 = vpack.c.b16 %v1060, %v1059
      %v1070 = vpack.c.b16 %v1062, %v1061
      %1079 = vmatpush.bf16.msra.mxu0 %v1070
      %1080 = vmatpush.bf16.msra.mxu0 %v1069
      %1081 = vmatpush.bf16.msra.mxu0 %v1068
      %1082 = vmatpush.bf16.msra.mxu0 %v1067
      %1083 = vmatpush.bf16.msra.mxu0 %v1066
      %1084 = vmatpush.bf16.msra.mxu0 %v1065
      %1085 = vmatpush.bf16.msra.mxu0 %v1064
      %1086 = vmatpush.bf16.msra.mxu0 %v1063
      %1087 = vmatmul.bf16.gmra.mxu0 %v1027
      %v1088 = vpop.f32.mrf.mxu0
      %v1089 = vadd.f32 0.0, %v1088
      %v1090 = vpop.f32.mrf.mxu0
      %v1091 = vadd.f32 0.0, %v1090
      %1092 = vmatmul.bf16.gmra.mxu0 %v1028
      %v1093 = vpop.f32.mrf.mxu0
      %v1094 = vadd.f32 0.0, %v1093
      %v1095 = vpop.f32.mrf.mxu0
      %v1096 = vadd.f32 0.0, %v1095
      %1097 = vdwg.mxu0
      %v1098 = vadd.f32 %v938, %v1089
      %v1099 = vadd.f32 %v939, %v1091
      %v1100 = vadd.f32 %v940, %v1094
      %v1101 = vadd.f32 %v941, %v1096
      %v1102 = vld [vmem:[%s837] sm:$0xe]
      %v1103 = vld [vmem:[%s837 + $0x8] sm:$0xe]
      %v1104 = vld [vmem:[%s837 + $0x10] sm:$0xe]
      %v1105 = vld [vmem:[%s837 + $0x18] sm:$0xe]
      %v1114 = vrot.slane %v1102, 5
      %v1115 = vrot.slane %v1114, 4
      %v1116 = vrot.slane %v943, 5
      %v1117 = vsel %vm724, %v1115, %v1116
      %v1118 = vrot.slane %v1103, 5
      %v1119 = vrot.slane %v1118, 4
      %v1120 = vrot.slane %v945, 5
      %v1121 = vsel %vm724, %v1119, %v1120
      %v1122 = vrot.slane %v1104, 5
      %v1123 = vrot.slane %v1122, 4
      %v1124 = vrot.slane %v947, 5
      %v1125 = vsel %vm724, %v1123, %v1124
      %v1126 = vrot.slane %v1105, 5
      %v1127 = vrot.slane %v1126, 4
      %v1128 = vrot.slane %v949, 5
      %v1129 = vsel %vm724, %v1127, %v1128
      %s1130 = scalar_lea.vmem %s1, 320
      %v1131 = vld [vmem:[%s1130] sm:$0xf]
      %v1132 = vld [vmem:[%s1130 + $0x4] sm:$0xf]
      %v1133 = vld [vmem:[%s1130 + $0x8] sm:$0xf]
      %v1134 = vld [vmem:[%s1130 + $0xc] sm:$0xf]
      %v1135 = vld [vmem:[%s1130 + $0x10] sm:$0xf]
      %v1136 = vld [vmem:[%s1130 + $0x14] sm:$0xf]
      %v1137 = vld [vmem:[%s1130 + $0x18] sm:$0xf]
      %v1138 = vld [vmem:[%s1130 + $0x1c] sm:$0xf]
      %v1139 = vld [vmem:[%s1130 + $0x20] sm:$0xf]
      %v1140 = vld [vmem:[%s1130 + $0x24] sm:$0xf]
      %v1141 = vld [vmem:[%s1130 + $0x28] sm:$0xf]
      %v1142 = vld [vmem:[%s1130 + $0x2c] sm:$0xf]
      %v1143 = vld [vmem:[%s1130 + $0x30] sm:$0xf]
      %v1144 = vld [vmem:[%s1130 + $0x34] sm:$0xf]
      %v1145 = vld [vmem:[%s1130 + $0x38] sm:$0xf]
      %v1146 = vld [vmem:[%s1130 + $0x3c] sm:$0xf]
      %v1147 = vunpack.c.l.b16 %v1117
      %v1148 = vunpack.c.l.b16 %v1121
      %v1149 = vunpack.c.l.b16 %v1125
      %v1150 = vunpack.c.l.b16 %v1129
      %v1151 = vpack.c.b16 %v1148, %v1147
      %v1152 = vpack.c.b16 %v1150, %v1149
      %v1171 = vunpack.c.l.b16 %v1131
      %v1172 = vunpack.c.l.b16 %v1132
      %v1173 = vunpack.c.l.b16 %v1133
      %v1174 = vunpack.c.l.b16 %v1134
      %v1175 = vunpack.c.l.b16 %v1135
      %v1176 = vunpack.c.l.b16 %v1136
      %v1177 = vunpack.c.l.b16 %v1137
      %v1178 = vunpack.c.l.b16 %v1138
      %v1179 = vunpack.c.l.b16 %v1139
      %v1180 = vunpack.c.l.b16 %v1140
      %v1181 = vunpack.c.l.b16 %v1141
      %v1182 = vunpack.c.l.b16 %v1142
      %v1183 = vunpack.c.l.b16 %v1143
      %v1184 = vunpack.c.l.b16 %v1144
      %v1185 = vunpack.c.l.b16 %v1145
      %v1186 = vunpack.c.l.b16 %v1146
      %v1187 = vpack.c.b16 %v1172, %v1171
      %v1188 = vpack.c.b16 %v1174, %v1173
      %v1189 = vpack.c.b16 %v1176, %v1175
      %v1190 = vpack.c.b16 %v1178, %v1177
      %v1191 = vpack.c.b16 %v1180, %v1179
      %v1192 = vpack.c.b16 %v1182, %v1181
      %v1193 = vpack.c.b16 %v1184, %v1183
      %v1194 = vpack.c.b16 %v1186, %v1185
      %1203 = vmatpush.bf16.msra.mxu0 %v1194
      %1204 = vmatpush.bf16.msra.mxu0 %v1193
      %1205 = vmatpush.bf16.msra.mxu0 %v1192
      %1206 = vmatpush.bf16.msra.mxu0 %v1191
      %1207 = vmatpush.bf16.msra.mxu0 %v1190
      %1208 = vmatpush.bf16.msra.mxu0 %v1189
      %1209 = vmatpush.bf16.msra.mxu0 %v1188
      %1210 = vmatpush.bf16.msra.mxu0 %v1187
      %1211 = vmatmul.bf16.gmra.mxu0 %v1151
      %v1212 = vpop.f32.mrf.mxu0
      %v1213 = vadd.f32 0.0, %v1212
      %v1214 = vpop.f32.mrf.mxu0
      %v1215 = vadd.f32 0.0, %v1214
      %1216 = vmatmul.bf16.gmra.mxu0 %v1152
      %v1217 = vpop.f32.mrf.mxu0
      %v1218 = vadd.f32 0.0, %v1217
      %v1219 = vpop.f32.mrf.mxu0
      %v1220 = vadd.f32 0.0, %v1219
      %1221 = vdwg.mxu0
      %v1222 = vadd.f32 %v1098, %v1213
      %v1223 = vadd.f32 %v1099, %v1215
      %v1224 = vadd.f32 %v1100, %v1218
      %v1225 = vadd.f32 %v1101, %v1220
      %s1226 = scalar_lea.vmem [#allocation2], 16
      %v1227 = vld [vmem:[%s1226] sm:$0xf]
      %v1228 = vld [vmem:[%s1226 + $0x8] sm:$0xf]
      %v1229 = vld [vmem:[%s1226 + $0x10] sm:$0xf]
      %v1230 = vld [vmem:[%s1226 + $0x18] sm:$0xf]
      %s1231 = scalar_lea.vmem %s1, 384
      %v1232 = vld [vmem:[%s1231] sm:$0xf]
      %v1233 = vld [vmem:[%s1231 + $0x4] sm:$0xf]
      %v1234 = vld [vmem:[%s1231 + $0x8] sm:$0xf]
      %v1235 = vld [vmem:[%s1231 + $0xc] sm:$0xf]
      %v1236 = vld [vmem:[%s1231 + $0x10] sm:$0xf]
      %v1237 = vld [vmem:[%s1231 + $0x14] sm:$0xf]
      %v1238 = vld [vmem:[%s1231 + $0x18] sm:$0xf]
      %v1239 = vld [vmem:[%s1231 + $0x1c] sm:$0xf]
      %v1240 = vld [vmem:[%s1231 + $0x20] sm:$0xf]
      %v1241 = vld [vmem:[%s1231 + $0x24] sm:$0xf]
      %v1242 = vld [vmem:[%s1231 + $0x28] sm:$0xf]
      %v1243 = vld [vmem:[%s1231 + $0x2c] sm:$0xf]
      %v1244 = vld [vmem:[%s1231 + $0x30] sm:$0xf]
      %v1245 = vld [vmem:[%s1231 + $0x34] sm:$0xf]
      %v1246 = vld [vmem:[%s1231 + $0x38] sm:$0xf]
      %v1247 = vld [vmem:[%s1231 + $0x3c] sm:$0xf]
      %v1252 = vunpack.c.l.b16 %v1227
      %v1253 = vunpack.c.l.b16 %v1228
      %v1254 = vunpack.c.l.b16 %v1229
      %v1255 = vunpack.c.l.b16 %v1230
      %v1256 = vpack.c.b16 %v1253, %v1252
      %v1257 = vpack.c.b16 %v1255, %v1254
      %v1276 = vunpack.c.l.b16 %v1232
      %v1277 = vunpack.c.l.b16 %v1233
      %v1278 = vunpack.c.l.b16 %v1234
      %v1279 = vunpack.c.l.b16 %v1235
      %v1280 = vunpack.c.l.b16 %v1236
      %v1281 = vunpack.c.l.b16 %v1237
      %v1282 = vunpack.c.l.b16 %v1238
      %v1283 = vunpack.c.l.b16 %v1239
      %v1284 = vunpack.c.l.b16 %v1240
      %v1285 = vunpack.c.l.b16 %v1241
      %v1286 = vunpack.c.l.b16 %v1242
      %v1287 = vunpack.c.l.b16 %v1243
      %v1288 = vunpack.c.l.b16 %v1244
      %v1289 = vunpack.c.l.b16 %v1245
      %v1290 = vunpack.c.l.b16 %v1246
      %v1291 = vunpack.c.l.b16 %v1247
      %v1292 = vpack.c.b16 %v1277, %v1276
      %v1293 = vpack.c.b16 %v1279, %v1278
      %v1294 = vpack.c.b16 %v1281, %v1280
      %v1295 = vpack.c.b16 %v1283, %v1282
      %v1296 = vpack.c.b16 %v1285, %v1284
      %v1297 = vpack.c.b16 %v1287, %v1286
      %v1298 = vpack.c.b16 %v1289, %v1288
      %v1299 = vpack.c.b16 %v1291, %v1290
      %1308 = vmatpush.bf16.msra.mxu0 %v1299
      %1309 = vmatpush.bf16.msra.mxu0 %v1298
      %1310 = vmatpush.bf16.msra.mxu0 %v1297
      %1311 = vmatpush.bf16.msra.mxu0 %v1296
      %1312 = vmatpush.bf16.msra.mxu0 %v1295
      %1313 = vmatpush.bf16.msra.mxu0 %v1294
      %1314 = vmatpush.bf16.msra.mxu0 %v1293
      %1315 = vmatpush.bf16.msra.mxu0 %v1292
      %1316 = vmatmul.bf16.gmra.mxu0 %v1256
      %v1317 = vpop.f32.mrf.mxu0
      %v1318 = vadd.f32 0.0, %v1317
      %v1319 = vpop.f32.mrf.mxu0
      %v1320 = vadd.f32 0.0, %v1319
      %1321 = vmatmul.bf16.gmra.mxu0 %v1257
      %v1322 = vpop.f32.mrf.mxu0
      %v1323 = vadd.f32 0.0, %v1322
      %v1324 = vpop.f32.mrf.mxu0
      %v1325 = vadd.f32 0.0, %v1324
      %1326 = vdwg.mxu0
      %v1327 = vadd.f32 %v1222, %v1318
      %v1328 = vadd.f32 %v1223, %v1320
      %v1329 = vadd.f32 %v1224, %v1323
      %v1330 = vadd.f32 %v1225, %v1325
      %v1331 = vld [vmem:[%s1226] sm:$0xf]
      %v1332 = vld [vmem:[%s1226 + $0x4] sm:$0x1]
      %v1333 = vld [vmem:[%s1226 + $0x8] sm:$0xf]
      %v1334 = vld [vmem:[%s1226 + $0xc] sm:$0x1]
      %v1335 = vld [vmem:[%s1226 + $0x10] sm:$0xf]
      %v1336 = vld [vmem:[%s1226 + $0x14] sm:$0x1]
      %v1337 = vld [vmem:[%s1226 + $0x18] sm:$0xf]
      %v1338 = vld [vmem:[%s1226 + $0x1c] sm:$0x1]
      %v1340 = vshrl.u32 %v1331, 16
      %v1342 = vrot.slane %v1340, 4
      %v1343 = vshll.u32 %v1331, 16
      %v1345 = vrot.slane %v1343, 5
      %v1346 = vor.u32 %v1342, %v1345
      %v1347 = vrot.slane %v1346, 4
      %v1349 = vshll.u32 %v1332, 16
      %v1351 = vrot.slane %v1349, 5
      %v1352 = vsel %vm482, %v1347, %v1351
      %v1354 = vshrl.u32 %v1333, 16
      %v1356 = vrot.slane %v1354, 4
      %v1357 = vshll.u32 %v1333, 16
      %v1359 = vrot.slane %v1357, 5
      %v1360 = vor.u32 %v1356, %v1359
      %v1361 = vrot.slane %v1360, 4
      %v1363 = vshll.u32 %v1334, 16
      %v1365 = vrot.slane %v1363, 5
      %v1366 = vsel %vm482, %v1361, %v1365
      %v1368 = vshrl.u32 %v1335, 16
      %v1370 = vrot.slane %v1368, 4
      %v1371 = vshll.u32 %v1335, 16
      %v1373 = vrot.slane %v1371, 5
      %v1374 = vor.u32 %v1370, %v1373
      %v1375 = vrot.slane %v1374, 4
      %v1377 = vshll.u32 %v1336, 16
      %v1379 = vrot.slane %v1377, 5
      %v1380 = vsel %vm482, %v1375, %v1379
      %v1382 = vshrl.u32 %v1337, 16
      %v1384 = vrot.slane %v1382, 4
      %v1385 = vshll.u32 %v1337, 16
      %v1387 = vrot.slane %v1385, 5
      %v1388 = vor.u32 %v1384, %v1387
      %v1389 = vrot.slane %v1388, 4
      %v1391 = vshll.u32 %v1338, 16
      %v1393 = vrot.slane %v1391, 5
      %v1394 = vsel %vm482, %v1389, %v1393
      %s1395 = scalar_lea.vmem %s1, 448
      %v1396 = vld [vmem:[%s1395] sm:$0xf]
      %v1397 = vld [vmem:[%s1395 + $0x4] sm:$0xf]
      %v1398 = vld [vmem:[%s1395 + $0x8] sm:$0xf]
      %v1399 = vld [vmem:[%s1395 + $0xc] sm:$0xf]
      %v1400 = vld [vmem:[%s1395 + $0x10] sm:$0xf]
      %v1401 = vld [vmem:[%s1395 + $0x14] sm:$0xf]
      %v1402 = vld [vmem:[%s1395 + $0x18] sm:$0xf]
      %v1403 = vld [vmem:[%s1395 + $0x1c] sm:$0xf]
      %v1404 = vld [vmem:[%s1395 + $0x20] sm:$0xf]
      %v1405 = vld [vmem:[%s1395 + $0x24] sm:$0xf]
      %v1406 = vld [vmem:[%s1395 + $0x28] sm:$0xf]
      %v1407 = vld [vmem:[%s1395 + $0x2c] sm:$0xf]
      %v1408 = vld [vmem:[%s1395 + $0x30] sm:$0xf]
      %v1409 = vld [vmem:[%s1395 + $0x34] sm:$0xf]
      %v1410 = vld [vmem:[%s1395 + $0x38] sm:$0xf]
      %v1411 = vld [vmem:[%s1395 + $0x3c] sm:$0xf]
      %v1412 = vunpack.c.l.b16 %v1352
      %v1413 = vunpack.c.l.b16 %v1366
      %v1414 = vunpack.c.l.b16 %v1380
      %v1415 = vunpack.c.l.b16 %v1394
      %v1416 = vpack.c.b16 %v1413, %v1412
      %v1417 = vpack.c.b16 %v1415, %v1414
      %v1436 = vunpack.c.l.b16 %v1396
      %v1437 = vunpack.c.l.b16 %v1397
      %v1438 = vunpack.c.l.b16 %v1398
      %v1439 = vunpack.c.l.b16 %v1399
      %v1440 = vunpack.c.l.b16 %v1400
      %v1441 = vunpack.c.l.b16 %v1401
      %v1442 = vunpack.c.l.b16 %v1402
      %v1443 = vunpack.c.l.b16 %v1403
      %v1444 = vunpack.c.l.b16 %v1404
      %v1445 = vunpack.c.l.b16 %v1405
      %v1446 = vunpack.c.l.b16 %v1406
      %v1447 = vunpack.c.l.b16 %v1407
      %v1448 = vunpack.c.l.b16 %v1408
      %v1449 = vunpack.c.l.b16 %v1409
      %v1450 = vunpack.c.l.b16 %v1410
      %v1451 = vunpack.c.l.b16 %v1411
      %v1452 = vpack.c.b16 %v1437, %v1436
      %v1453 = vpack.c.b16 %v1439, %v1438
      %v1454 = vpack.c.b16 %v1441, %v1440
      %v1455 = vpack.c.b16 %v1443, %v1442
      %v1456 = vpack.c.b16 %v1445, %v1444
      %v1457 = vpack.c.b16 %v1447, %v1446
      %v1458 = vpack.c.b16 %v1449, %v1448
      %v1459 = vpack.c.b16 %v1451, %v1450
      %1468 = vmatpush.bf16.msra.mxu0 %v1459
      %1469 = vmatpush.bf16.msra.mxu0 %v1458
      %1470 = vmatpush.bf16.msra.mxu0 %v1457
      %1471 = vmatpush.bf16.msra.mxu0 %v1456
      %1472 = vmatpush.bf16.msra.mxu0 %v1455
      %1473 = vmatpush.bf16.msra.mxu0 %v1454
      %1474 = vmatpush.bf16.msra.mxu0 %v1453
      %1475 = vmatpush.bf16.msra.mxu0 %v1452
      %1476 = vmatmul.bf16.gmra.mxu0 %v1416
      %v1477 = vpop.f32.mrf.mxu0
      %v1478 = vadd.f32 0.0, %v1477
      %v1479 = vpop.f32.mrf.mxu0
      %v1480 = vadd.f32 0.0, %v1479
      %1481 = vmatmul.bf16.gmra.mxu0 %v1417
      %v1482 = vpop.f32.mrf.mxu0
      %v1483 = vadd.f32 0.0, %v1482
      %v1484 = vpop.f32.mrf.mxu0
      %v1485 = vadd.f32 0.0, %v1484
      %1486 = vdwg.mxu0
      %v1487 = vadd.f32 %v1327, %v1478
      %v1488 = vadd.f32 %v1328, %v1480
      %v1489 = vadd.f32 %v1329, %v1483
      %v1490 = vadd.f32 %v1330, %v1485
      %v1491 = vld [vmem:[%s1226] sm:$0xe]
      %v1492 = vld [vmem:[%s1226 + $0x8] sm:$0xe]
      %v1493 = vld [vmem:[%s1226 + $0x10] sm:$0xe]
      %v1494 = vld [vmem:[%s1226 + $0x18] sm:$0xe]
      %v1503 = vrot.slane %v1491, 5
      %v1504 = vrot.slane %v1503, 4
      %v1505 = vrot.slane %v1332, 5
      %v1506 = vsel %vm724, %v1504, %v1505
      %v1507 = vrot.slane %v1492, 5
      %v1508 = vrot.slane %v1507, 4
      %v1509 = vrot.slane %v1334, 5
      %v1510 = vsel %vm724, %v1508, %v1509
      %v1511 = vrot.slane %v1493, 5
      %v1512 = vrot.slane %v1511, 4
      %v1513 = vrot.slane %v1336, 5
      %v1514 = vsel %vm724, %v1512, %v1513
      %v1515 = vrot.slane %v1494, 5
      %v1516 = vrot.slane %v1515, 4
      %v1517 = vrot.slane %v1338, 5
      %v1518 = vsel %vm724, %v1516, %v1517
      %s1519 = scalar_lea.vmem %s1, 512
      %v1520 = vld [vmem:[%s1519] sm:$0xf]
      %v1521 = vld [vmem:[%s1519 + $0x4] sm:$0xf]
      %v1522 = vld [vmem:[%s1519 + $0x8] sm:$0xf]
      %v1523 = vld [vmem:[%s1519 + $0xc] sm:$0xf]
      %v1524 = vld [vmem:[%s1519 + $0x10] sm:$0xf]
      %v1525 = vld [vmem:[%s1519 + $0x14] sm:$0xf]
      %v1526 = vld [vmem:[%s1519 + $0x18] sm:$0xf]
      %v1527 = vld [vmem:[%s1519 + $0x1c] sm:$0xf]
      %v1528 = vld [vmem:[%s1519 + $0x20] sm:$0xf]
      %v1529 = vld [vmem:[%s1519 + $0x24] sm:$0xf]
      %v1530 = vld [vmem:[%s1519 + $0x28] sm:$0xf]
      %v1531 = vld [vmem:[%s1519 + $0x2c] sm:$0xf]
      %v1532 = vld [vmem:[%s1519 + $0x30] sm:$0xf]
      %v1533 = vld [vmem:[%s1519 + $0x34] sm:$0xf]
      %v1534 = vld [vmem:[%s1519 + $0x38] sm:$0xf]
      %v1535 = vld [vmem:[%s1519 + $0x3c] sm:$0xf]
      %v1536 = vunpack.c.l.b16 %v1506
      %v1537 = vunpack.c.l.b16 %v1510
      %v1538 = vunpack.c.l.b16 %v1514
      %v1539 = vunpack.c.l.b16 %v1518
      %v1540 = vpack.c.b16 %v1537, %v1536
      %v1541 = vpack.c.b16 %v1539, %v1538
      %v1560 = vunpack.c.l.b16 %v1520
      %v1561 = vunpack.c.l.b16 %v1521
      %v1562 = vunpack.c.l.b16 %v1522
      %v1563 = vunpack.c.l.b16 %v1523
      %v1564 = vunpack.c.l.b16 %v1524
      %v1565 = vunpack.c.l.b16 %v1525
      %v1566 = vunpack.c.l.b16 %v1526
      %v1567 = vunpack.c.l.b16 %v1527
      %v1568 = vunpack.c.l.b16 %v1528
      %v1569 = vunpack.c.l.b16 %v1529
      %v1570 = vunpack.c.l.b16 %v1530
      %v1571 = vunpack.c.l.b16 %v1531
      %v1572 = vunpack.c.l.b16 %v1532
      %v1573 = vunpack.c.l.b16 %v1533
      %v1574 = vunpack.c.l.b16 %v1534
      %v1575 = vunpack.c.l.b16 %v1535
      %v1576 = vpack.c.b16 %v1561, %v1560
      %v1577 = vpack.c.b16 %v1563, %v1562
      %v1578 = vpack.c.b16 %v1565, %v1564
      %v1579 = vpack.c.b16 %v1567, %v1566
      %v1580 = vpack.c.b16 %v1569, %v1568
      %v1581 = vpack.c.b16 %v1571, %v1570
      %v1582 = vpack.c.b16 %v1573, %v1572
      %v1583 = vpack.c.b16 %v1575, %v1574
      %1592 = vmatpush.bf16.msra.mxu0 %v1583
      %1593 = vmatpush.bf16.msra.mxu0 %v1582
      %1594 = vmatpush.bf16.msra.mxu0 %v1581
      %1595 = vmatpush.bf16.msra.mxu0 %v1580
      %1596 = vmatpush.bf16.msra.mxu0 %v1579
      %1597 = vmatpush.bf16.msra.mxu0 %v1578
      %1598 = vmatpush.bf16.msra.mxu0 %v1577
      %1599 = vmatpush.bf16.msra.mxu0 %v1576
      %1600 = vmatmul.bf16.gmra.mxu0 %v1540
      %v1601 = vpop.f32.mrf.mxu0
      %v1602 = vadd.f32 0.0, %v1601
      %v1603 = vpop.f32.mrf.mxu0
      %v1604 = vadd.f32 0.0, %v1603
      %1605 = vmatmul.bf16.gmra.mxu0 %v1541
      %v1606 = vpop.f32.mrf.mxu0
      %v1607 = vadd.f32 0.0, %v1606
      %v1608 = vpop.f32.mrf.mxu0
      %v1609 = vadd.f32 0.0, %v1608
      %1610 = vdwg.mxu0
      %v1611 = vadd.f32 %v1487, %v1602
      %v1612 = vadd.f32 %v1488, %v1604
      %v1613 = vadd.f32 %v1489, %v1607
      %v1614 = vadd.f32 %v1490, %v1609
      %v1615 = vpack.c.bf16 %v1611, %v1611
      %v1616 = vpack.c.bf16 %v1612, %v1612
      %v1617 = vpack.c.bf16 %v1613, %v1613
      %v1618 = vpack.c.bf16 %v1614, %v1614
      %1619 = vst [vmem:[%s259] sm:$0xf] %v1615
      %1620 = vst [vmem:[%s259 + $0x4] sm:$0xf] %v1616
      %1621 = vst [vmem:[%s259 + $0x8] sm:$0xf] %v1617
      %1622 = vst [vmem:[%s259 + $0xc] sm:$0xf] %v1618
      %v1623 = vadd.f32 %v1611, %v1612
      %v1624 = vadd.f32 %v1623, %v1613
      %v1625 = vadd.f32 %v1624, %v1614
      %v1626 = vrot.slane %v1625, 4
      %v1627 = vadd.f32 %v1625, %v1626
      %v1628 = vrot.slane %v1627, 2
      %v1629 = vadd.f32 %v1627, %v1628
      %v1630 = vrot.slane %v1629, 1
      %v1631 = vadd.f32 %v1629, %v1630
      %v1632 = vadd.f32 %v1631, 0.0
      %v1633 = vmul.f32 %v1611, %v1611
      %v1634 = vmul.f32 %v1612, %v1612
      %v1635 = vmul.f32 %v1613, %v1613
      %v1636 = vmul.f32 %v1614, %v1614
      %v1637 = vadd.f32 %v1633, %v1634
      %v1638 = vadd.f32 %v1637, %v1635
      %v1639 = vadd.f32 %v1638, %v1636
      %v1640 = vrot.slane %v1639, 4
      %v1641 = vadd.f32 %v1639, %v1640
      %v1642 = vrot.slane %v1641, 2
      %v1643 = vadd.f32 %v1641, %v1642
      %v1644 = vrot.slane %v1643, 1
      %v1645 = vadd.f32 %v1643, %v1644
      %v1646 = vadd.f32 %v1645, 0.0
      %vm1647 = vcmask 1040384
      %v1648 = vsel %vm1647, %v1632, %v1646
      %1649 = vst [vmem:[%s266] sm:$0x3] %v1648
      %s1650 = smul.u32 4, %s22
      %p1651 = scmp.lt.s32.totalorder %s21, 1
      %s1652 = scalar_select %p1651, %s21, 1
      %p1653 = scmp.lt.s32.totalorder %s1650, 7
      %s1654 = scalar_select %p1653, %s1650, 7
      %s1655 = smul.addr %s1652, 8
      %s1656 = sadd.s32 %s1654, %s1655
      %s1657 = smul.addr %s1656, 4
      %s1658 = scalar_lea.vmem %s4, %s1657
      %s1659 = smul.u32 %s21, 2
      %s1660 = sadd.s32 %s1659, %s22
      %p1661 = scmp.lt.s32.totalorder %s1660, 3
      %s1662 = scalar_select %p1661, %s1660, 3
      %s1663 = smul.addr %s1662, 2
      %s1664 = scalar_lea.vmem %s5, %s1663
      // Predicated region
      $region37: #{basic_block_forward.4} parent=35 // pred_check
        %p1665 = pneg %p138
      $region38: #{basic_block_forward.4} parent=35 // pred_check_branch
        %1667 = sbr.rel (%p1665) target = $region40
      $region39: #{basic_block_forward.4} parent=35 // pred_region
        %s1668 = smul.u32 4, %s22
      $region40: #{basic_block_forward.4} parent=35 // pred_fallthru
        _
      // Predicated region
      $region41: #{basic_block_forward.4} parent=35 // pred_check
        %p1669 = pneg %p168
      $region42: #{basic_block_forward.4} parent=35 // pred_check_branch
        %1671 = sbr.rel (%p1669) target = $region44
      $region43: #{basic_block_forward.4} parent=35 // pred_region
        %s1672 = smul.u32 %s21, 2
        %s1673 = sadd.s32 %s1672, %s22
      $region44: #{basic_block_forward.4} parent=35 // pred_fallthru
        _
    $region36: #{basic_block_forward.4} parent=5 // pred_fallthru
      _
    %p1674 = scmp.le.s32.totalorder 2, %s12
    // Predicated region
    $region45: #{basic_block_forward.4} parent=5 // pred_check
      %p1675 = pneg %p1674
    $region46: #{basic_block_forward.4} parent=5 // pred_check_branch
      %1677 = sbr.rel (%p1675) target = $region48
    $region47: #{basic_block_forward.4} parent=5 // pred_region
      %s1678 = ssub.s32 %s12, 2
      // Predicated region
      $region49: #{basic_block_forward.4} parent=47 // pred_check
        %p1679 = pneg %p144
      $region50: #{basic_block_forward.4} parent=47 // pred_check_branch
        %1681 = sbr.rel (%p1679) target = $region52
      $region51: #{basic_block_forward.4} parent=47 // pred_region
        %s1682 = smul.u32 4, %s24
        %p1683 = scmp.lt.s32.totalorder %s23, 1
        %s1684 = scalar_select %p1683, %s23, 1
        %p1685 = scmp.lt.s32.totalorder %s1682, 7
        %s1686 = scalar_select %p1685, %s1682, 7
        %s1687 = smul.addr %s1684, 8
        %s1688 = sadd.s32 %s1686, %s1687
        %s1689 = smul.addr %s1688, 4
        %s1690 = scalar_lea.vmem %s4, %s1689
      $region52: #{basic_block_forward.4} parent=47 // pred_fallthru
        _
      // Predicated region
      $region53: #{basic_block_forward.4} parent=47 // pred_check
        %p1691 = pneg %p174
      $region54: #{basic_block_forward.4} parent=47 // pred_check_branch
        %1693 = sbr.rel (%p1691) target = $region56
      $region55: #{basic_block_forward.4} parent=47 // pred_region
        %s1694 = smul.u32 %s23, 2
        %s1695 = sadd.s32 %s1694, %s24
        %p1696 = scmp.lt.s32.totalorder %s1695, 3
        %s1697 = scalar_select %p1696, %s1695, 3
        %s1698 = smul.addr %s1697, 2
        %s1699 = scalar_lea.vmem %s5, %s1698
      $region56: #{basic_block_forward.4} parent=47 // pred_fallthru
        _
    $region48: #{basic_block_forward.4} parent=5 // pred_fallthru
      _
  $region6: #{basic_block_forward.4} parent=0 // loop_footer
    %s16 = sadd.s32 1, %s12
  $region7: #{basic_block_forward.4} parent=0 // loop_footer_branch
    %11 = sbr.rel target = $region3
  $region8: #{basic_block_forward.4} parent=0 // loop_exit
    _

</llo_original>
